<compile_context>
chip_gen: v7x
topology: tpu7x:2x2x1
jax: 0.10.0
libtpu: 0.0.40
codegen_flags: <defaults>
</compile_context>

<pallas_src>
import jax
import jax.numpy as jnp
from jax.experimental import pallas as pl
from jax.experimental.pallas import tpu as pltpu


def network_kernel(x_ref, w0_ref, b0_ref, wh_ref, bh_ref, wo_ref, bo_ref, out_ref):
    net = pl.program_id(0)                       # 0 = mean net, 1 = log_std net
    n_hidden = wh_ref.shape[1]                   # static (3)

    # Layer 0: (B, in) @ (in, 512) -> ReLU
    x = x_ref[...].astype(jnp.bfloat16)
    h = jnp.dot(x, w0_ref[0], preferred_element_type=jnp.float32)
    h = jnp.maximum(h + b0_ref[0].astype(jnp.float32), 0.0)

    # Hidden layers 1..3: (B, 512) @ (512, 512) -> ReLU   (static unroll)
    for k in range(n_hidden):
        hb = h.astype(jnp.bfloat16)
        h = jnp.dot(hb, wh_ref[0, k], preferred_element_type=jnp.float32)
        h = jnp.maximum(h + bh_ref[0, k].astype(jnp.float32), 0.0)

    # Output layer: (B, 512) @ (512, A), then clamp only for the log_std net.
    hb = h.astype(jnp.bfloat16)
    out = jnp.dot(hb, wo_ref[0], preferred_element_type=jnp.float32)
    out = out + bo_ref[0].astype(jnp.float32)
    out = jnp.where(net == 1, jnp.clip(out, -20.0, 2.0), out)
    out_ref[0] = out.astype(out_ref.dtype)


def network_forward(state, params):
    """state: (B, input_shape) f32.
    params: (W0, b0, Wh, bh, Wo, bo) stacked over the two networks, bf16:
      W0 (2, in, H), b0 (2, 1, H), Wh (2, 3, H, H), bh (2, 3, 1, H),
      Wo (2, H, A),  bo (2, 1, A).
    Returns (mean, log_std), both (B, A) f32."""
    W0, b0, Wh, bh, Wo, bo = params
    B, IN = state.shape
    H = W0.shape[-1]
    A = Wo.shape[-1]
    n_hidden = Wh.shape[1]

    out = pl.pallas_call(
        network_kernel,
        out_shape=jax.ShapeDtypeStruct((2, B, A), jnp.float32),
        grid_spec=pltpu.PrefetchScalarGridSpec(
            num_scalar_prefetch=0,
            grid=(2,),
            in_specs=[
                pl.BlockSpec((B, IN), lambda n: (0, 0)),               # state
                pl.BlockSpec((1, IN, H), lambda n: (n, 0, 0)),         # layer-0 W
                pl.BlockSpec((1, 1, H), lambda n: (n, 0, 0)),          # layer-0 b
                pl.BlockSpec((1, n_hidden, H, H), lambda n: (n, 0, 0, 0)),  # hidden Ws
                pl.BlockSpec((1, n_hidden, 1, H), lambda n: (n, 0, 0, 0)),  # hidden bs
                pl.BlockSpec((1, H, A), lambda n: (n, 0, 0)),          # output W
                pl.BlockSpec((1, 1, A), lambda n: (n, 0, 0)),          # output b
            ],
            out_specs=pl.BlockSpec((1, B, A), lambda n: (n, 0, 0)),
        ),
        compiler_params=pltpu.CompilerParams(
            dimension_semantics=("parallel",),
            vmem_limit_bytes=16 << 20,
        ),
    )(state, W0, b0, Wh, bh, Wo, bo)

    return out[0], out[1]


def init_linear(key, fan_in, fan_out):
    """Mimic PyTorch default Linear init (uniform +/- 1/sqrt(fan_in)); W is (in, out)."""
    k_w, k_b = jax.random.split(key)
    bound = 1.0 / float(fan_in) ** 0.5
    W = jax.random.uniform(k_w, (fan_in, fan_out), minval=-bound, maxval=bound,
                           dtype=jnp.float32)
    b = jax.random.uniform(k_b, (1, fan_out), minval=-bound, maxval=bound,
                           dtype=jnp.float32)
    return W, b


def make_stacked_params(key, input_shape, n_actions, hidden=512):
    """Build both networks' params and stack them along a leading axis of size 2."""
    dims = [input_shape, hidden, hidden, hidden, hidden, n_actions]
    W0s, b0s, Whs, bhs, Wos, bos = [], [], [], [], [], []
    for _ in range(2):                       # net 0 = mean, net 1 = log_std
        Ws, bs = [], []
        for i in range(5):
            key, sub = jax.random.split(key)
            W, b = init_linear(sub, dims[i], dims[i + 1])
            Ws.append(W)
            bs.append(b)
        W0s.append(Ws[0]); b0s.append(bs[0])
        Whs.append(jnp.stack(Ws[1:4])); bhs.append(jnp.stack(bs[1:4]))
        Wos.append(Ws[4]); bos.append(bs[4])
    params = (jnp.stack(W0s), jnp.stack(b0s),
              jnp.stack(Whs), jnp.stack(bhs),
              jnp.stack(Wos), jnp.stack(bos))
    return key, params


def reference_forward(state, W0, b0, Wh, bh, Wo, bo):
    """Plain-JAX reference using the same bf16-operand / f32-accumulate matmul
    arithmetic as the kernel."""
    def run_net(n):
        h = jnp.dot(state.astype(jnp.bfloat16), W0[n],
                    preferred_element_type=jnp.float32)
        h = jnp.maximum(h + b0[n].astype(jnp.float32), 0.0)
        for k in range(Wh.shape[1]):
            h = jnp.dot(h.astype(jnp.bfloat16), Wh[n, k],
                        preferred_element_type=jnp.float32)
            h = jnp.maximum(h + bh[n, k].astype(jnp.float32), 0.0)
        out = jnp.dot(h.astype(jnp.bfloat16), Wo[n],
                      preferred_element_type=jnp.float32)
        return out + bo[n].astype(jnp.float32)

    mean = run_net(0)
    log_std = jnp.clip(run_net(1), -20.0, 2.0)
    return mean, log_std


if __name__ == "__main__":
    key = jax.random.PRNGKey(0)

    batch = 8
    input_shape = 32      # observation dim
    n_actions = 8         # action dim
    hidden = 512          # fixed by the module
    # action_scale / action_bias only affect `sample()`, not `forward()`.

    key, params_f32 = make_stacked_params(key, input_shape, n_actions, hidden)
    # Store weights in bf16 (f32 accumulation happens on the MXU inside the kernel).
    params_bf16 = tuple(p.astype(jnp.bfloat16) for p in params_f32)

    key, sub = jax.random.split(key)
    state = jax.random.normal(sub, (batch, input_shape), dtype=jnp.float32)

    mean, log_std = network_forward(state, params_bf16)
    jax.block_until_ready((mean, log_std))

    # Correctness check against a plain-JAX reference with matching arithmetic.
    ref_mean, ref_log = reference_forward(state, *params_bf16)
    assert mean.shape == (batch, n_actions) and log_std.shape == (batch, n_actions)
    assert jnp.allclose(mean, ref_mean, atol=1e-3, rtol=1e-3), \
        f"mean mismatch, max err {float(jnp.max(jnp.abs(mean - ref_mean)))}"
    assert jnp.allclose(log_std, ref_log, atol=1e-3, rtol=1e-3), \
        f"log_std mismatch, max err {float(jnp.max(jnp.abs(log_std - ref_log)))}"
    assert float(jnp.max(log_std)) <= 2.0 and float(jnp.min(log_std)) >= -20.0

    print("KERNEL_OK")
</pallas_src>

<mosaic_0001>
module attributes {stable_mosaic.version = 11 : i64} {
  func.func @network_kernel(%arg0: i32, %arg1: memref<8x32xf32, #tpu.memory_space<vmem>>, %arg2: memref<1x32x512xbf16, #tpu.memory_space<vmem>>, %arg3: memref<1x1x512xbf16, #tpu.memory_space<vmem>>, %arg4: memref<1x3x512x512xbf16, #tpu.memory_space<vmem>>, %arg5: memref<1x3x1x512xbf16, #tpu.memory_space<vmem>>, %arg6: memref<1x512x8xbf16, #tpu.memory_space<vmem>>, %arg7: memref<1x1x8xbf16, #tpu.memory_space<vmem>>, %arg8: memref<1x8x8xf32, #tpu.memory_space<vmem>>) attributes {dimension_semantics = [#tpu.dimension_semantics<parallel>], iteration_bounds = array<i64: 2>, scalar_prefetch = 0 : i64, scratch_operands = 0 : i64, tpu.core_type = #tpu.core_type<tc>, window_params = [{pipeline_mode = #tpu.pipeline_mode<synchronous>, transform_indices = @transform_0, window_bounds = array<i64: 8, 32>}, {transform_indices = @transform_1, window_bounds = array<i64: 1, 32, 512>}, {transform_indices = @transform_2, window_bounds = array<i64: 1, 1, 512>}, {transform_indices = @transform_3, window_bounds = array<i64: 1, 3, 512, 512>}, {transform_indices = @transform_4, window_bounds = array<i64: 1, 3, 1, 512>}, {transform_indices = @transform_5, window_bounds = array<i64: 1, 512, 8>}, {transform_indices = @transform_6, window_bounds = array<i64: 1, 1, 8>}, {transform_indices = @transform_7, window_bounds = array<i64: 1, 8, 8>}]} {
    %c0 = arith.constant 0 : index
    %c0_0 = arith.constant 0 : index
    %0 = vector.load %arg1[%c0, %c0_0] : memref<8x32xf32, #tpu.memory_space<vmem>>, vector<8x32xf32>
    %1 = arith.truncf %0 : vector<8x32xf32> to vector<8x32xbf16>
    %c0_1 = arith.constant 0 : index
    %c0_2 = arith.constant 0 : index
    %c0_3 = arith.constant 0 : index
    %2 = vector.load %arg2[%c0_1, %c0_2, %c0_3] : memref<1x32x512xbf16, #tpu.memory_space<vmem>>, vector<1x32x512xbf16>
    %3 = vector.shape_cast %2 : vector<1x32x512xbf16> to vector<32x512xbf16>
    %cst = arith.constant dense<0.000000e+00> : vector<8x512xf32>
    %4 = tpu.matmul %1, %3, %cst {dimension_numbers = #tpu.dot_dimension_numbers<[1], [0], [0], [1], [0, 0, 1, 1], [], []>} : vector<8x32xbf16>, vector<32x512xbf16>, vector<8x512xf32> -> vector<8x512xf32>
    %c0_4 = arith.constant 0 : index
    %c0_5 = arith.constant 0 : index
    %c0_6 = arith.constant 0 : index
    %5 = vector.load %arg3[%c0_4, %c0_5, %c0_6] : memref<1x1x512xbf16, #tpu.memory_space<vmem>>, vector<1x1x512xbf16>
    %6 = vector.shape_cast %5 : vector<1x1x512xbf16> to vector<1x512xbf16>
    %7 = arith.extf %6 : vector<1x512xbf16> to vector<1x512xf32>
    %8 = vector.broadcast %7 : vector<1x512xf32> to vector<8x512xf32>
    %9 = arith.addf %4, %8 : vector<8x512xf32>
    %cst_7 = arith.constant 0.000000e+00 : f32
    %10 = vector.broadcast %cst_7 : f32 to vector<8x512xf32>
    %11 = arith.maximumf %9, %10 : vector<8x512xf32>
    %12 = arith.truncf %11 : vector<8x512xf32> to vector<8x512xbf16>
    %c0_8 = arith.constant 0 : index
    %c0_9 = arith.constant 0 : index
    %c0_10 = arith.constant 0 : index
    %c0_11 = arith.constant 0 : index
    %13 = vector.load %arg4[%c0_8, %c0_9, %c0_10, %c0_11] : memref<1x3x512x512xbf16, #tpu.memory_space<vmem>>, vector<1x1x512x512xbf16>
    %14 = vector.shape_cast %13 : vector<1x1x512x512xbf16> to vector<512x512xbf16>
    %cst_12 = arith.constant dense<0.000000e+00> : vector<8x512xf32>
    %15 = tpu.matmul %12, %14, %cst_12 {dimension_numbers = #tpu.dot_dimension_numbers<[1], [0], [0], [1], [0, 0, 1, 1], [], []>} : vector<8x512xbf16>, vector<512x512xbf16>, vector<8x512xf32> -> vector<8x512xf32>
    %c0_13 = arith.constant 0 : index
    %c0_14 = arith.constant 0 : index
    %c0_15 = arith.constant 0 : index
    %c0_16 = arith.constant 0 : index
    %16 = vector.load %arg5[%c0_13, %c0_14, %c0_15, %c0_16] : memref<1x3x1x512xbf16, #tpu.memory_space<vmem>>, vector<1x1x1x512xbf16>
    %17 = vector.shape_cast %16 : vector<1x1x1x512xbf16> to vector<1x512xbf16>
    %18 = arith.extf %17 : vector<1x512xbf16> to vector<1x512xf32>
    %19 = vector.broadcast %18 : vector<1x512xf32> to vector<8x512xf32>
    %20 = arith.addf %15, %19 : vector<8x512xf32>
    %cst_17 = arith.constant 0.000000e+00 : f32
    %21 = vector.broadcast %cst_17 : f32 to vector<8x512xf32>
    %22 = arith.maximumf %20, %21 : vector<8x512xf32>
    %23 = arith.truncf %22 : vector<8x512xf32> to vector<8x512xbf16>
    %c0_18 = arith.constant 0 : index
    %c1 = arith.constant 1 : index
    %c0_19 = arith.constant 0 : index
    %c0_20 = arith.constant 0 : index
    %24 = vector.load %arg4[%c0_18, %c1, %c0_19, %c0_20] : memref<1x3x512x512xbf16, #tpu.memory_space<vmem>>, vector<1x1x512x512xbf16>
    %25 = vector.shape_cast %24 : vector<1x1x512x512xbf16> to vector<512x512xbf16>
    %cst_21 = arith.constant dense<0.000000e+00> : vector<8x512xf32>
    %26 = tpu.matmul %23, %25, %cst_21 {dimension_numbers = #tpu.dot_dimension_numbers<[1], [0], [0], [1], [0, 0, 1, 1], [], []>} : vector<8x512xbf16>, vector<512x512xbf16>, vector<8x512xf32> -> vector<8x512xf32>
    %c0_22 = arith.constant 0 : index
    %c1_23 = arith.constant 1 : index
    %c0_24 = arith.constant 0 : index
    %c0_25 = arith.constant 0 : index
    %27 = vector.load %arg5[%c0_22, %c1_23, %c0_24, %c0_25] : memref<1x3x1x512xbf16, #tpu.memory_space<vmem>>, vector<1x1x1x512xbf16>
    %28 = vector.shape_cast %27 : vector<1x1x1x512xbf16> to vector<1x512xbf16>
    %29 = arith.extf %28 : vector<1x512xbf16> to vector<1x512xf32>
    %30 = vector.broadcast %29 : vector<1x512xf32> to vector<8x512xf32>
    %31 = arith.addf %26, %30 : vector<8x512xf32>
    %cst_26 = arith.constant 0.000000e+00 : f32
    %32 = vector.broadcast %cst_26 : f32 to vector<8x512xf32>
    %33 = arith.maximumf %31, %32 : vector<8x512xf32>
    %34 = arith.truncf %33 : vector<8x512xf32> to vector<8x512xbf16>
    %c0_27 = arith.constant 0 : index
    %c2 = arith.constant 2 : index
    %c0_28 = arith.constant 0 : index
    %c0_29 = arith.constant 0 : index
    %35 = vector.load %arg4[%c0_27, %c2, %c0_28, %c0_29] : memref<1x3x512x512xbf16, #tpu.memory_space<vmem>>, vector<1x1x512x512xbf16>
    %36 = vector.shape_cast %35 : vector<1x1x512x512xbf16> to vector<512x512xbf16>
    %cst_30 = arith.constant dense<0.000000e+00> : vector<8x512xf32>
    %37 = tpu.matmul %34, %36, %cst_30 {dimension_numbers = #tpu.dot_dimension_numbers<[1], [0], [0], [1], [0, 0, 1, 1], [], []>} : vector<8x512xbf16>, vector<512x512xbf16>, vector<8x512xf32> -> vector<8x512xf32>
    %c0_31 = arith.constant 0 : index
    %c2_32 = arith.constant 2 : index
    %c0_33 = arith.constant 0 : index
    %c0_34 = arith.constant 0 : index
    %38 = vector.load %arg5[%c0_31, %c2_32, %c0_33, %c0_34] : memref<1x3x1x512xbf16, #tpu.memory_space<vmem>>, vector<1x1x1x512xbf16>
    %39 = vector.shape_cast %38 : vector<1x1x1x512xbf16> to vector<1x512xbf16>
    %40 = arith.extf %39 : vector<1x512xbf16> to vector<1x512xf32>
    %41 = vector.broadcast %40 : vector<1x512xf32> to vector<8x512xf32>
    %42 = arith.addf %37, %41 : vector<8x512xf32>
    %cst_35 = arith.constant 0.000000e+00 : f32
    %43 = vector.broadcast %cst_35 : f32 to vector<8x512xf32>
    %44 = arith.maximumf %42, %43 : vector<8x512xf32>
    %45 = arith.truncf %44 : vector<8x512xf32> to vector<8x512xbf16>
    %c0_36 = arith.constant 0 : index
    %c0_37 = arith.constant 0 : index
    %c0_38 = arith.constant 0 : index
    %46 = vector.load %arg6[%c0_36, %c0_37, %c0_38] : memref<1x512x8xbf16, #tpu.memory_space<vmem>>, vector<1x512x8xbf16>
    %47 = vector.shape_cast %46 : vector<1x512x8xbf16> to vector<512x8xbf16>
    %cst_39 = arith.constant dense<0.000000e+00> : vector<8x8xf32>
    %48 = tpu.matmul %45, %47, %cst_39 {dimension_numbers = #tpu.dot_dimension_numbers<[1], [0], [0], [1], [0, 0, 1, 1], [], []>} : vector<8x512xbf16>, vector<512x8xbf16>, vector<8x8xf32> -> vector<8x8xf32>
    %c0_40 = arith.constant 0 : index
    %c0_41 = arith.constant 0 : index
    %c0_42 = arith.constant 0 : index
    %49 = vector.load %arg7[%c0_40, %c0_41, %c0_42] : memref<1x1x8xbf16, #tpu.memory_space<vmem>>, vector<1x1x8xbf16>
    %50 = vector.shape_cast %49 : vector<1x1x8xbf16> to vector<1x8xbf16>
    %51 = arith.extf %50 : vector<1x8xbf16> to vector<1x8xf32>
    %52 = vector.broadcast %51 : vector<1x8xf32> to vector<8x8xf32>
    %53 = arith.addf %48, %52 : vector<8x8xf32>
    %c1_i32 = arith.constant 1 : i32
    %54 = arith.cmpi eq, %arg0, %c1_i32 : i32
    %cst_43 = arith.constant -2.000000e+01 : f32
    %cst_44 = arith.constant 2.000000e+00 : f32
    %55 = vector.broadcast %cst_43 : f32 to vector<8x8xf32>
    %56 = arith.maximumf %55, %53 : vector<8x8xf32>
    %57 = vector.broadcast %cst_44 : f32 to vector<8x8xf32>
    %58 = arith.minimumf %57, %56 : vector<8x8xf32>
    %59 = arith.select %54, %58, %53 : vector<8x8xf32>
    %c0_45 = arith.constant 0 : index
    %c0_46 = arith.constant 0 : index
    %c0_47 = arith.constant 0 : index
    %60 = vector.load %arg8[%c0_45, %c0_46, %c0_47] : memref<1x8x8xf32, #tpu.memory_space<vmem>>, vector<1x8x8xf32>
    %61 = vector.shape_cast %60 : vector<1x8x8xf32> to vector<8x8xf32>
    %62 = vector.shape_cast %59 : vector<8x8xf32> to vector<1x8x8xf32>
    tpu.vector_store %arg8[%c0_45, %c0_46, %c0_47], %62 {strides = array<i32>} : memref<1x8x8xf32, #tpu.memory_space<vmem>>, vector<1x8x8xf32>,
    return
  }
  func.func @transform_0(%arg0: i32) -> (i32, i32) {
    %c0_i32 = arith.constant 0 : i32
    %c0_i32_0 = arith.constant 0 : i32
    %c0_i32_1 = arith.constant 0 : i32
    return %c0_i32, %c0_i32_0 : i32, i32
  }
  func.func @transform_1(%arg0: i32) -> (i32, i32, i32) {
    %c0_i32 = arith.constant 0 : i32
    %c0_i32_0 = arith.constant 0 : i32
    %c0_i32_1 = arith.constant 0 : i32
    return %arg0, %c0_i32, %c0_i32_0 : i32, i32, i32
  }
  func.func @transform_2(%arg0: i32) -> (i32, i32, i32) {
    %c0_i32 = arith.constant 0 : i32
    %c0_i32_0 = arith.constant 0 : i32
    %c0_i32_1 = arith.constant 0 : i32
    return %arg0, %c0_i32, %c0_i32_0 : i32, i32, i32
  }
  func.func @transform_3(%arg0: i32) -> (i32, i32, i32, i32) {
    %c0_i32 = arith.constant 0 : i32
    %c0_i32_0 = arith.constant 0 : i32
    %c0_i32_1 = arith.constant 0 : i32
    %c0_i32_2 = arith.constant 0 : i32
    return %arg0, %c0_i32, %c0_i32_0, %c0_i32_1 : i32, i32, i32, i32
  }
  func.func @transform_4(%arg0: i32) -> (i32, i32, i32, i32) {
    %c0_i32 = arith.constant 0 : i32
    %c0_i32_0 = arith.constant 0 : i32
    %c0_i32_1 = arith.constant 0 : i32
    %c0_i32_2 = arith.constant 0 : i32
    return %arg0, %c0_i32, %c0_i32_0, %c0_i32_1 : i32, i32, i32, i32
  }
  func.func @transform_5(%arg0: i32) -> (i32, i32, i32) {
    %c0_i32 = arith.constant 0 : i32
    %c0_i32_0 = arith.constant 0 : i32
    %c0_i32_1 = arith.constant 0 : i32
    return %arg0, %c0_i32, %c0_i32_0 : i32, i32, i32
  }
  func.func @transform_6(%arg0: i32) -> (i32, i32, i32) {
    %c0_i32 = arith.constant 0 : i32
    %c0_i32_0 = arith.constant 0 : i32
    %c0_i32_1 = arith.constant 0 : i32
    return %arg0, %c0_i32, %c0_i32_0 : i32, i32, i32
  }
  func.func @transform_7(%arg0: i32) -> (i32, i32, i32) {
    %c0_i32 = arith.constant 0 : i32
    %c0_i32_0 = arith.constant 0 : i32
    %c0_i32_1 = arith.constant 0 : i32
    return %arg0, %c0_i32, %c0_i32_0 : i32, i32, i32
  }
}

</mosaic_0001>

<llo_original>
// kernel: tpu_custom_call.1
$region0: #{tpu_custom_call.1}
  #allocation0 [shape = 'u32[]', space=smem, size = 0x4, offset = 0x4, fixed_abs, tag = 'smem constant byte address 0x4 - core index']
  #allocation1 [shape = 'u32[144,128]{1,0:T(1,128)}', space=vmem, size = 0x12000, scoped, tag = 'internal scratch']
  %s0 = inlined_call_operand.hbm [shape: f32[8,32], index: 0, kind: input, shape index: {}]
  %s1 = inlined_call_operand.hbm [shape: bf16[2,32,512], index: 1, kind: input, shape index: {}]
  %s2 = inlined_call_operand.vmem [shape: bf16[2,1,512], index: 2, kind: input, shape index: {}]
  %s3 = inlined_call_operand.hbm [shape: bf16[2,3,512,512], index: 3, kind: input, shape index: {}]
  %s4 = inlined_call_operand.vmem [shape: bf16[2,3,1,512], index: 4, kind: input, shape index: {}]
  %s5 = inlined_call_operand.vmem [shape: bf16[2,512,8], index: 5, kind: input, shape index: {}]
  %s6 = inlined_call_operand.vmem [shape: bf16[2,1,8], index: 6, kind: input, shape index: {}]
  %s7 = inlined_call_operand.hbm [shape: f32[2,8,8], index: 7, kind: output, shape index: {}]
  %s8 = sld [smem:[#allocation0]]
  $region73: #{tpu_custom_call.1} parent=0
    _
  %s10 = ssub.s32 1, %s8
  %s11 = scalar_select 0, %s10, %s8
  $region1: #{tpu_custom_call.1} parent=0
    #allocation2 [shape = 'u8[4096]{0}', space=vmem, size = 0x1000, scoped, tag = 'input window, operand 0, single buffered']
    #allocation3 [shape = 's32[2]{0}', space=sflag, size = 0x8, scoped, tag = 'scoped memory for tpu_custom_call.1']
    #allocation4 [shape = 's32[2]{0}', space=sflag, size = 0x8, scoped, tag = 'scoped memory for tpu_custom_call.1']
    #allocation5 [shape = 'u8[65536]{0}', space=vmem, size = 0x10000, scoped, tag = 'input window, operand 1']
    #allocation6 [shape = 's32[2]{0}', space=sflag, size = 0x8, scoped, tag = 'scoped memory for tpu_custom_call.1']
    #allocation7 [shape = 'u8[3145728]{0}', space=vmem, size = 0x300000, scoped, tag = 'input window, operand 3']
    #allocation8 [shape = 'u8[8192]{0}', space=vmem, size = 0x2000, scoped, tag = 'output window, operand 0']
    %12 = vsyncpa [#allocation3], 0
    %13 = vsyncpa [#allocation6], 0
    %s14 = scalar_lea.sflag [#allocation6], 1
    %15 = vsyncpa %s14, 0
    %16 = vsyncpa [#allocation4], 0
    %s17 = scalar_lea.sflag [#allocation4], 1
    %18 = vsyncpa %s17, 0
    loop: start=0, step=1, limit=4
    $region2: #{tpu_custom_call.1} parent=1 // loop_pre_header
      _
    $region3: #{tpu_custom_call.1} parent=1 // loop_header
      %s20 = sphi 0, %s24
      %p21 = scmp.ge.s32.totalorder %s20, 4
      %s28 = sphi 0, %s28
      %s30 = sphi 0, %s28
      %s31 = sphi 0, %s30
      %s45 = sphi 0, %s31
      %s51 = sphi 0, %s53
      %s54 = sphi 0, %s51
      %s55 = sphi 0, %s54
      %s71 = sphi 0, %s55
      %s77 = sphi 0, %s79
      %s80 = sphi 0, %s77
      %s81 = sphi 0, %s80
      %s97 = sphi 0, %s81
      %s103 = sphi 0, %s105
      %s106 = sphi 0, %s103
      %s107 = sphi 0, %s106
      %s123 = sphi 0, %s107
      %s129 = sphi 0, %s131
      %s132 = sphi 0, %s129
      %s133 = sphi 0, %s132
      %s149 = sphi 0, %s133
      %s155 = sphi 0, %s157
      %s158 = sphi 0, %s155
      %s159 = sphi 0, %s158
      %s175 = sphi 0, %s159
      %s181 = sphi 0, %s183
      %s184 = sphi 0, %s181
      %s185 = sphi 0, %s184
      %s201 = sphi 0, %s185
      %s207 = sphi 0, %s209
      %s210 = sphi 0, %s207
      %s211 = sphi 0, %s210
      %s227 = sphi 0, %s211
    $region4: #{tpu_custom_call.1} parent=1 // loop_header_branch
      %23 = sbr.rel (%p21) target = $region8
    $region5: #{tpu_custom_call.1} parent=1 // loop_body
      %s25 = ssub.s32 %s20, 1
      %s26 = ssub.s32 %s20, 2
      %s27 = sadd.s32 %s20, 1
      %s29 = sadd.s32 %s28, 1
      %p32 = scmp.eq.s32.totalorder %s20, 1
      %p33 = scmp.ne.s32.totalorder %s28, %s30
      %p34 = scmp.eq.s32.totalorder %s20, 0
      %p35 = por %p33, %p34
      %p36 = scmp.ne.s32.totalorder %s28, %s30
      %p37 = scmp.eq.s32.totalorder %s25, 1
      %p38 = por %p36, %p37
      %p39 = scmp.ne.s32.totalorder %s30, %s31
      %p40 = scmp.eq.s32.totalorder %s25, 0
      %p41 = por %p39, %p40
      %p42 = scmp.ne.s32.totalorder %s30, %s31
      %p43 = scmp.eq.s32.totalorder %s26, 1
      %p44 = por %p42, %p43
      %p46 = scmp.ne.s32.totalorder %s31, %s45
      %p47 = scmp.eq.s32.totalorder %s26, 0
      %p48 = por %p46, %p47
      %s49 = ssub.s32 %s20, %s27
      %p50 = scmp.eq.s32.totalorder %s49, 0
      %s52 = sadd.s32 %s51, 1
      %s53 = scalar_select %p50, %s51, %s52
      %p56 = pneg %p50
      %p57 = scmp.eq.s32.totalorder %s20, 1
      %p58 = por %p56, %p57
      %p59 = scmp.ne.s32.totalorder %s51, %s54
      %p60 = scmp.eq.s32.totalorder %s20, 0
      %p61 = por %p59, %p60
      %p62 = scmp.ne.s32.totalorder %s51, %s54
      %p63 = scmp.eq.s32.totalorder %s25, 1
      %p64 = por %p62, %p63
      %p65 = scmp.ne.s32.totalorder %s54, %s55
      %p66 = scmp.eq.s32.totalorder %s25, 0
      %p67 = por %p65, %p66
      %p68 = scmp.ne.s32.totalorder %s54, %s55
      %p69 = scmp.eq.s32.totalorder %s26, 1
      %p70 = por %p68, %p69
      %p72 = scmp.ne.s32.totalorder %s55, %s71
      %p73 = scmp.eq.s32.totalorder %s26, 0
      %p74 = por %p72, %p73
      %s75 = ssub.s32 %s20, %s27
      %p76 = scmp.eq.s32.totalorder %s75, 0
      %s78 = sadd.s32 %s77, 1
      %s79 = scalar_select %p76, %s77, %s78
      %p82 = pneg %p76
      %p83 = scmp.eq.s32.totalorder %s20, 1
      %p84 = por %p82, %p83
      %p85 = scmp.ne.s32.totalorder %s77, %s80
      %p86 = scmp.eq.s32.totalorder %s20, 0
      %p87 = por %p85, %p86
      %p88 = scmp.ne.s32.totalorder %s77, %s80
      %p89 = scmp.eq.s32.totalorder %s25, 1
      %p90 = por %p88, %p89
      %p91 = scmp.ne.s32.totalorder %s80, %s81
      %p92 = scmp.eq.s32.totalorder %s25, 0
      %p93 = por %p91, %p92
      %p94 = scmp.ne.s32.totalorder %s80, %s81
      %p95 = scmp.eq.s32.totalorder %s26, 1
      %p96 = por %p94, %p95
      %p98 = scmp.ne.s32.totalorder %s81, %s97
      %p99 = scmp.eq.s32.totalorder %s26, 0
      %p100 = por %p98, %p99
      %s101 = ssub.s32 %s20, %s27
      %p102 = scmp.eq.s32.totalorder %s101, 0
      %s104 = sadd.s32 %s103, 1
      %s105 = scalar_select %p102, %s103, %s104
      %p108 = pneg %p102
      %p109 = scmp.eq.s32.totalorder %s20, 1
      %p110 = por %p108, %p109
      %p111 = scmp.ne.s32.totalorder %s103, %s106
      %p112 = scmp.eq.s32.totalorder %s20, 0
      %p113 = por %p111, %p112
      %p114 = scmp.ne.s32.totalorder %s103, %s106
      %p115 = scmp.eq.s32.totalorder %s25, 1
      %p116 = por %p114, %p115
      %p117 = scmp.ne.s32.totalorder %s106, %s107
      %p118 = scmp.eq.s32.totalorder %s25, 0
      %p119 = por %p117, %p118
      %p120 = scmp.ne.s32.totalorder %s106, %s107
      %p121 = scmp.eq.s32.totalorder %s26, 1
      %p122 = por %p120, %p121
      %p124 = scmp.ne.s32.totalorder %s107, %s123
      %p125 = scmp.eq.s32.totalorder %s26, 0
      %p126 = por %p124, %p125
      %s127 = ssub.s32 %s20, %s27
      %p128 = scmp.eq.s32.totalorder %s127, 0
      %s130 = sadd.s32 %s129, 1
      %s131 = scalar_select %p128, %s129, %s130
      %p134 = pneg %p128
      %p135 = scmp.eq.s32.totalorder %s20, 1
      %p136 = por %p134, %p135
      %p137 = scmp.ne.s32.totalorder %s129, %s132
      %p138 = scmp.eq.s32.totalorder %s20, 0
      %p139 = por %p137, %p138
      %p140 = scmp.ne.s32.totalorder %s129, %s132
      %p141 = scmp.eq.s32.totalorder %s25, 1
      %p142 = por %p140, %p141
      %p143 = scmp.ne.s32.totalorder %s132, %s133
      %p144 = scmp.eq.s32.totalorder %s25, 0
      %p145 = por %p143, %p144
      %p146 = scmp.ne.s32.totalorder %s132, %s133
      %p147 = scmp.eq.s32.totalorder %s26, 1
      %p148 = por %p146, %p147
      %p150 = scmp.ne.s32.totalorder %s133, %s149
      %p151 = scmp.eq.s32.totalorder %s26, 0
      %p152 = por %p150, %p151
      %s153 = ssub.s32 %s20, %s27
      %p154 = scmp.eq.s32.totalorder %s153, 0
      %s156 = sadd.s32 %s155, 1
      %s157 = scalar_select %p154, %s155, %s156
      %p160 = pneg %p154
      %p161 = scmp.eq.s32.totalorder %s20, 1
      %p162 = por %p160, %p161
      %p163 = scmp.ne.s32.totalorder %s155, %s158
      %p164 = scmp.eq.s32.totalorder %s20, 0
      %p165 = por %p163, %p164
      %p166 = scmp.ne.s32.totalorder %s155, %s158
      %p167 = scmp.eq.s32.totalorder %s25, 1
      %p168 = por %p166, %p167
      %p169 = scmp.ne.s32.totalorder %s158, %s159
      %p170 = scmp.eq.s32.totalorder %s25, 0
      %p171 = por %p169, %p170
      %p172 = scmp.ne.s32.totalorder %s158, %s159
      %p173 = scmp.eq.s32.totalorder %s26, 1
      %p174 = por %p172, %p173
      %p176 = scmp.ne.s32.totalorder %s159, %s175
      %p177 = scmp.eq.s32.totalorder %s26, 0
      %p178 = por %p176, %p177
      %s179 = ssub.s32 %s20, %s27
      %p180 = scmp.eq.s32.totalorder %s179, 0
      %s182 = sadd.s32 %s181, 1
      %s183 = scalar_select %p180, %s181, %s182
      %p186 = pneg %p180
      %p187 = scmp.eq.s32.totalorder %s20, 1
      %p188 = por %p186, %p187
      %p189 = scmp.ne.s32.totalorder %s181, %s184
      %p190 = scmp.eq.s32.totalorder %s20, 0
      %p191 = por %p189, %p190
      %p192 = scmp.ne.s32.totalorder %s181, %s184
      %p193 = scmp.eq.s32.totalorder %s25, 1
      %p194 = por %p192, %p193
      %p195 = scmp.ne.s32.totalorder %s184, %s185
      %p196 = scmp.eq.s32.totalorder %s25, 0
      %p197 = por %p195, %p196
      %p198 = scmp.ne.s32.totalorder %s184, %s185
      %p199 = scmp.eq.s32.totalorder %s26, 1
      %p200 = por %p198, %p199
      %p202 = scmp.ne.s32.totalorder %s185, %s201
      %p203 = scmp.eq.s32.totalorder %s26, 0
      %p204 = por %p202, %p203
      %s205 = ssub.s32 %s20, %s27
      %p206 = scmp.eq.s32.totalorder %s205, 0
      %s208 = sadd.s32 %s207, 1
      %s209 = scalar_select %p206, %s207, %s208
      %p212 = pneg %p206
      %p213 = scmp.eq.s32.totalorder %s20, 1
      %p214 = por %p212, %p213
      %p215 = scmp.ne.s32.totalorder %s207, %s210
      %p216 = scmp.eq.s32.totalorder %s20, 0
      %p217 = por %p215, %p216
      %p218 = scmp.ne.s32.totalorder %s207, %s210
      %p219 = scmp.eq.s32.totalorder %s25, 1
      %p220 = por %p218, %p219
      %p221 = scmp.ne.s32.totalorder %s210, %s211
      %p222 = scmp.eq.s32.totalorder %s25, 0
      %p223 = por %p221, %p222
      %p224 = scmp.ne.s32.totalorder %s210, %s211
      %p225 = scmp.eq.s32.totalorder %s26, 1
      %p226 = por %p224, %p225
      %p228 = scmp.ne.s32.totalorder %s211, %s227
      %p229 = scmp.eq.s32.totalorder %s26, 0
      %p230 = por %p228, %p229
      %p231 = scmp.le.s32.totalorder 1, %s20
      %p232 = scmp.lt.s32.totalorder %s20, 3
      %p233 = pnand %p231, %p232
      %p234 = pneg %p233
      // Predicated region
      $region9: #{tpu_custom_call.1} parent=5 // pred_check
        _
      $region10: #{tpu_custom_call.1} parent=5 // pred_check_branch
        %236 = sbr.rel (%p233) target = $region12
      $region11: #{tpu_custom_call.1} parent=5 // pred_region
        %s237 = ssub.s32 %s20, 1
        // Predicated region
        $region13: #{tpu_custom_call.1} parent=11 // pred_check
          %p238 = pneg %p41
        $region14: #{tpu_custom_call.1} parent=11 // pred_check_branch
          %240 = sbr.rel (%p238) target = $region16
        $region15: #{tpu_custom_call.1} parent=11 // pred_region
          %s242 = ssub.s32 128, 128
          %243 = vsyncadd [#allocation3], %s242
          %s245 = sshll.u32 [#allocation2], 4
          %s246 = int_to_ptr.vmem [resolvable:$true] %s245
          %248 = dma.hbm_to_vmem [thread:$0]  %s0, 128, %s246, [#allocation3]
        $region16: #{tpu_custom_call.1} parent=11 // pred_fallthru
          _
      $region12: #{tpu_custom_call.1} parent=5 // pred_fallthru
        _
      %p249 = scmp.lt.s32.totalorder %s20, 2
      // Predicated region
      $region17: #{tpu_custom_call.1} parent=5 // pred_check
        %p250 = pneg %p249
      $region18: #{tpu_custom_call.1} parent=5 // pred_check_branch
        %252 = sbr.rel (%p250) target = $region20
      $region19: #{tpu_custom_call.1} parent=5 // pred_region
        // Predicated region
        $region21: #{tpu_custom_call.1} parent=19 // pred_check
          %p253 = pneg %p61
        $region22: #{tpu_custom_call.1} parent=19 // pred_check_branch
          %255 = sbr.rel (%p253) target = $region24
        $region23: #{tpu_custom_call.1} parent=19 // pred_region
          %s256 = sand.u32 %s20, 1
          %s257 = scalar_lea.sflag [#allocation6], %s256
          %s258 = sand.u32 %s51, 1
          %s259 = smul.addr %s258, 64
          %s260 = scalar_lea.vmem [#allocation5], %s259
          %s262 = ssub.s32 1024, 1024
          %263 = vsyncadd %s257, %s262
          %s264 = smul.addr %s20, 16
          %s265 = smul.addr %s264, 64
          %s266 = scalar_lea.hbm %s1, %s265
          %s267 = sshll.u32 %s260, 4
          %s268 = int_to_ptr.vmem [resolvable:$true] %s267
          %273 = dma.hbm_to_vmem [thread:$0]  %s266, 1024, %s268, %s257, 256, 256, 16
        $region24: #{tpu_custom_call.1} parent=19 // pred_fallthru
          _
        // Predicated region
        $region25: #{tpu_custom_call.1} parent=19 // pred_check
          %p274 = pneg %p87
        $region26: #{tpu_custom_call.1} parent=19 // pred_check_branch
          %276 = sbr.rel (%p274) target = $region28
        $region27: #{tpu_custom_call.1} parent=19 // pred_region
          %p277 = scmp.lt.s32.totalorder %s20, 1
          %s278 = scalar_select %p277, %s20, 1
          %s279 = smul.addr %s278, 4
          %s280 = scalar_lea.vmem %s2, %s279
        $region28: #{tpu_custom_call.1} parent=19 // pred_fallthru
          _
        // Predicated region
        $region29: #{tpu_custom_call.1} parent=19 // pred_check
          %p281 = pneg %p113
        $region30: #{tpu_custom_call.1} parent=19 // pred_check_branch
          %283 = sbr.rel (%p281) target = $region32
        $region31: #{tpu_custom_call.1} parent=19 // pred_region
          %s284 = sand.u32 %s20, 1
          %s285 = scalar_lea.sflag [#allocation6], %s284
          %s286 = sand.u32 %s103, 1
          %s287 = smul.addr %s286, 3072
          %s288 = scalar_lea.vmem [#allocation7], %s287
          %s290 = ssub.s32 49152, 49152
          %291 = vsyncadd %s285, %s290
          %s292 = smul.addr %s20, 768
          %s293 = smul.addr %s292, 64
          %s294 = scalar_lea.hbm %s3, %s293
          %s295 = sshll.u32 %s288, 4
          %s296 = int_to_ptr.vmem [resolvable:$true] %s295
          %301 = dma.hbm_to_vmem [thread:$0]  %s294, 49152, %s296, %s285, 256, 256, 16
        $region32: #{tpu_custom_call.1} parent=19 // pred_fallthru
          _
        // Predicated region
        $region33: #{tpu_custom_call.1} parent=19 // pred_check
          %p302 = pneg %p139
        $region34: #{tpu_custom_call.1} parent=19 // pred_check_branch
          %304 = sbr.rel (%p302) target = $region36
        $region35: #{tpu_custom_call.1} parent=19 // pred_region
          %p305 = scmp.lt.s32.totalorder %s20, 1
          %s306 = scalar_select %p305, %s20, 1
          %s307 = smul.addr %s306, 12
          %s308 = scalar_lea.vmem %s4, %s307
        $region36: #{tpu_custom_call.1} parent=19 // pred_fallthru
          _
        // Predicated region
        $region37: #{tpu_custom_call.1} parent=19 // pred_check
          %p309 = pneg %p165
        $region38: #{tpu_custom_call.1} parent=19 // pred_check_branch
          %311 = sbr.rel (%p309) target = $region40
        $region39: #{tpu_custom_call.1} parent=19 // pred_region
          %p312 = scmp.lt.s32.totalorder %s20, 1
          %s313 = scalar_select %p312, %s20, 1
          %s314 = smul.addr %s313, 64
          %s315 = smul.addr %s314, 4
          %s316 = scalar_lea.vmem %s5, %s315
        $region40: #{tpu_custom_call.1} parent=19 // pred_fallthru
          _
        // Predicated region
        $region41: #{tpu_custom_call.1} parent=19 // pred_check
          %p317 = pneg %p191
        $region42: #{tpu_custom_call.1} parent=19 // pred_check_branch
          %319 = sbr.rel (%p317) target = $region44
        $region43: #{tpu_custom_call.1} parent=19 // pred_region
          %p320 = scmp.lt.s32.totalorder %s20, 1
          %s321 = scalar_select %p320, %s20, 1
          %s322 = scalar_lea.vmem %s6, %s321
        $region44: #{tpu_custom_call.1} parent=19 // pred_fallthru
          _
      $region20: #{tpu_custom_call.1} parent=5 // pred_fallthru
        _
      %p323 = scmp.le.s32.totalorder 1, %s20
      %p324 = scmp.lt.s32.totalorder %s20, 3
      %p325 = pnand %p323, %p324
      %p326 = pneg %p325
      // Predicated region
      $region45: #{tpu_custom_call.1} parent=5 // pred_check
        _
      $region46: #{tpu_custom_call.1} parent=5 // pred_check_branch
        %328 = sbr.rel (%p325) target = $region48
      $region47: #{tpu_custom_call.1} parent=5 // pred_region
        %s329 = ssub.s32 %s20, 1
        // Predicated region
        $region49: #{tpu_custom_call.1} parent=47 // pred_check
          %p330 = pneg %p41
        $region50: #{tpu_custom_call.1} parent=47 // pred_check_branch
          %332 = sbr.rel (%p330) target = $region52
        $region51: #{tpu_custom_call.1} parent=47 // pred_region
          %333 = dma.done [#allocation3], 128
        $region52: #{tpu_custom_call.1} parent=47 // pred_fallthru
          _
        %s334 = sand.u32 %s25, 1
        %s335 = scalar_lea.sflag [#allocation6], %s334
        %s336 = sand.u32 %s54, 1
        %s337 = smul.addr %s336, 64
        %s338 = scalar_lea.vmem [#allocation5], %s337
        // Predicated region
        $region53: #{tpu_custom_call.1} parent=47 // pred_check
          %p339 = pneg %p67
        $region54: #{tpu_custom_call.1} parent=47 // pred_check_branch
          %341 = sbr.rel (%p339) target = $region56
        $region55: #{tpu_custom_call.1} parent=47 // pred_region
          %342 = dma.done %s335, 1024
        $region56: #{tpu_custom_call.1} parent=47 // pred_fallthru
          _
        %s343 = sand.u32 %s25, 1
        %s344 = scalar_lea.sflag [#allocation6], %s343
        %s345 = sand.u32 %s106, 1
        %s346 = smul.addr %s345, 3072
        %s347 = scalar_lea.vmem [#allocation7], %s346
        // Predicated region
        $region57: #{tpu_custom_call.1} parent=47 // pred_check
          %p348 = pneg %p119
        $region58: #{tpu_custom_call.1} parent=47 // pred_check_branch
          %350 = sbr.rel (%p348) target = $region60
        $region59: #{tpu_custom_call.1} parent=47 // pred_region
          %351 = dma.done %s344, 49152
        $region60: #{tpu_custom_call.1} parent=47 // pred_fallthru
          _
        %p352 = pneg %p41
        %p353 = pneg %p38
        %s354 = sand.u32 %s25, 1
        %s355 = scalar_lea.sflag [#allocation6], %s354
        %s356 = sand.u32 %s54, 1
        %s357 = smul.addr %s356, 64
        %s358 = scalar_lea.vmem [#allocation5], %s357
        %p359 = pneg %p67
        %p360 = pneg %p64
        %p361 = scmp.lt.s32.totalorder %s25, 1
        %s362 = scalar_select %p361, %s25, 1
        %s363 = smul.addr %s362, 4
        %s364 = scalar_lea.vmem %s2, %s363
        %p365 = pneg %p93
        %p366 = pneg %p90
        %s367 = sand.u32 %s25, 1
        %s368 = scalar_lea.sflag [#allocation6], %s367
        %s369 = sand.u32 %s106, 1
        %s370 = smul.addr %s369, 3072
        %s371 = scalar_lea.vmem [#allocation7], %s370
        %p372 = pneg %p119
        %p373 = pneg %p116
        %p374 = scmp.lt.s32.totalorder %s25, 1
        %s375 = scalar_select %p374, %s25, 1
        %s376 = smul.addr %s375, 12
        %s377 = scalar_lea.vmem %s4, %s376
        %p378 = pneg %p145
        %p379 = pneg %p142
        %p380 = scmp.lt.s32.totalorder %s25, 1
        %s381 = scalar_select %p380, %s25, 1
        %s382 = smul.addr %s381, 64
        %s383 = smul.addr %s382, 4
        %s384 = scalar_lea.vmem %s5, %s383
        %p385 = pneg %p171
        %p386 = pneg %p168
        %p387 = scmp.lt.s32.totalorder %s25, 1
        %s388 = scalar_select %p387, %s25, 1
        %s389 = scalar_lea.vmem %s6, %s388
        %p390 = pneg %p197
        %p391 = pneg %p194
        %p392 = pneg %p223
        %p393 = pneg %p220
        %s394 = sand.u32 %s210, 1
        %s395 = scalar_lea.sflag [#allocation4], %s394
        %s396 = sand.u32 %s210, 1
        %s397 = smul.addr %s396, 8
        %s398 = scalar_lea.vmem [#allocation8], %s397
        %p399 = scmp.lt.s32.totalorder %s25, 1
        %s400 = scalar_select %p399, %s25, 1
        %s401 = smul.addr %s400, 4
        %s402 = scalar_lea.vmem %s2, %s401
        %p403 = scmp.lt.s32.totalorder %s25, 1
        %s404 = scalar_select %p403, %s25, 1
        %s405 = smul.addr %s404, 12
        %s406 = scalar_lea.vmem %s4, %s405
        %p407 = scmp.lt.s32.totalorder %s25, 1
        %s408 = scalar_select %p407, %s25, 1
        %s409 = smul.addr %s408, 64
        %s410 = smul.addr %s409, 4
        %s411 = scalar_lea.vmem %s5, %s410
        %p412 = scmp.lt.s32.totalorder %s25, 1
        %s413 = scalar_select %p412, %s25, 1
        %s414 = scalar_lea.vmem %s6, %s413
        %v416 = vld [vmem:[#allocation2] sm:$0xff]
        %v417 = vpack.c.bf16 %v416, %v416
        %v418 = vld [vmem:[%s338] sm:$0xff]
        %v419 = vld [vmem:[%s338 + $0x8] sm:$0xff]
        %v420 = vld [vmem:[%s338 + $0x10] sm:$0xff]
        %v421 = vld [vmem:[%s338 + $0x18] sm:$0xff]
        %v422 = vld [vmem:[%s338 + $0x20] sm:$0xff]
        %v423 = vld [vmem:[%s338 + $0x28] sm:$0xff]
        %v424 = vld [vmem:[%s338 + $0x30] sm:$0xff]
        %v425 = vld [vmem:[%s338 + $0x38] sm:$0xff]
        %v426 = vld [vmem:[%s402] sm:$0xf]
        %v427 = vunpack.c.l.bf16 %v426
        %v429 = vlaneseq
        %v430 = vshrl.u32 %v429, 7
        %v431 = vsub.s32 0, %v430
        %v432 = vrot.slane %v427, %v431
        %v433 = vlaneseq
        %v434 = vshrl.u32 %v433, 7
        %v435 = vsub.s32 2, %v434
        %v436 = vrot.slane %v427, %v435
        %v437 = vlaneseq
        %v438 = vshrl.u32 %v437, 7
        %v439 = vsub.s32 4, %v438
        %v440 = vrot.slane %v427, %v439
        %v441 = vlaneseq
        %v442 = vshrl.u32 %v441, 7
        %v443 = vsub.s32 6, %v442
        %v444 = vrot.slane %v427, %v443
        %v449 = vlaneseq
        %v450 = vshrl.u32 %v449, 7
        %v451 = vsub.s32 0, %v450
        %v452 = vrot.slane %v432, %v451
        %v453 = vlaneseq
        %v454 = vshrl.u32 %v453, 7
        %v455 = vsub.s32 0, %v454
        %v456 = vrot.slane %v436, %v455
        %v457 = vlaneseq
        %v458 = vshrl.u32 %v457, 7
        %v459 = vsub.s32 0, %v458
        %v460 = vrot.slane %v440, %v459
        %v461 = vlaneseq
        %v462 = vshrl.u32 %v461, 7
        %v463 = vsub.s32 0, %v462
        %v464 = vrot.slane %v444, %v463
        %v473 = vunpack.c.l.b16 %v418
        %v474 = vunpack.c.h.b16 %v418
        %v475 = vunpack.c.l.b16 %v419
        %v476 = vunpack.c.h.b16 %v419
        %v477 = vunpack.c.l.b16 %v420
        %v478 = vunpack.c.h.b16 %v420
        %v479 = vunpack.c.l.b16 %v421
        %v480 = vunpack.c.h.b16 %v421
        %v481 = vunpack.c.l.b16 %v422
        %v482 = vunpack.c.h.b16 %v422
        %v483 = vunpack.c.l.b16 %v423
        %v484 = vunpack.c.h.b16 %v423
        %v485 = vunpack.c.l.b16 %v424
        %v486 = vunpack.c.h.b16 %v424
        %v487 = vunpack.c.l.b16 %v425
        %v488 = vunpack.c.h.b16 %v425
        %v489 = vpack.c.b16 %v477, %v473
        %v490 = vpack.c.b16 %v478, %v474
        %v491 = vpack.c.b16 %v479, %v475
        %v492 = vpack.c.b16 %v480, %v476
        %v493 = vpack.c.b16 %v485, %v481
        %v494 = vpack.c.b16 %v486, %v482
        %v495 = vpack.c.b16 %v487, %v483
        %v496 = vpack.c.b16 %v488, %v484
        %vm505 = vcmask 261120
        %v507 = vsel %vm505, %v417, 0
        %509 = vmatprep.subr.bf16.mxu0 %v490
        %510 = vmatpush1.bf16.msra.mxu0 %v489
        %511 = vmatprep.subr.bf16.mxu0 %v494
        %512 = vmatpush1.bf16.msra.mxu0 %v493
        %513 = vmatprep.subr.bf16.mxu0 0
        %514 = vmatpush1.bf16.msra.mxu0 0
        %515 = vmatprep.subr.bf16.mxu0 0
        %516 = vmatpush1.bf16.msra.mxu0 0
        %517 = vmatprep.subr.bf16.mxu0 0
        %518 = vmatpush1.bf16.msra.mxu0 0
        %519 = vmatprep.subr.bf16.mxu0 0
        %520 = vmatpush1.bf16.msra.mxu0 0
        %521 = vmatprep.subr.bf16.mxu0 0
        %522 = vmatpush1.bf16.msra.mxu0 0
        %523 = vmatprep.subr.bf16.mxu0 0
        %524 = vmatpush1.bf16.msra.mxu0 0
        %525 = vmatprep.subr.bf16.mxu0 0
        %526 = vmatpush1.bf16.msra.mxu0 0
        %527 = vmatprep.subr.bf16.mxu0 0
        %528 = vmatpush1.bf16.msra.mxu0 0
        %529 = vmatprep.subr.bf16.mxu0 0
        %530 = vmatpush1.bf16.msra.mxu0 0
        %531 = vmatprep.subr.bf16.mxu0 0
        %532 = vmatpush1.bf16.msra.mxu0 0
        %533 = vmatprep.subr.bf16.mxu0 0
        %534 = vmatpush1.bf16.msra.mxu0 0
        %535 = vmatprep.subr.bf16.mxu0 0
        %536 = vmatpush1.bf16.msra.mxu0 0
        %537 = vmatprep.subr.bf16.mxu0 0
        %538 = vmatpush1.bf16.msra.mxu0 0
        %539 = vmatprep.subr.bf16.mxu0 0
        %540 = vmatpush1.bf16.msra.mxu0 0
        %541 = vmatprep.mubr.bf16.mxu0 0
        %542 = vmatmul.mubr.bf16.gmra.mrb[0].mxu0 %v507
        %v543 = vpop.f32.mrb[0].mxu0
        %v544 = vadd.f32 %v452, %v543
        %v545 = vpop.f32.mrb[0].mxu0
        %v546 = vadd.f32 %v456, %v545
        %v547 = vpop.f32.mrb[0].mxu0
        %v548 = vpop.f32.mrb[0].mxu0
        %549 = vdwg.mxu0
        %550 = vmatprep.subr.bf16.mxu0 %v492
        %551 = vmatpush1.bf16.msra.mxu0 %v491
        %552 = vmatprep.subr.bf16.mxu0 %v496
        %553 = vmatpush1.bf16.msra.mxu0 %v495
        %554 = vmatprep.subr.bf16.mxu0 0
        %555 = vmatpush1.bf16.msra.mxu0 0
        %556 = vmatprep.subr.bf16.mxu0 0
        %557 = vmatpush1.bf16.msra.mxu0 0
        %558 = vmatprep.subr.bf16.mxu0 0
        %559 = vmatpush1.bf16.msra.mxu0 0
        %560 = vmatprep.subr.bf16.mxu0 0
        %561 = vmatpush1.bf16.msra.mxu0 0
        %562 = vmatprep.subr.bf16.mxu0 0
        %563 = vmatpush1.bf16.msra.mxu0 0
        %564 = vmatprep.subr.bf16.mxu0 0
        %565 = vmatpush1.bf16.msra.mxu0 0
        %566 = vmatprep.subr.bf16.mxu0 0
        %567 = vmatpush1.bf16.msra.mxu0 0
        %568 = vmatprep.subr.bf16.mxu0 0
        %569 = vmatpush1.bf16.msra.mxu0 0
        %570 = vmatprep.subr.bf16.mxu0 0
        %571 = vmatpush1.bf16.msra.mxu0 0
        %572 = vmatprep.subr.bf16.mxu0 0
        %573 = vmatpush1.bf16.msra.mxu0 0
        %574 = vmatprep.subr.bf16.mxu0 0
        %575 = vmatpush1.bf16.msra.mxu0 0
        %576 = vmatprep.subr.bf16.mxu0 0
        %577 = vmatpush1.bf16.msra.mxu0 0
        %578 = vmatprep.subr.bf16.mxu0 0
        %579 = vmatpush1.bf16.msra.mxu0 0
        %580 = vmatprep.subr.bf16.mxu0 0
        %581 = vmatpush1.bf16.msra.mxu0 0
        %582 = vmatprep.mubr.bf16.mxu0 0
        %583 = vmatmul.mubr.bf16.gmra.mrb[0].mxu0 %v507
        %v584 = vpop.f32.mrb[0].mxu0
        %v585 = vadd.f32 %v460, %v584
        %v586 = vpop.f32.mrb[0].mxu0
        %v587 = vadd.f32 %v464, %v586
        %v588 = vpop.f32.mrb[0].mxu0
        %v589 = vpop.f32.mrb[0].mxu0
        %590 = vdwg.mxu0
        %v591 = vmax.f32 %v544, 0.0
        %v592 = vmax.f32 %v546, 0.0
        %v593 = vmax.f32 %v585, 0.0
        %v594 = vmax.f32 %v587, 0.0
        %v595 = vpack.c.bf16 %v591, %v591
        %v596 = vpack.c.bf16 %v592, %v592
        %v597 = vpack.c.bf16 %v593, %v593
        %v598 = vpack.c.bf16 %v594, %v594
        %v599 = vld [vmem:[%s347] sm:$0xff]
        %v600 = vld [vmem:[%s347 + $0x8] sm:$0xff]
        %v601 = vld [vmem:[%s347 + $0x10] sm:$0xff]
        %v602 = vld [vmem:[%s347 + $0x18] sm:$0xff]
        %v603 = vld [vmem:[%s347 + $0x20] sm:$0xff]
        %v604 = vld [vmem:[%s347 + $0x28] sm:$0xff]
        %v605 = vld [vmem:[%s347 + $0x30] sm:$0xff]
        %v606 = vld [vmem:[%s347 + $0x38] sm:$0xff]
        %v607 = vld [vmem:[%s347 + $0x40] sm:$0xff]
        %v608 = vld [vmem:[%s347 + $0x48] sm:$0xff]
        %v609 = vld [vmem:[%s347 + $0x50] sm:$0xff]
        %v610 = vld [vmem:[%s347 + $0x58] sm:$0xff]
        %v611 = vld [vmem:[%s347 + $0x60] sm:$0xff]
        %v612 = vld [vmem:[%s347 + $0x68] sm:$0xff]
        %v613 = vld [vmem:[%s347 + $0x70] sm:$0xff]
        %v614 = vld [vmem:[%s347 + $0x78] sm:$0xff]
        %v615 = vld [vmem:[%s347 + $0x80] sm:$0xff]
        %v616 = vld [vmem:[%s347 + $0x88] sm:$0xff]
        %v617 = vld [vmem:[%s347 + $0x90] sm:$0xff]
        %v618 = vld [vmem:[%s347 + $0x98] sm:$0xff]
        %v619 = vld [vmem:[%s347 + $0xa0] sm:$0xff]
        %v620 = vld [vmem:[%s347 + $0xa8] sm:$0xff]
        %v621 = vld [vmem:[%s347 + $0xb0] sm:$0xff]
        %v622 = vld [vmem:[%s347 + $0xb8] sm:$0xff]
        %v623 = vld [vmem:[%s347 + $0xc0] sm:$0xff]
        %v624 = vld [vmem:[%s347 + $0xc8] sm:$0xff]
        %v625 = vld [vmem:[%s347 + $0xd0] sm:$0xff]
        %v626 = vld [vmem:[%s347 + $0xd8] sm:$0xff]
        %v627 = vld [vmem:[%s347 + $0xe0] sm:$0xff]
        %v628 = vld [vmem:[%s347 + $0xe8] sm:$0xff]
        %v629 = vld [vmem:[%s347 + $0xf0] sm:$0xff]
        %v630 = vld [vmem:[%s347 + $0xf8] sm:$0xff]
        %v631 = vld [vmem:[%s347 + $0x100] sm:$0xff]
        %v632 = vld [vmem:[%s347 + $0x108] sm:$0xff]
        %v633 = vld [vmem:[%s347 + $0x110] sm:$0xff]
        %v634 = vld [vmem:[%s347 + $0x118] sm:$0xff]
        %v635 = vld [vmem:[%s347 + $0x120] sm:$0xff]
        %v636 = vld [vmem:[%s347 + $0x128] sm:$0xff]
        %v637 = vld [vmem:[%s347 + $0x130] sm:$0xff]
        %v638 = vld [vmem:[%s347 + $0x138] sm:$0xff]
        %v639 = vld [vmem:[%s347 + $0x140] sm:$0xff]
        %v640 = vld [vmem:[%s347 + $0x148] sm:$0xff]
        %v641 = vld [vmem:[%s347 + $0x150] sm:$0xff]
        %v642 = vld [vmem:[%s347 + $0x158] sm:$0xff]
        %v643 = vld [vmem:[%s347 + $0x160] sm:$0xff]
        %v644 = vld [vmem:[%s347 + $0x168] sm:$0xff]
        %v645 = vld [vmem:[%s347 + $0x170] sm:$0xff]
        %v646 = vld [vmem:[%s347 + $0x178] sm:$0xff]
        %v647 = vld [vmem:[%s347 + $0x180] sm:$0xff]
        %v648 = vld [vmem:[%s347 + $0x188] sm:$0xff]
        %v649 = vld [vmem:[%s347 + $0x190] sm:$0xff]
        %v650 = vld [vmem:[%s347 + $0x198] sm:$0xff]
        %v651 = vld [vmem:[%s347 + $0x1a0] sm:$0xff]
        %v652 = vld [vmem:[%s347 + $0x1a8] sm:$0xff]
        %v653 = vld [vmem:[%s347 + $0x1b0] sm:$0xff]
        %v654 = vld [vmem:[%s347 + $0x1b8] sm:$0xff]
        %v655 = vld [vmem:[%s347 + $0x1c0] sm:$0xff]
        %v656 = vld [vmem:[%s347 + $0x1c8] sm:$0xff]
        %v657 = vld [vmem:[%s347 + $0x1d0] sm:$0xff]
        %v658 = vld [vmem:[%s347 + $0x1d8] sm:$0xff]
        %v659 = vld [vmem:[%s347 + $0x1e0] sm:$0xff]
        %v660 = vld [vmem:[%s347 + $0x1e8] sm:$0xff]
        %v661 = vld [vmem:[%s347 + $0x1f0] sm:$0xff]
        %v662 = vld [vmem:[%s347 + $0x1f8] sm:$0xff]
        %v663 = vld [vmem:[%s347 + $0x200] sm:$0xff]
        %v664 = vld [vmem:[%s347 + $0x208] sm:$0xff]
        %v665 = vld [vmem:[%s347 + $0x210] sm:$0xff]
        %v666 = vld [vmem:[%s347 + $0x218] sm:$0xff]
        %v667 = vld [vmem:[%s347 + $0x220] sm:$0xff]
        %v668 = vld [vmem:[%s347 + $0x228] sm:$0xff]
        %v669 = vld [vmem:[%s347 + $0x230] sm:$0xff]
        %v670 = vld [vmem:[%s347 + $0x238] sm:$0xff]
        %v671 = vld [vmem:[%s347 + $0x240] sm:$0xff]
        %v672 = vld [vmem:[%s347 + $0x248] sm:$0xff]
        %v673 = vld [vmem:[%s347 + $0x250] sm:$0xff]
        %v674 = vld [vmem:[%s347 + $0x258] sm:$0xff]
        %v675 = vld [vmem:[%s347 + $0x260] sm:$0xff]
        %v676 = vld [vmem:[%s347 + $0x268] sm:$0xff]
        %v677 = vld [vmem:[%s347 + $0x270] sm:$0xff]
        %v678 = vld [vmem:[%s347 + $0x278] sm:$0xff]
        %v679 = vld [vmem:[%s347 + $0x280] sm:$0xff]
        %v680 = vld [vmem:[%s347 + $0x288] sm:$0xff]
        %v681 = vld [vmem:[%s347 + $0x290] sm:$0xff]
        %v682 = vld [vmem:[%s347 + $0x298] sm:$0xff]
        %v683 = vld [vmem:[%s347 + $0x2a0] sm:$0xff]
        %v684 = vld [vmem:[%s347 + $0x2a8] sm:$0xff]
        %v685 = vld [vmem:[%s347 + $0x2b0] sm:$0xff]
        %v686 = vld [vmem:[%s347 + $0x2b8] sm:$0xff]
        %v687 = vld [vmem:[%s347 + $0x2c0] sm:$0xff]
        %v688 = vld [vmem:[%s347 + $0x2c8] sm:$0xff]
        %v689 = vld [vmem:[%s347 + $0x2d0] sm:$0xff]
        %v690 = vld [vmem:[%s347 + $0x2d8] sm:$0xff]
        %v691 = vld [vmem:[%s347 + $0x2e0] sm:$0xff]
        %v692 = vld [vmem:[%s347 + $0x2e8] sm:$0xff]
        %v693 = vld [vmem:[%s347 + $0x2f0] sm:$0xff]
        %v694 = vld [vmem:[%s347 + $0x2f8] sm:$0xff]
        %v695 = vld [vmem:[%s347 + $0x300] sm:$0xff]
        %v696 = vld [vmem:[%s347 + $0x308] sm:$0xff]
        %v697 = vld [vmem:[%s347 + $0x310] sm:$0xff]
        %v698 = vld [vmem:[%s347 + $0x318] sm:$0xff]
        %v699 = vld [vmem:[%s347 + $0x320] sm:$0xff]
        %v700 = vld [vmem:[%s347 + $0x328] sm:$0xff]
        %v701 = vld [vmem:[%s347 + $0x330] sm:$0xff]
        %v702 = vld [vmem:[%s347 + $0x338] sm:$0xff]
        %v703 = vld [vmem:[%s347 + $0x340] sm:$0xff]
        %v704 = vld [vmem:[%s347 + $0x348] sm:$0xff]
        %v705 = vld [vmem:[%s347 + $0x350] sm:$0xff]
        %v706 = vld [vmem:[%s347 + $0x358] sm:$0xff]
        %v707 = vld [vmem:[%s347 + $0x360] sm:$0xff]
        %v708 = vld [vmem:[%s347 + $0x368] sm:$0xff]
        %v709 = vld [vmem:[%s347 + $0x370] sm:$0xff]
        %v710 = vld [vmem:[%s347 + $0x378] sm:$0xff]
        %v711 = vld [vmem:[%s347 + $0x380] sm:$0xff]
        %v712 = vld [vmem:[%s347 + $0x388] sm:$0xff]
        %v713 = vld [vmem:[%s347 + $0x390] sm:$0xff]
        %v714 = vld [vmem:[%s347 + $0x398] sm:$0xff]
        %v715 = vld [vmem:[%s347 + $0x3a0] sm:$0xff]
        %v716 = vld [vmem:[%s347 + $0x3a8] sm:$0xff]
        %v717 = vld [vmem:[%s347 + $0x3b0] sm:$0xff]
        %v718 = vld [vmem:[%s347 + $0x3b8] sm:$0xff]
        %v719 = vld [vmem:[%s347 + $0x3c0] sm:$0xff]
        %v720 = vld [vmem:[%s347 + $0x3c8] sm:$0xff]
        %v721 = vld [vmem:[%s347 + $0x3d0] sm:$0xff]
        %v722 = vld [vmem:[%s347 + $0x3d8] sm:$0xff]
        %v723 = vld [vmem:[%s347 + $0x3e0] sm:$0xff]
        %v724 = vld [vmem:[%s347 + $0x3e8] sm:$0xff]
        %v725 = vld [vmem:[%s347 + $0x3f0] sm:$0xff]
        %v726 = vld [vmem:[%s347 + $0x3f8] sm:$0xff]
        %v727 = vld [vmem:[%s406] sm:$0xf]
        %v728 = vunpack.c.l.bf16 %v727
        %v730 = vlaneseq
        %v731 = vshrl.u32 %v730, 7
        %v732 = vsub.s32 0, %v731
        %v733 = vrot.slane %v728, %v732
        %v734 = vlaneseq
        %v735 = vshrl.u32 %v734, 7
        %v736 = vsub.s32 2, %v735
        %v737 = vrot.slane %v728, %v736
        %v738 = vlaneseq
        %v739 = vshrl.u32 %v738, 7
        %v740 = vsub.s32 4, %v739
        %v741 = vrot.slane %v728, %v740
        %v742 = vlaneseq
        %v743 = vshrl.u32 %v742, 7
        %v744 = vsub.s32 6, %v743
        %v745 = vrot.slane %v728, %v744
        %v750 = vlaneseq
        %v751 = vshrl.u32 %v750, 7
        %v752 = vsub.s32 0, %v751
        %v753 = vrot.slane %v733, %v752
        %v754 = vlaneseq
        %v755 = vshrl.u32 %v754, 7
        %v756 = vsub.s32 0, %v755
        %v757 = vrot.slane %v737, %v756
        %v758 = vlaneseq
        %v759 = vshrl.u32 %v758, 7
        %v760 = vsub.s32 0, %v759
        %v761 = vrot.slane %v741, %v760
        %v762 = vlaneseq
        %v763 = vshrl.u32 %v762, 7
        %v764 = vsub.s32 0, %v763
        %v765 = vrot.slane %v745, %v764
        %v894 = vunpack.c.l.b16 %v599
        %v895 = vunpack.c.h.b16 %v599
        %v896 = vunpack.c.l.b16 %v600
        %v897 = vunpack.c.h.b16 %v600
        %v898 = vunpack.c.l.b16 %v601
        %v899 = vunpack.c.h.b16 %v601
        %v900 = vunpack.c.l.b16 %v602
        %v901 = vunpack.c.h.b16 %v602
        %v902 = vunpack.c.l.b16 %v603
        %v903 = vunpack.c.h.b16 %v603
        %v904 = vunpack.c.l.b16 %v604
        %v905 = vunpack.c.h.b16 %v604
        %v906 = vunpack.c.l.b16 %v605
        %v907 = vunpack.c.h.b16 %v605
        %v908 = vunpack.c.l.b16 %v606
        %v909 = vunpack.c.h.b16 %v606
        %v910 = vunpack.c.l.b16 %v607
        %v911 = vunpack.c.h.b16 %v607
        %v912 = vunpack.c.l.b16 %v608
        %v913 = vunpack.c.h.b16 %v608
        %v914 = vunpack.c.l.b16 %v609
        %v915 = vunpack.c.h.b16 %v609
        %v916 = vunpack.c.l.b16 %v610
        %v917 = vunpack.c.h.b16 %v610
        %v918 = vunpack.c.l.b16 %v611
        %v919 = vunpack.c.h.b16 %v611
        %v920 = vunpack.c.l.b16 %v612
        %v921 = vunpack.c.h.b16 %v612
        %v922 = vunpack.c.l.b16 %v613
        %v923 = vunpack.c.h.b16 %v613
        %v924 = vunpack.c.l.b16 %v614
        %v925 = vunpack.c.h.b16 %v614
        %v926 = vunpack.c.l.b16 %v615
        %v927 = vunpack.c.h.b16 %v615
        %v928 = vunpack.c.l.b16 %v616
        %v929 = vunpack.c.h.b16 %v616
        %v930 = vunpack.c.l.b16 %v617
        %v931 = vunpack.c.h.b16 %v617
        %v932 = vunpack.c.l.b16 %v618
        %v933 = vunpack.c.h.b16 %v618
        %v934 = vunpack.c.l.b16 %v619
        %v935 = vunpack.c.h.b16 %v619
        %v936 = vunpack.c.l.b16 %v620
        %v937 = vunpack.c.h.b16 %v620
        %v938 = vunpack.c.l.b16 %v621
        %v939 = vunpack.c.h.b16 %v621
        %v940 = vunpack.c.l.b16 %v622
        %v941 = vunpack.c.h.b16 %v622
        %v942 = vunpack.c.l.b16 %v623
        %v943 = vunpack.c.h.b16 %v623
        %v944 = vunpack.c.l.b16 %v624
        %v945 = vunpack.c.h.b16 %v624
        %v946 = vunpack.c.l.b16 %v625
        %v947 = vunpack.c.h.b16 %v625
        %v948 = vunpack.c.l.b16 %v626
        %v949 = vunpack.c.h.b16 %v626
        %v950 = vunpack.c.l.b16 %v627
        %v951 = vunpack.c.h.b16 %v627
        %v952 = vunpack.c.l.b16 %v628
        %v953 = vunpack.c.h.b16 %v628
        %v954 = vunpack.c.l.b16 %v629
        %v955 = vunpack.c.h.b16 %v629
        %v956 = vunpack.c.l.b16 %v630
        %v957 = vunpack.c.h.b16 %v630
        %v958 = vunpack.c.l.b16 %v631
        %v959 = vunpack.c.h.b16 %v631
        %v960 = vunpack.c.l.b16 %v632
        %v961 = vunpack.c.h.b16 %v632
        %v962 = vunpack.c.l.b16 %v633
        %v963 = vunpack.c.h.b16 %v633
        %v964 = vunpack.c.l.b16 %v634
        %v965 = vunpack.c.h.b16 %v634
        %v966 = vunpack.c.l.b16 %v635
        %v967 = vunpack.c.h.b16 %v635
        %v968 = vunpack.c.l.b16 %v636
        %v969 = vunpack.c.h.b16 %v636
        %v970 = vunpack.c.l.b16 %v637
        %v971 = vunpack.c.h.b16 %v637
        %v972 = vunpack.c.l.b16 %v638
        %v973 = vunpack.c.h.b16 %v638
        %v974 = vunpack.c.l.b16 %v639
        %v975 = vunpack.c.h.b16 %v639
        %v976 = vunpack.c.l.b16 %v640
        %v977 = vunpack.c.h.b16 %v640
        %v978 = vunpack.c.l.b16 %v641
        %v979 = vunpack.c.h.b16 %v641
        %v980 = vunpack.c.l.b16 %v642
        %v981 = vunpack.c.h.b16 %v642
        %v982 = vunpack.c.l.b16 %v643
        %v983 = vunpack.c.h.b16 %v643
        %v984 = vunpack.c.l.b16 %v644
        %v985 = vunpack.c.h.b16 %v644
        %v986 = vunpack.c.l.b16 %v645
        %v987 = vunpack.c.h.b16 %v645
        %v988 = vunpack.c.l.b16 %v646
        %v989 = vunpack.c.h.b16 %v646
        %v990 = vunpack.c.l.b16 %v647
        %v991 = vunpack.c.h.b16 %v647
        %v992 = vunpack.c.l.b16 %v648
        %v993 = vunpack.c.h.b16 %v648
        %v994 = vunpack.c.l.b16 %v649
        %v995 = vunpack.c.h.b16 %v649
        %v996 = vunpack.c.l.b16 %v650
        %v997 = vunpack.c.h.b16 %v650
        %v998 = vunpack.c.l.b16 %v651
        %v999 = vunpack.c.h.b16 %v651
        %v1000 = vunpack.c.l.b16 %v652
        %v1001 = vunpack.c.h.b16 %v652
        %v1002 = vunpack.c.l.b16 %v653
        %v1003 = vunpack.c.h.b16 %v653
        %v1004 = vunpack.c.l.b16 %v654
        %v1005 = vunpack.c.h.b16 %v654
        %v1006 = vunpack.c.l.b16 %v655
        %v1007 = vunpack.c.h.b16 %v655
        %v1008 = vunpack.c.l.b16 %v656
        %v1009 = vunpack.c.h.b16 %v656
        %v1010 = vunpack.c.l.b16 %v657
        %v1011 = vunpack.c.h.b16 %v657
        %v1012 = vunpack.c.l.b16 %v658
        %v1013 = vunpack.c.h.b16 %v658
        %v1014 = vunpack.c.l.b16 %v659
        %v1015 = vunpack.c.h.b16 %v659
        %v1016 = vunpack.c.l.b16 %v660
        %v1017 = vunpack.c.h.b16 %v660
        %v1018 = vunpack.c.l.b16 %v661
        %v1019 = vunpack.c.h.b16 %v661
        %v1020 = vunpack.c.l.b16 %v662
        %v1021 = vunpack.c.h.b16 %v662
        %v1022 = vunpack.c.l.b16 %v663
        %v1023 = vunpack.c.h.b16 %v663
        %v1024 = vunpack.c.l.b16 %v664
        %v1025 = vunpack.c.h.b16 %v664
        %v1026 = vunpack.c.l.b16 %v665
        %v1027 = vunpack.c.h.b16 %v665
        %v1028 = vunpack.c.l.b16 %v666
        %v1029 = vunpack.c.h.b16 %v666
        %v1030 = vunpack.c.l.b16 %v667
        %v1031 = vunpack.c.h.b16 %v667
        %v1032 = vunpack.c.l.b16 %v668
        %v1033 = vunpack.c.h.b16 %v668
        %v1034 = vunpack.c.l.b16 %v669
        %v1035 = vunpack.c.h.b16 %v669
        %v1036 = vunpack.c.l.b16 %v670
        %v1037 = vunpack.c.h.b16 %v670
        %v1038 = vunpack.c.l.b16 %v671
        %v1039 = vunpack.c.h.b16 %v671
        %v1040 = vunpack.c.l.b16 %v672
        %v1041 = vunpack.c.h.b16 %v672
        %v1042 = vunpack.c.l.b16 %v673
        %v1043 = vunpack.c.h.b16 %v673
        %v1044 = vunpack.c.l.b16 %v674
        %v1045 = vunpack.c.h.b16 %v674
        %v1046 = vunpack.c.l.b16 %v675
        %v1047 = vunpack.c.h.b16 %v675
        %v1048 = vunpack.c.l.b16 %v676
        %v1049 = vunpack.c.h.b16 %v676
        %v1050 = vunpack.c.l.b16 %v677
        %v1051 = vunpack.c.h.b16 %v677
        %v1052 = vunpack.c.l.b16 %v678
        %v1053 = vunpack.c.h.b16 %v678
        %v1054 = vunpack.c.l.b16 %v679
        %v1055 = vunpack.c.h.b16 %v679
        %v1056 = vunpack.c.l.b16 %v680
        %v1057 = vunpack.c.h.b16 %v680
        %v1058 = vunpack.c.l.b16 %v681
        %v1059 = vunpack.c.h.b16 %v681
        %v1060 = vunpack.c.l.b16 %v682
        %v1061 = vunpack.c.h.b16 %v682
        %v1062 = vunpack.c.l.b16 %v683
        %v1063 = vunpack.c.h.b16 %v683
        %v1064 = vunpack.c.l.b16 %v684
        %v1065 = vunpack.c.h.b16 %v684
        %v1066 = vunpack.c.l.b16 %v685
        %v1067 = vunpack.c.h.b16 %v685
        %v1068 = vunpack.c.l.b16 %v686
        %v1069 = vunpack.c.h.b16 %v686
        %v1070 = vunpack.c.l.b16 %v687
        %v1071 = vunpack.c.h.b16 %v687
        %v1072 = vunpack.c.l.b16 %v688
        %v1073 = vunpack.c.h.b16 %v688
        %v1074 = vunpack.c.l.b16 %v689
        %v1075 = vunpack.c.h.b16 %v689
        %v1076 = vunpack.c.l.b16 %v690
        %v1077 = vunpack.c.h.b16 %v690
        %v1078 = vunpack.c.l.b16 %v691
        %v1079 = vunpack.c.h.b16 %v691
        %v1080 = vunpack.c.l.b16 %v692
        %v1081 = vunpack.c.h.b16 %v692
        %v1082 = vunpack.c.l.b16 %v693
        %v1083 = vunpack.c.h.b16 %v693
        %v1084 = vunpack.c.l.b16 %v694
        %v1085 = vunpack.c.h.b16 %v694
        %v1086 = vunpack.c.l.b16 %v695
        %v1087 = vunpack.c.h.b16 %v695
        %v1088 = vunpack.c.l.b16 %v696
        %v1089 = vunpack.c.h.b16 %v696
        %v1090 = vunpack.c.l.b16 %v697
        %v1091 = vunpack.c.h.b16 %v697
        %v1092 = vunpack.c.l.b16 %v698
        %v1093 = vunpack.c.h.b16 %v698
        %v1094 = vunpack.c.l.b16 %v699
        %v1095 = vunpack.c.h.b16 %v699
        %v1096 = vunpack.c.l.b16 %v700
        %v1097 = vunpack.c.h.b16 %v700
        %v1098 = vunpack.c.l.b16 %v701
        %v1099 = vunpack.c.h.b16 %v701
        %v1100 = vunpack.c.l.b16 %v702
        %v1101 = vunpack.c.h.b16 %v702
        %v1102 = vunpack.c.l.b16 %v703
        %v1103 = vunpack.c.h.b16 %v703
        %v1104 = vunpack.c.l.b16 %v704
        %v1105 = vunpack.c.h.b16 %v704
        %v1106 = vunpack.c.l.b16 %v705
        %v1107 = vunpack.c.h.b16 %v705
        %v1108 = vunpack.c.l.b16 %v706
        %v1109 = vunpack.c.h.b16 %v706
        %v1110 = vunpack.c.l.b16 %v707
        %v1111 = vunpack.c.h.b16 %v707
        %v1112 = vunpack.c.l.b16 %v708
        %v1113 = vunpack.c.h.b16 %v708
        %v1114 = vunpack.c.l.b16 %v709
        %v1115 = vunpack.c.h.b16 %v709
        %v1116 = vunpack.c.l.b16 %v710
        %v1117 = vunpack.c.h.b16 %v710
        %v1118 = vunpack.c.l.b16 %v711
        %v1119 = vunpack.c.h.b16 %v711
        %v1120 = vunpack.c.l.b16 %v712
        %v1121 = vunpack.c.h.b16 %v712
        %v1122 = vunpack.c.l.b16 %v713
        %v1123 = vunpack.c.h.b16 %v713
        %v1124 = vunpack.c.l.b16 %v714
        %v1125 = vunpack.c.h.b16 %v714
        %v1126 = vunpack.c.l.b16 %v715
        %v1127 = vunpack.c.h.b16 %v715
        %v1128 = vunpack.c.l.b16 %v716
        %v1129 = vunpack.c.h.b16 %v716
        %v1130 = vunpack.c.l.b16 %v717
        %v1131 = vunpack.c.h.b16 %v717
        %v1132 = vunpack.c.l.b16 %v718
        %v1133 = vunpack.c.h.b16 %v718
        %v1134 = vunpack.c.l.b16 %v719
        %v1135 = vunpack.c.h.b16 %v719
        %v1136 = vunpack.c.l.b16 %v720
        %v1137 = vunpack.c.h.b16 %v720
        %v1138 = vunpack.c.l.b16 %v721
        %v1139 = vunpack.c.h.b16 %v721
        %v1140 = vunpack.c.l.b16 %v722
        %v1141 = vunpack.c.h.b16 %v722
        %v1142 = vunpack.c.l.b16 %v723
        %v1143 = vunpack.c.h.b16 %v723
        %v1144 = vunpack.c.l.b16 %v724
        %v1145 = vunpack.c.h.b16 %v724
        %v1146 = vunpack.c.l.b16 %v725
        %v1147 = vunpack.c.h.b16 %v725
        %v1148 = vunpack.c.l.b16 %v726
        %v1149 = vunpack.c.h.b16 %v726
        %v1150 = vpack.c.b16 %v898, %v894
        %v1151 = vpack.c.b16 %v899, %v895
        %v1152 = vpack.c.b16 %v900, %v896
        %v1153 = vpack.c.b16 %v901, %v897
        %v1154 = vpack.c.b16 %v906, %v902
        %v1155 = vpack.c.b16 %v907, %v903
        %v1156 = vpack.c.b16 %v908, %v904
        %v1157 = vpack.c.b16 %v909, %v905
        %v1158 = vpack.c.b16 %v914, %v910
        %v1159 = vpack.c.b16 %v915, %v911
        %v1160 = vpack.c.b16 %v916, %v912
        %v1161 = vpack.c.b16 %v917, %v913
        %v1162 = vpack.c.b16 %v922, %v918
        %v1163 = vpack.c.b16 %v923, %v919
        %v1164 = vpack.c.b16 %v924, %v920
        %v1165 = vpack.c.b16 %v925, %v921
        %v1166 = vpack.c.b16 %v930, %v926
        %v1167 = vpack.c.b16 %v931, %v927
        %v1168 = vpack.c.b16 %v932, %v928
        %v1169 = vpack.c.b16 %v933, %v929
        %v1170 = vpack.c.b16 %v938, %v934
        %v1171 = vpack.c.b16 %v939, %v935
        %v1172 = vpack.c.b16 %v940, %v936
        %v1173 = vpack.c.b16 %v941, %v937
        %v1174 = vpack.c.b16 %v946, %v942
        %v1175 = vpack.c.b16 %v947, %v943
        %v1176 = vpack.c.b16 %v948, %v944
        %v1177 = vpack.c.b16 %v949, %v945
        %v1178 = vpack.c.b16 %v954, %v950
        %v1179 = vpack.c.b16 %v955, %v951
        %v1180 = vpack.c.b16 %v956, %v952
        %v1181 = vpack.c.b16 %v957, %v953
        %v1182 = vpack.c.b16 %v962, %v958
        %v1183 = vpack.c.b16 %v963, %v959
        %v1184 = vpack.c.b16 %v964, %v960
        %v1185 = vpack.c.b16 %v965, %v961
        %v1186 = vpack.c.b16 %v970, %v966
        %v1187 = vpack.c.b16 %v971, %v967
        %v1188 = vpack.c.b16 %v972, %v968
        %v1189 = vpack.c.b16 %v973, %v969
        %v1190 = vpack.c.b16 %v978, %v974
        %v1191 = vpack.c.b16 %v979, %v975
        %v1192 = vpack.c.b16 %v980, %v976
        %v1193 = vpack.c.b16 %v981, %v977
        %v1194 = vpack.c.b16 %v986, %v982
        %v1195 = vpack.c.b16 %v987, %v983
        %v1196 = vpack.c.b16 %v988, %v984
        %v1197 = vpack.c.b16 %v989, %v985
        %v1198 = vpack.c.b16 %v994, %v990
        %v1199 = vpack.c.b16 %v995, %v991
        %v1200 = vpack.c.b16 %v996, %v992
        %v1201 = vpack.c.b16 %v997, %v993
        %v1202 = vpack.c.b16 %v1002, %v998
        %v1203 = vpack.c.b16 %v1003, %v999
        %v1204 = vpack.c.b16 %v1004, %v1000
        %v1205 = vpack.c.b16 %v1005, %v1001
        %v1206 = vpack.c.b16 %v1010, %v1006
        %v1207 = vpack.c.b16 %v1011, %v1007
        %v1208 = vpack.c.b16 %v1012, %v1008
        %v1209 = vpack.c.b16 %v1013, %v1009
        %v1210 = vpack.c.b16 %v1018, %v1014
        %v1211 = vpack.c.b16 %v1019, %v1015
        %v1212 = vpack.c.b16 %v1020, %v1016
        %v1213 = vpack.c.b16 %v1021, %v1017
        %v1214 = vpack.c.b16 %v1026, %v1022
        %v1215 = vpack.c.b16 %v1027, %v1023
        %v1216 = vpack.c.b16 %v1028, %v1024
        %v1217 = vpack.c.b16 %v1029, %v1025
        %v1218 = vpack.c.b16 %v1034, %v1030
        %v1219 = vpack.c.b16 %v1035, %v1031
        %v1220 = vpack.c.b16 %v1036, %v1032
        %v1221 = vpack.c.b16 %v1037, %v1033
        %v1222 = vpack.c.b16 %v1042, %v1038
        %v1223 = vpack.c.b16 %v1043, %v1039
        %v1224 = vpack.c.b16 %v1044, %v1040
        %v1225 = vpack.c.b16 %v1045, %v1041
        %v1226 = vpack.c.b16 %v1050, %v1046
        %v1227 = vpack.c.b16 %v1051, %v1047
        %v1228 = vpack.c.b16 %v1052, %v1048
        %v1229 = vpack.c.b16 %v1053, %v1049
        %v1230 = vpack.c.b16 %v1058, %v1054
        %v1231 = vpack.c.b16 %v1059, %v1055
        %v1232 = vpack.c.b16 %v1060, %v1056
        %v1233 = vpack.c.b16 %v1061, %v1057
        %v1234 = vpack.c.b16 %v1066, %v1062
        %v1235 = vpack.c.b16 %v1067, %v1063
        %v1236 = vpack.c.b16 %v1068, %v1064
        %v1237 = vpack.c.b16 %v1069, %v1065
        %v1238 = vpack.c.b16 %v1074, %v1070
        %v1239 = vpack.c.b16 %v1075, %v1071
        %v1240 = vpack.c.b16 %v1076, %v1072
        %v1241 = vpack.c.b16 %v1077, %v1073
        %v1242 = vpack.c.b16 %v1082, %v1078
        %v1243 = vpack.c.b16 %v1083, %v1079
        %v1244 = vpack.c.b16 %v1084, %v1080
        %v1245 = vpack.c.b16 %v1085, %v1081
        %v1246 = vpack.c.b16 %v1090, %v1086
        %v1247 = vpack.c.b16 %v1091, %v1087
        %v1248 = vpack.c.b16 %v1092, %v1088
        %v1249 = vpack.c.b16 %v1093, %v1089
        %v1250 = vpack.c.b16 %v1098, %v1094
        %v1251 = vpack.c.b16 %v1099, %v1095
        %v1252 = vpack.c.b16 %v1100, %v1096
        %v1253 = vpack.c.b16 %v1101, %v1097
        %v1254 = vpack.c.b16 %v1106, %v1102
        %v1255 = vpack.c.b16 %v1107, %v1103
        %v1256 = vpack.c.b16 %v1108, %v1104
        %v1257 = vpack.c.b16 %v1109, %v1105
        %v1258 = vpack.c.b16 %v1114, %v1110
        %v1259 = vpack.c.b16 %v1115, %v1111
        %v1260 = vpack.c.b16 %v1116, %v1112
        %v1261 = vpack.c.b16 %v1117, %v1113
        %v1262 = vpack.c.b16 %v1122, %v1118
        %v1263 = vpack.c.b16 %v1123, %v1119
        %v1264 = vpack.c.b16 %v1124, %v1120
        %v1265 = vpack.c.b16 %v1125, %v1121
        %v1266 = vpack.c.b16 %v1130, %v1126
        %v1267 = vpack.c.b16 %v1131, %v1127
        %v1268 = vpack.c.b16 %v1132, %v1128
        %v1269 = vpack.c.b16 %v1133, %v1129
        %v1270 = vpack.c.b16 %v1138, %v1134
        %v1271 = vpack.c.b16 %v1139, %v1135
        %v1272 = vpack.c.b16 %v1140, %v1136
        %v1273 = vpack.c.b16 %v1141, %v1137
        %v1274 = vpack.c.b16 %v1146, %v1142
        %v1275 = vpack.c.b16 %v1147, %v1143
        %v1276 = vpack.c.b16 %v1148, %v1144
        %v1277 = vpack.c.b16 %v1149, %v1145
        %1406 = vmatprep.subr.bf16.mxu0 %v1151
        %1407 = vmatpush1.bf16.msra.mxu0 %v1150
        %1408 = vmatprep.subr.bf16.mxu0 %v1155
        %1409 = vmatpush1.bf16.msra.mxu0 %v1154
        %1410 = vmatprep.subr.bf16.mxu0 %v1159
        %1411 = vmatpush1.bf16.msra.mxu0 %v1158
        %1412 = vmatprep.subr.bf16.mxu0 %v1163
        %1413 = vmatpush1.bf16.msra.mxu0 %v1162
        %1414 = vmatprep.subr.bf16.mxu0 %v1167
        %1415 = vmatpush1.bf16.msra.mxu0 %v1166
        %1416 = vmatprep.subr.bf16.mxu0 %v1171
        %1417 = vmatpush1.bf16.msra.mxu0 %v1170
        %1418 = vmatprep.subr.bf16.mxu0 %v1175
        %1419 = vmatpush1.bf16.msra.mxu0 %v1174
        %1420 = vmatprep.subr.bf16.mxu0 %v1179
        %1421 = vmatpush1.bf16.msra.mxu0 %v1178
        %1422 = vmatprep.subr.bf16.mxu0 %v1183
        %1423 = vmatpush1.bf16.msra.mxu0 %v1182
        %1424 = vmatprep.subr.bf16.mxu0 %v1187
        %1425 = vmatpush1.bf16.msra.mxu0 %v1186
        %1426 = vmatprep.subr.bf16.mxu0 %v1191
        %1427 = vmatpush1.bf16.msra.mxu0 %v1190
        %1428 = vmatprep.subr.bf16.mxu0 %v1195
        %1429 = vmatpush1.bf16.msra.mxu0 %v1194
        %1430 = vmatprep.subr.bf16.mxu0 %v1199
        %1431 = vmatpush1.bf16.msra.mxu0 %v1198
        %1432 = vmatprep.subr.bf16.mxu0 %v1203
        %1433 = vmatpush1.bf16.msra.mxu0 %v1202
        %1434 = vmatprep.subr.bf16.mxu0 %v1207
        %1435 = vmatpush1.bf16.msra.mxu0 %v1206
        %1436 = vmatprep.subr.bf16.mxu0 %v1211
        %1437 = vmatpush1.bf16.msra.mxu0 %v1210
        %1438 = vmatprep.mubr.bf16.mxu0 %v596
        %1439 = vmatmul.mubr.bf16.gmra.mrb[0].mxu0 %v595
        %v1440 = vpop.f32.mrb[0].mxu0
        %v1441 = vadd.f32 %v753, %v1440
        %v1442 = vpop.f32.mrb[0].mxu0
        %v1443 = vadd.f32 %v757, %v1442
        %v1444 = vpop.f32.mrb[0].mxu0
        %v1445 = vpop.f32.mrb[0].mxu0
        %1446 = vdwg.mxu0
        %1447 = vmatprep.subr.bf16.mxu0 %v1215
        %1448 = vmatpush1.bf16.msra.mxu0 %v1214
        %1449 = vmatprep.subr.bf16.mxu0 %v1219
        %1450 = vmatpush1.bf16.msra.mxu0 %v1218
        %1451 = vmatprep.subr.bf16.mxu0 %v1223
        %1452 = vmatpush1.bf16.msra.mxu0 %v1222
        %1453 = vmatprep.subr.bf16.mxu0 %v1227
        %1454 = vmatpush1.bf16.msra.mxu0 %v1226
        %1455 = vmatprep.subr.bf16.mxu0 %v1231
        %1456 = vmatpush1.bf16.msra.mxu0 %v1230
        %1457 = vmatprep.subr.bf16.mxu0 %v1235
        %1458 = vmatpush1.bf16.msra.mxu0 %v1234
        %1459 = vmatprep.subr.bf16.mxu0 %v1239
        %1460 = vmatpush1.bf16.msra.mxu0 %v1238
        %1461 = vmatprep.subr.bf16.mxu0 %v1243
        %1462 = vmatpush1.bf16.msra.mxu0 %v1242
        %1463 = vmatprep.subr.bf16.mxu0 %v1247
        %1464 = vmatpush1.bf16.msra.mxu0 %v1246
        %1465 = vmatprep.subr.bf16.mxu0 %v1251
        %1466 = vmatpush1.bf16.msra.mxu0 %v1250
        %1467 = vmatprep.subr.bf16.mxu0 %v1255
        %1468 = vmatpush1.bf16.msra.mxu0 %v1254
        %1469 = vmatprep.subr.bf16.mxu0 %v1259
        %1470 = vmatpush1.bf16.msra.mxu0 %v1258
        %1471 = vmatprep.subr.bf16.mxu0 %v1263
        %1472 = vmatpush1.bf16.msra.mxu0 %v1262
        %1473 = vmatprep.subr.bf16.mxu0 %v1267
        %1474 = vmatpush1.bf16.msra.mxu0 %v1266
        %1475 = vmatprep.subr.bf16.mxu0 %v1271
        %1476 = vmatpush1.bf16.msra.mxu0 %v1270
        %1477 = vmatprep.subr.bf16.mxu0 %v1275
        %1478 = vmatpush1.bf16.msra.mxu0 %v1274
        %1479 = vmatprep.mubr.bf16.mxu0 %v598
        %1480 = vmatmul.mubr.bf16.gmra.mrb[0].mxu0 %v597
        %v1481 = vpop.f32.mrb[0].mxu0
        %v1482 = vadd.f32 %v1441, %v1481
        %v1483 = vpop.f32.mrb[0].mxu0
        %v1484 = vadd.f32 %v1443, %v1483
        %v1485 = vpop.f32.mrb[0].mxu0
        %v1486 = vpop.f32.mrb[0].mxu0
        %1487 = vdwg.mxu0
        %1488 = vmatprep.subr.bf16.mxu0 %v1153
        %1489 = vmatpush1.bf16.msra.mxu0 %v1152
        %1490 = vmatprep.subr.bf16.mxu0 %v1157
        %1491 = vmatpush1.bf16.msra.mxu0 %v1156
        %1492 = vmatprep.subr.bf16.mxu0 %v1161
        %1493 = vmatpush1.bf16.msra.mxu0 %v1160
        %1494 = vmatprep.subr.bf16.mxu0 %v1165
        %1495 = vmatpush1.bf16.msra.mxu0 %v1164
        %1496 = vmatprep.subr.bf16.mxu0 %v1169
        %1497 = vmatpush1.bf16.msra.mxu0 %v1168
        %1498 = vmatprep.subr.bf16.mxu0 %v1173
        %1499 = vmatpush1.bf16.msra.mxu0 %v1172
        %1500 = vmatprep.subr.bf16.mxu0 %v1177
        %1501 = vmatpush1.bf16.msra.mxu0 %v1176
        %1502 = vmatprep.subr.bf16.mxu0 %v1181
        %1503 = vmatpush1.bf16.msra.mxu0 %v1180
        %1504 = vmatprep.subr.bf16.mxu0 %v1185
        %1505 = vmatpush1.bf16.msra.mxu0 %v1184
        %1506 = vmatprep.subr.bf16.mxu0 %v1189
        %1507 = vmatpush1.bf16.msra.mxu0 %v1188
        %1508 = vmatprep.subr.bf16.mxu0 %v1193
        %1509 = vmatpush1.bf16.msra.mxu0 %v1192
        %1510 = vmatprep.subr.bf16.mxu0 %v1197
        %1511 = vmatpush1.bf16.msra.mxu0 %v1196
        %1512 = vmatprep.subr.bf16.mxu0 %v1201
        %1513 = vmatpush1.bf16.msra.mxu0 %v1200
        %1514 = vmatprep.subr.bf16.mxu0 %v1205
        %1515 = vmatpush1.bf16.msra.mxu0 %v1204
        %1516 = vmatprep.subr.bf16.mxu0 %v1209
        %1517 = vmatpush1.bf16.msra.mxu0 %v1208
        %1518 = vmatprep.subr.bf16.mxu0 %v1213
        %1519 = vmatpush1.bf16.msra.mxu0 %v1212
        %1520 = vmatprep.mubr.bf16.mxu0 %v596
        %1521 = vmatmul.mubr.bf16.gmra.mrb[0].mxu0 %v595
        %v1522 = vpop.f32.mrb[0].mxu0
        %v1523 = vadd.f32 %v761, %v1522
        %v1524 = vpop.f32.mrb[0].mxu0
        %v1525 = vadd.f32 %v765, %v1524
        %v1526 = vpop.f32.mrb[0].mxu0
        %v1527 = vpop.f32.mrb[0].mxu0
        %1528 = vdwg.mxu0
        %1529 = vmatprep.subr.bf16.mxu0 %v1217
        %1530 = vmatpush1.bf16.msra.mxu0 %v1216
        %1531 = vmatprep.subr.bf16.mxu0 %v1221
        %1532 = vmatpush1.bf16.msra.mxu0 %v1220
        %1533 = vmatprep.subr.bf16.mxu0 %v1225
        %1534 = vmatpush1.bf16.msra.mxu0 %v1224
        %1535 = vmatprep.subr.bf16.mxu0 %v1229
        %1536 = vmatpush1.bf16.msra.mxu0 %v1228
        %1537 = vmatprep.subr.bf16.mxu0 %v1233
        %1538 = vmatpush1.bf16.msra.mxu0 %v1232
        %1539 = vmatprep.subr.bf16.mxu0 %v1237
        %1540 = vmatpush1.bf16.msra.mxu0 %v1236
        %1541 = vmatprep.subr.bf16.mxu0 %v1241
        %1542 = vmatpush1.bf16.msra.mxu0 %v1240
        %1543 = vmatprep.subr.bf16.mxu0 %v1245
        %1544 = vmatpush1.bf16.msra.mxu0 %v1244
        %1545 = vmatprep.subr.bf16.mxu0 %v1249
        %1546 = vmatpush1.bf16.msra.mxu0 %v1248
        %1547 = vmatprep.subr.bf16.mxu0 %v1253
        %1548 = vmatpush1.bf16.msra.mxu0 %v1252
        %1549 = vmatprep.subr.bf16.mxu0 %v1257
        %1550 = vmatpush1.bf16.msra.mxu0 %v1256
        %1551 = vmatprep.subr.bf16.mxu0 %v1261
        %1552 = vmatpush1.bf16.msra.mxu0 %v1260
        %1553 = vmatprep.subr.bf16.mxu0 %v1265
        %1554 = vmatpush1.bf16.msra.mxu0 %v1264
        %1555 = vmatprep.subr.bf16.mxu0 %v1269
        %1556 = vmatpush1.bf16.msra.mxu0 %v1268
        %1557 = vmatprep.subr.bf16.mxu0 %v1273
        %1558 = vmatpush1.bf16.msra.mxu0 %v1272
        %1559 = vmatprep.subr.bf16.mxu0 %v1277
        %1560 = vmatpush1.bf16.msra.mxu0 %v1276
        %1561 = vmatprep.mubr.bf16.mxu0 %v598
        %1562 = vmatmul.mubr.bf16.gmra.mrb[0].mxu0 %v597
        %v1563 = vpop.f32.mrb[0].mxu0
        %v1564 = vadd.f32 %v1523, %v1563
        %v1565 = vpop.f32.mrb[0].mxu0
        %v1566 = vadd.f32 %v1525, %v1565
        %v1567 = vpop.f32.mrb[0].mxu0
        %v1568 = vpop.f32.mrb[0].mxu0
        %1569 = vdwg.mxu0
        %v1570 = vmax.f32 %v1482, 0.0
        %v1571 = vmax.f32 %v1484, 0.0
        %v1572 = vmax.f32 %v1564, 0.0
        %v1573 = vmax.f32 %v1566, 0.0
        %v1574 = vpack.c.bf16 %v1570, %v1570
        %v1575 = vpack.c.bf16 %v1571, %v1571
        %v1576 = vpack.c.bf16 %v1572, %v1572
        %v1577 = vpack.c.bf16 %v1573, %v1573
        %s1578 = scalar_lea.vmem %s347, 1024 [#allocation7]
        %v1579 = vld [vmem:[%s1578] sm:$0xff]
        %v1580 = vld [vmem:[%s1578 + $0x8] sm:$0xff]
        %v1581 = vld [vmem:[%s1578 + $0x10] sm:$0xff]
        %v1582 = vld [vmem:[%s1578 + $0x18] sm:$0xff]
        %v1583 = vld [vmem:[%s1578 + $0x20] sm:$0xff]
        %v1584 = vld [vmem:[%s1578 + $0x28] sm:$0xff]
        %v1585 = vld [vmem:[%s1578 + $0x30] sm:$0xff]
        %v1586 = vld [vmem:[%s1578 + $0x38] sm:$0xff]
        %v1587 = vld [vmem:[%s1578 + $0x40] sm:$0xff]
        %v1588 = vld [vmem:[%s1578 + $0x48] sm:$0xff]
        %v1589 = vld [vmem:[%s1578 + $0x50] sm:$0xff]
        %v1590 = vld [vmem:[%s1578 + $0x58] sm:$0xff]
        %v1591 = vld [vmem:[%s1578 + $0x60] sm:$0xff]
        %v1592 = vld [vmem:[%s1578 + $0x68] sm:$0xff]
        %v1593 = vld [vmem:[%s1578 + $0x70] sm:$0xff]
        %v1594 = vld [vmem:[%s1578 + $0x78] sm:$0xff]
        %v1595 = vld [vmem:[%s1578 + $0x80] sm:$0xff]
        %v1596 = vld [vmem:[%s1578 + $0x88] sm:$0xff]
        %v1597 = vld [vmem:[%s1578 + $0x90] sm:$0xff]
        %v1598 = vld [vmem:[%s1578 + $0x98] sm:$0xff]
        %v1599 = vld [vmem:[%s1578 + $0xa0] sm:$0xff]
        %v1600 = vld [vmem:[%s1578 + $0xa8] sm:$0xff]
        %v1601 = vld [vmem:[%s1578 + $0xb0] sm:$0xff]
        %v1602 = vld [vmem:[%s1578 + $0xb8] sm:$0xff]
        %v1603 = vld [vmem:[%s1578 + $0xc0] sm:$0xff]
        %v1604 = vld [vmem:[%s1578 + $0xc8] sm:$0xff]
        %v1605 = vld [vmem:[%s1578 + $0xd0] sm:$0xff]
        %v1606 = vld [vmem:[%s1578 + $0xd8] sm:$0xff]
        %v1607 = vld [vmem:[%s1578 + $0xe0] sm:$0xff]
        %v1608 = vld [vmem:[%s1578 + $0xe8] sm:$0xff]
        %v1609 = vld [vmem:[%s1578 + $0xf0] sm:$0xff]
        %v1610 = vld [vmem:[%s1578 + $0xf8] sm:$0xff]
        %v1611 = vld [vmem:[%s1578 + $0x100] sm:$0xff]
        %v1612 = vld [vmem:[%s1578 + $0x108] sm:$0xff]
        %v1613 = vld [vmem:[%s1578 + $0x110] sm:$0xff]
        %v1614 = vld [vmem:[%s1578 + $0x118] sm:$0xff]
        %v1615 = vld [vmem:[%s1578 + $0x120] sm:$0xff]
        %v1616 = vld [vmem:[%s1578 + $0x128] sm:$0xff]
        %v1617 = vld [vmem:[%s1578 + $0x130] sm:$0xff]
        %v1618 = vld [vmem:[%s1578 + $0x138] sm:$0xff]
        %v1619 = vld [vmem:[%s1578 + $0x140] sm:$0xff]
        %v1620 = vld [vmem:[%s1578 + $0x148] sm:$0xff]
        %v1621 = vld [vmem:[%s1578 + $0x150] sm:$0xff]
        %v1622 = vld [vmem:[%s1578 + $0x158] sm:$0xff]
        %v1623 = vld [vmem:[%s1578 + $0x160] sm:$0xff]
        %v1624 = vld [vmem:[%s1578 + $0x168] sm:$0xff]
        %v1625 = vld [vmem:[%s1578 + $0x170] sm:$0xff]
        %v1626 = vld [vmem:[%s1578 + $0x178] sm:$0xff]
        %v1627 = vld [vmem:[%s1578 + $0x180] sm:$0xff]
        %v1628 = vld [vmem:[%s1578 + $0x188] sm:$0xff]
        %v1629 = vld [vmem:[%s1578 + $0x190] sm:$0xff]
        %v1630 = vld [vmem:[%s1578 + $0x198] sm:$0xff]
        %v1631 = vld [vmem:[%s1578 + $0x1a0] sm:$0xff]
        %v1632 = vld [vmem:[%s1578 + $0x1a8] sm:$0xff]
        %v1633 = vld [vmem:[%s1578 + $0x1b0] sm:$0xff]
        %v1634 = vld [vmem:[%s1578 + $0x1b8] sm:$0xff]
        %v1635 = vld [vmem:[%s1578 + $0x1c0] sm:$0xff]
        %v1636 = vld [vmem:[%s1578 + $0x1c8] sm:$0xff]
        %v1637 = vld [vmem:[%s1578 + $0x1d0] sm:$0xff]
        %v1638 = vld [vmem:[%s1578 + $0x1d8] sm:$0xff]
        %v1639 = vld [vmem:[%s1578 + $0x1e0] sm:$0xff]
        %v1640 = vld [vmem:[%s1578 + $0x1e8] sm:$0xff]
        %v1641 = vld [vmem:[%s1578 + $0x1f0] sm:$0xff]
        %v1642 = vld [vmem:[%s1578 + $0x1f8] sm:$0xff]
        %v1643 = vld [vmem:[%s1578 + $0x200] sm:$0xff]
        %v1644 = vld [vmem:[%s1578 + $0x208] sm:$0xff]
        %v1645 = vld [vmem:[%s1578 + $0x210] sm:$0xff]
        %v1646 = vld [vmem:[%s1578 + $0x218] sm:$0xff]
        %v1647 = vld [vmem:[%s1578 + $0x220] sm:$0xff]
        %v1648 = vld [vmem:[%s1578 + $0x228] sm:$0xff]
        %v1649 = vld [vmem:[%s1578 + $0x230] sm:$0xff]
        %v1650 = vld [vmem:[%s1578 + $0x238] sm:$0xff]
        %v1651 = vld [vmem:[%s1578 + $0x240] sm:$0xff]
        %v1652 = vld [vmem:[%s1578 + $0x248] sm:$0xff]
        %v1653 = vld [vmem:[%s1578 + $0x250] sm:$0xff]
        %v1654 = vld [vmem:[%s1578 + $0x258] sm:$0xff]
        %v1655 = vld [vmem:[%s1578 + $0x260] sm:$0xff]
        %v1656 = vld [vmem:[%s1578 + $0x268] sm:$0xff]
        %v1657 = vld [vmem:[%s1578 + $0x270] sm:$0xff]
        %v1658 = vld [vmem:[%s1578 + $0x278] sm:$0xff]
        %v1659 = vld [vmem:[%s1578 + $0x280] sm:$0xff]
        %v1660 = vld [vmem:[%s1578 + $0x288] sm:$0xff]
        %v1661 = vld [vmem:[%s1578 + $0x290] sm:$0xff]
        %v1662 = vld [vmem:[%s1578 + $0x298] sm:$0xff]
        %v1663 = vld [vmem:[%s1578 + $0x2a0] sm:$0xff]
        %v1664 = vld [vmem:[%s1578 + $0x2a8] sm:$0xff]
        %v1665 = vld [vmem:[%s1578 + $0x2b0] sm:$0xff]
        %v1666 = vld [vmem:[%s1578 + $0x2b8] sm:$0xff]
        %v1667 = vld [vmem:[%s1578 + $0x2c0] sm:$0xff]
        %v1668 = vld [vmem:[%s1578 + $0x2c8] sm:$0xff]
        %v1669 = vld [vmem:[%s1578 + $0x2d0] sm:$0xff]
        %v1670 = vld [vmem:[%s1578 + $0x2d8] sm:$0xff]
        %v1671 = vld [vmem:[%s1578 + $0x2e0] sm:$0xff]
        %v1672 = vld [vmem:[%s1578 + $0x2e8] sm:$0xff]
        %v1673 = vld [vmem:[%s1578 + $0x2f0] sm:$0xff]
        %v1674 = vld [vmem:[%s1578 + $0x2f8] sm:$0xff]
        %v1675 = vld [vmem:[%s1578 + $0x300] sm:$0xff]
        %v1676 = vld [vmem:[%s1578 + $0x308] sm:$0xff]
        %v1677 = vld [vmem:[%s1578 + $0x310] sm:$0xff]
        %v1678 = vld [vmem:[%s1578 + $0x318] sm:$0xff]
        %v1679 = vld [vmem:[%s1578 + $0x320] sm:$0xff]
        %v1680 = vld [vmem:[%s1578 + $0x328] sm:$0xff]
        %v1681 = vld [vmem:[%s1578 + $0x330] sm:$0xff]
        %v1682 = vld [vmem:[%s1578 + $0x338] sm:$0xff]
        %v1683 = vld [vmem:[%s1578 + $0x340] sm:$0xff]
        %v1684 = vld [vmem:[%s1578 + $0x348] sm:$0xff]
        %v1685 = vld [vmem:[%s1578 + $0x350] sm:$0xff]
        %v1686 = vld [vmem:[%s1578 + $0x358] sm:$0xff]
        %v1687 = vld [vmem:[%s1578 + $0x360] sm:$0xff]
        %v1688 = vld [vmem:[%s1578 + $0x368] sm:$0xff]
        %v1689 = vld [vmem:[%s1578 + $0x370] sm:$0xff]
        %v1690 = vld [vmem:[%s1578 + $0x378] sm:$0xff]
        %v1691 = vld [vmem:[%s1578 + $0x380] sm:$0xff]
        %v1692 = vld [vmem:[%s1578 + $0x388] sm:$0xff]
        %v1693 = vld [vmem:[%s1578 + $0x390] sm:$0xff]
        %v1694 = vld [vmem:[%s1578 + $0x398] sm:$0xff]
        %v1695 = vld [vmem:[%s1578 + $0x3a0] sm:$0xff]
        %v1696 = vld [vmem:[%s1578 + $0x3a8] sm:$0xff]
        %v1697 = vld [vmem:[%s1578 + $0x3b0] sm:$0xff]
        %v1698 = vld [vmem:[%s1578 + $0x3b8] sm:$0xff]
        %v1699 = vld [vmem:[%s1578 + $0x3c0] sm:$0xff]
        %v1700 = vld [vmem:[%s1578 + $0x3c8] sm:$0xff]
        %v1701 = vld [vmem:[%s1578 + $0x3d0] sm:$0xff]
        %v1702 = vld [vmem:[%s1578 + $0x3d8] sm:$0xff]
        %v1703 = vld [vmem:[%s1578 + $0x3e0] sm:$0xff]
        %v1704 = vld [vmem:[%s1578 + $0x3e8] sm:$0xff]
        %v1705 = vld [vmem:[%s1578 + $0x3f0] sm:$0xff]
        %v1706 = vld [vmem:[%s1578 + $0x3f8] sm:$0xff]
        %s1707 = scalar_lea.vmem %s406, 4
        %v1708 = vld [vmem:[%s1707] sm:$0xf]
        %v1709 = vunpack.c.l.bf16 %v1708
        %v1711 = vlaneseq
        %v1712 = vshrl.u32 %v1711, 7
        %v1713 = vsub.s32 0, %v1712
        %v1714 = vrot.slane %v1709, %v1713
        %v1715 = vlaneseq
        %v1716 = vshrl.u32 %v1715, 7
        %v1717 = vsub.s32 2, %v1716
        %v1718 = vrot.slane %v1709, %v1717
        %v1719 = vlaneseq
        %v1720 = vshrl.u32 %v1719, 7
        %v1721 = vsub.s32 4, %v1720
        %v1722 = vrot.slane %v1709, %v1721
        %v1723 = vlaneseq
        %v1724 = vshrl.u32 %v1723, 7
        %v1725 = vsub.s32 6, %v1724
        %v1726 = vrot.slane %v1709, %v1725
        %v1731 = vlaneseq
        %v1732 = vshrl.u32 %v1731, 7
        %v1733 = vsub.s32 0, %v1732
        %v1734 = vrot.slane %v1714, %v1733
        %v1735 = vlaneseq
        %v1736 = vshrl.u32 %v1735, 7
        %v1737 = vsub.s32 0, %v1736
        %v1738 = vrot.slane %v1718, %v1737
        %v1739 = vlaneseq
        %v1740 = vshrl.u32 %v1739, 7
        %v1741 = vsub.s32 0, %v1740
        %v1742 = vrot.slane %v1722, %v1741
        %v1743 = vlaneseq
        %v1744 = vshrl.u32 %v1743, 7
        %v1745 = vsub.s32 0, %v1744
        %v1746 = vrot.slane %v1726, %v1745
        %v1875 = vunpack.c.l.b16 %v1579
        %v1876 = vunpack.c.h.b16 %v1579
        %v1877 = vunpack.c.l.b16 %v1580
        %v1878 = vunpack.c.h.b16 %v1580
        %v1879 = vunpack.c.l.b16 %v1581
        %v1880 = vunpack.c.h.b16 %v1581
        %v1881 = vunpack.c.l.b16 %v1582
        %v1882 = vunpack.c.h.b16 %v1582
        %v1883 = vunpack.c.l.b16 %v1583
        %v1884 = vunpack.c.h.b16 %v1583
        %v1885 = vunpack.c.l.b16 %v1584
        %v1886 = vunpack.c.h.b16 %v1584
        %v1887 = vunpack.c.l.b16 %v1585
        %v1888 = vunpack.c.h.b16 %v1585
        %v1889 = vunpack.c.l.b16 %v1586
        %v1890 = vunpack.c.h.b16 %v1586
        %v1891 = vunpack.c.l.b16 %v1587
        %v1892 = vunpack.c.h.b16 %v1587
        %v1893 = vunpack.c.l.b16 %v1588
        %v1894 = vunpack.c.h.b16 %v1588
        %v1895 = vunpack.c.l.b16 %v1589
        %v1896 = vunpack.c.h.b16 %v1589
        %v1897 = vunpack.c.l.b16 %v1590
        %v1898 = vunpack.c.h.b16 %v1590
        %v1899 = vunpack.c.l.b16 %v1591
        %v1900 = vunpack.c.h.b16 %v1591
        %v1901 = vunpack.c.l.b16 %v1592
        %v1902 = vunpack.c.h.b16 %v1592
        %v1903 = vunpack.c.l.b16 %v1593
        %v1904 = vunpack.c.h.b16 %v1593
        %v1905 = vunpack.c.l.b16 %v1594
        %v1906 = vunpack.c.h.b16 %v1594
        %v1907 = vunpack.c.l.b16 %v1595
        %v1908 = vunpack.c.h.b16 %v1595
        %v1909 = vunpack.c.l.b16 %v1596
        %v1910 = vunpack.c.h.b16 %v1596
        %v1911 = vunpack.c.l.b16 %v1597
        %v1912 = vunpack.c.h.b16 %v1597
        %v1913 = vunpack.c.l.b16 %v1598
        %v1914 = vunpack.c.h.b16 %v1598
        %v1915 = vunpack.c.l.b16 %v1599
        %v1916 = vunpack.c.h.b16 %v1599
        %v1917 = vunpack.c.l.b16 %v1600
        %v1918 = vunpack.c.h.b16 %v1600
        %v1919 = vunpack.c.l.b16 %v1601
        %v1920 = vunpack.c.h.b16 %v1601
        %v1921 = vunpack.c.l.b16 %v1602
        %v1922 = vunpack.c.h.b16 %v1602
        %v1923 = vunpack.c.l.b16 %v1603
        %v1924 = vunpack.c.h.b16 %v1603
        %v1925 = vunpack.c.l.b16 %v1604
        %v1926 = vunpack.c.h.b16 %v1604
        %v1927 = vunpack.c.l.b16 %v1605
        %v1928 = vunpack.c.h.b16 %v1605
        %v1929 = vunpack.c.l.b16 %v1606
        %v1930 = vunpack.c.h.b16 %v1606
        %v1931 = vunpack.c.l.b16 %v1607
        %v1932 = vunpack.c.h.b16 %v1607
        %v1933 = vunpack.c.l.b16 %v1608
        %v1934 = vunpack.c.h.b16 %v1608
        %v1935 = vunpack.c.l.b16 %v1609
        %v1936 = vunpack.c.h.b16 %v1609
        %v1937 = vunpack.c.l.b16 %v1610
        %v1938 = vunpack.c.h.b16 %v1610
        %v1939 = vunpack.c.l.b16 %v1611
        %v1940 = vunpack.c.h.b16 %v1611
        %v1941 = vunpack.c.l.b16 %v1612
        %v1942 = vunpack.c.h.b16 %v1612
        %v1943 = vunpack.c.l.b16 %v1613
        %v1944 = vunpack.c.h.b16 %v1613
        %v1945 = vunpack.c.l.b16 %v1614
        %v1946 = vunpack.c.h.b16 %v1614
        %v1947 = vunpack.c.l.b16 %v1615
        %v1948 = vunpack.c.h.b16 %v1615
        %v1949 = vunpack.c.l.b16 %v1616
        %v1950 = vunpack.c.h.b16 %v1616
        %v1951 = vunpack.c.l.b16 %v1617
        %v1952 = vunpack.c.h.b16 %v1617
        %v1953 = vunpack.c.l.b16 %v1618
        %v1954 = vunpack.c.h.b16 %v1618
        %v1955 = vunpack.c.l.b16 %v1619
        %v1956 = vunpack.c.h.b16 %v1619
        %v1957 = vunpack.c.l.b16 %v1620
        %v1958 = vunpack.c.h.b16 %v1620
        %v1959 = vunpack.c.l.b16 %v1621
        %v1960 = vunpack.c.h.b16 %v1621
        %v1961 = vunpack.c.l.b16 %v1622
        %v1962 = vunpack.c.h.b16 %v1622
        %v1963 = vunpack.c.l.b16 %v1623
        %v1964 = vunpack.c.h.b16 %v1623
        %v1965 = vunpack.c.l.b16 %v1624
        %v1966 = vunpack.c.h.b16 %v1624
        %v1967 = vunpack.c.l.b16 %v1625
        %v1968 = vunpack.c.h.b16 %v1625
        %v1969 = vunpack.c.l.b16 %v1626
        %v1970 = vunpack.c.h.b16 %v1626
        %v1971 = vunpack.c.l.b16 %v1627
        %v1972 = vunpack.c.h.b16 %v1627
        %v1973 = vunpack.c.l.b16 %v1628
        %v1974 = vunpack.c.h.b16 %v1628
        %v1975 = vunpack.c.l.b16 %v1629
        %v1976 = vunpack.c.h.b16 %v1629
        %v1977 = vunpack.c.l.b16 %v1630
        %v1978 = vunpack.c.h.b16 %v1630
        %v1979 = vunpack.c.l.b16 %v1631
        %v1980 = vunpack.c.h.b16 %v1631
        %v1981 = vunpack.c.l.b16 %v1632
        %v1982 = vunpack.c.h.b16 %v1632
        %v1983 = vunpack.c.l.b16 %v1633
        %v1984 = vunpack.c.h.b16 %v1633
        %v1985 = vunpack.c.l.b16 %v1634
        %v1986 = vunpack.c.h.b16 %v1634
        %v1987 = vunpack.c.l.b16 %v1635
        %v1988 = vunpack.c.h.b16 %v1635
        %v1989 = vunpack.c.l.b16 %v1636
        %v1990 = vunpack.c.h.b16 %v1636
        %v1991 = vunpack.c.l.b16 %v1637
        %v1992 = vunpack.c.h.b16 %v1637
        %v1993 = vunpack.c.l.b16 %v1638
        %v1994 = vunpack.c.h.b16 %v1638
        %v1995 = vunpack.c.l.b16 %v1639
        %v1996 = vunpack.c.h.b16 %v1639
        %v1997 = vunpack.c.l.b16 %v1640
        %v1998 = vunpack.c.h.b16 %v1640
        %v1999 = vunpack.c.l.b16 %v1641
        %v2000 = vunpack.c.h.b16 %v1641
        %v2001 = vunpack.c.l.b16 %v1642
        %v2002 = vunpack.c.h.b16 %v1642
        %v2003 = vunpack.c.l.b16 %v1643
        %v2004 = vunpack.c.h.b16 %v1643
        %v2005 = vunpack.c.l.b16 %v1644
        %v2006 = vunpack.c.h.b16 %v1644
        %v2007 = vunpack.c.l.b16 %v1645
        %v2008 = vunpack.c.h.b16 %v1645
        %v2009 = vunpack.c.l.b16 %v1646
        %v2010 = vunpack.c.h.b16 %v1646
        %v2011 = vunpack.c.l.b16 %v1647
        %v2012 = vunpack.c.h.b16 %v1647
        %v2013 = vunpack.c.l.b16 %v1648
        %v2014 = vunpack.c.h.b16 %v1648
        %v2015 = vunpack.c.l.b16 %v1649
        %v2016 = vunpack.c.h.b16 %v1649
        %v2017 = vunpack.c.l.b16 %v1650
        %v2018 = vunpack.c.h.b16 %v1650
        %v2019 = vunpack.c.l.b16 %v1651
        %v2020 = vunpack.c.h.b16 %v1651
        %v2021 = vunpack.c.l.b16 %v1652
        %v2022 = vunpack.c.h.b16 %v1652
        %v2023 = vunpack.c.l.b16 %v1653
        %v2024 = vunpack.c.h.b16 %v1653
        %v2025 = vunpack.c.l.b16 %v1654
        %v2026 = vunpack.c.h.b16 %v1654
        %v2027 = vunpack.c.l.b16 %v1655
        %v2028 = vunpack.c.h.b16 %v1655
        %v2029 = vunpack.c.l.b16 %v1656
        %v2030 = vunpack.c.h.b16 %v1656
        %v2031 = vunpack.c.l.b16 %v1657
        %v2032 = vunpack.c.h.b16 %v1657
        %v2033 = vunpack.c.l.b16 %v1658
        %v2034 = vunpack.c.h.b16 %v1658
        %v2035 = vunpack.c.l.b16 %v1659
        %v2036 = vunpack.c.h.b16 %v1659
        %v2037 = vunpack.c.l.b16 %v1660
        %v2038 = vunpack.c.h.b16 %v1660
        %v2039 = vunpack.c.l.b16 %v1661
        %v2040 = vunpack.c.h.b16 %v1661
        %v2041 = vunpack.c.l.b16 %v1662
        %v2042 = vunpack.c.h.b16 %v1662
        %v2043 = vunpack.c.l.b16 %v1663
        %v2044 = vunpack.c.h.b16 %v1663
        %v2045 = vunpack.c.l.b16 %v1664
        %v2046 = vunpack.c.h.b16 %v1664
        %v2047 = vunpack.c.l.b16 %v1665
        %v2048 = vunpack.c.h.b16 %v1665
        %v2049 = vunpack.c.l.b16 %v1666
        %v2050 = vunpack.c.h.b16 %v1666
        %v2051 = vunpack.c.l.b16 %v1667
        %v2052 = vunpack.c.h.b16 %v1667
        %v2053 = vunpack.c.l.b16 %v1668
        %v2054 = vunpack.c.h.b16 %v1668
        %v2055 = vunpack.c.l.b16 %v1669
        %v2056 = vunpack.c.h.b16 %v1669
        %v2057 = vunpack.c.l.b16 %v1670
        %v2058 = vunpack.c.h.b16 %v1670
        %v2059 = vunpack.c.l.b16 %v1671
        %v2060 = vunpack.c.h.b16 %v1671
        %v2061 = vunpack.c.l.b16 %v1672
        %v2062 = vunpack.c.h.b16 %v1672
        %v2063 = vunpack.c.l.b16 %v1673
        %v2064 = vunpack.c.h.b16 %v1673
        %v2065 = vunpack.c.l.b16 %v1674
        %v2066 = vunpack.c.h.b16 %v1674
        %v2067 = vunpack.c.l.b16 %v1675
        %v2068 = vunpack.c.h.b16 %v1675
        %v2069 = vunpack.c.l.b16 %v1676
        %v2070 = vunpack.c.h.b16 %v1676
        %v2071 = vunpack.c.l.b16 %v1677
        %v2072 = vunpack.c.h.b16 %v1677
        %v2073 = vunpack.c.l.b16 %v1678
        %v2074 = vunpack.c.h.b16 %v1678
        %v2075 = vunpack.c.l.b16 %v1679
        %v2076 = vunpack.c.h.b16 %v1679
        %v2077 = vunpack.c.l.b16 %v1680
        %v2078 = vunpack.c.h.b16 %v1680
        %v2079 = vunpack.c.l.b16 %v1681
        %v2080 = vunpack.c.h.b16 %v1681
        %v2081 = vunpack.c.l.b16 %v1682
        %v2082 = vunpack.c.h.b16 %v1682
        %v2083 = vunpack.c.l.b16 %v1683
        %v2084 = vunpack.c.h.b16 %v1683
        %v2085 = vunpack.c.l.b16 %v1684
        %v2086 = vunpack.c.h.b16 %v1684
        %v2087 = vunpack.c.l.b16 %v1685
        %v2088 = vunpack.c.h.b16 %v1685
        %v2089 = vunpack.c.l.b16 %v1686
        %v2090 = vunpack.c.h.b16 %v1686
        %v2091 = vunpack.c.l.b16 %v1687
        %v2092 = vunpack.c.h.b16 %v1687
        %v2093 = vunpack.c.l.b16 %v1688
        %v2094 = vunpack.c.h.b16 %v1688
        %v2095 = vunpack.c.l.b16 %v1689
        %v2096 = vunpack.c.h.b16 %v1689
        %v2097 = vunpack.c.l.b16 %v1690
        %v2098 = vunpack.c.h.b16 %v1690
        %v2099 = vunpack.c.l.b16 %v1691
        %v2100 = vunpack.c.h.b16 %v1691
        %v2101 = vunpack.c.l.b16 %v1692
        %v2102 = vunpack.c.h.b16 %v1692
        %v2103 = vunpack.c.l.b16 %v1693
        %v2104 = vunpack.c.h.b16 %v1693
        %v2105 = vunpack.c.l.b16 %v1694
        %v2106 = vunpack.c.h.b16 %v1694
        %v2107 = vunpack.c.l.b16 %v1695
        %v2108 = vunpack.c.h.b16 %v1695
        %v2109 = vunpack.c.l.b16 %v1696
        %v2110 = vunpack.c.h.b16 %v1696
        %v2111 = vunpack.c.l.b16 %v1697
        %v2112 = vunpack.c.h.b16 %v1697
        %v2113 = vunpack.c.l.b16 %v1698
        %v2114 = vunpack.c.h.b16 %v1698
        %v2115 = vunpack.c.l.b16 %v1699
        %v2116 = vunpack.c.h.b16 %v1699
        %v2117 = vunpack.c.l.b16 %v1700
        %v2118 = vunpack.c.h.b16 %v1700
        %v2119 = vunpack.c.l.b16 %v1701
        %v2120 = vunpack.c.h.b16 %v1701
        %v2121 = vunpack.c.l.b16 %v1702
        %v2122 = vunpack.c.h.b16 %v1702
        %v2123 = vunpack.c.l.b16 %v1703
        %v2124 = vunpack.c.h.b16 %v1703
        %v2125 = vunpack.c.l.b16 %v1704
        %v2126 = vunpack.c.h.b16 %v1704
        %v2127 = vunpack.c.l.b16 %v1705
        %v2128 = vunpack.c.h.b16 %v1705
        %v2129 = vunpack.c.l.b16 %v1706
        %v2130 = vunpack.c.h.b16 %v1706
        %v2131 = vpack.c.b16 %v1879, %v1875
        %v2132 = vpack.c.b16 %v1880, %v1876
        %v2133 = vpack.c.b16 %v1881, %v1877
        %v2134 = vpack.c.b16 %v1882, %v1878
        %v2135 = vpack.c.b16 %v1887, %v1883
        %v2136 = vpack.c.b16 %v1888, %v1884
        %v2137 = vpack.c.b16 %v1889, %v1885
        %v2138 = vpack.c.b16 %v1890, %v1886
        %v2139 = vpack.c.b16 %v1895, %v1891
        %v2140 = vpack.c.b16 %v1896, %v1892
        %v2141 = vpack.c.b16 %v1897, %v1893
        %v2142 = vpack.c.b16 %v1898, %v1894
        %v2143 = vpack.c.b16 %v1903, %v1899
        %v2144 = vpack.c.b16 %v1904, %v1900
        %v2145 = vpack.c.b16 %v1905, %v1901
        %v2146 = vpack.c.b16 %v1906, %v1902
        %v2147 = vpack.c.b16 %v1911, %v1907
        %v2148 = vpack.c.b16 %v1912, %v1908
        %v2149 = vpack.c.b16 %v1913, %v1909
        %v2150 = vpack.c.b16 %v1914, %v1910
        %v2151 = vpack.c.b16 %v1919, %v1915
        %v2152 = vpack.c.b16 %v1920, %v1916
        %v2153 = vpack.c.b16 %v1921, %v1917
        %v2154 = vpack.c.b16 %v1922, %v1918
        %v2155 = vpack.c.b16 %v1927, %v1923
        %v2156 = vpack.c.b16 %v1928, %v1924
        %v2157 = vpack.c.b16 %v1929, %v1925
        %v2158 = vpack.c.b16 %v1930, %v1926
        %v2159 = vpack.c.b16 %v1935, %v1931
        %v2160 = vpack.c.b16 %v1936, %v1932
        %v2161 = vpack.c.b16 %v1937, %v1933
        %v2162 = vpack.c.b16 %v1938, %v1934
        %v2163 = vpack.c.b16 %v1943, %v1939
        %v2164 = vpack.c.b16 %v1944, %v1940
        %v2165 = vpack.c.b16 %v1945, %v1941
        %v2166 = vpack.c.b16 %v1946, %v1942
        %v2167 = vpack.c.b16 %v1951, %v1947
        %v2168 = vpack.c.b16 %v1952, %v1948
        %v2169 = vpack.c.b16 %v1953, %v1949
        %v2170 = vpack.c.b16 %v1954, %v1950
        %v2171 = vpack.c.b16 %v1959, %v1955
        %v2172 = vpack.c.b16 %v1960, %v1956
        %v2173 = vpack.c.b16 %v1961, %v1957
        %v2174 = vpack.c.b16 %v1962, %v1958
        %v2175 = vpack.c.b16 %v1967, %v1963
        %v2176 = vpack.c.b16 %v1968, %v1964
        %v2177 = vpack.c.b16 %v1969, %v1965
        %v2178 = vpack.c.b16 %v1970, %v1966
        %v2179 = vpack.c.b16 %v1975, %v1971
        %v2180 = vpack.c.b16 %v1976, %v1972
        %v2181 = vpack.c.b16 %v1977, %v1973
        %v2182 = vpack.c.b16 %v1978, %v1974
        %v2183 = vpack.c.b16 %v1983, %v1979
        %v2184 = vpack.c.b16 %v1984, %v1980
        %v2185 = vpack.c.b16 %v1985, %v1981
        %v2186 = vpack.c.b16 %v1986, %v1982
        %v2187 = vpack.c.b16 %v1991, %v1987
        %v2188 = vpack.c.b16 %v1992, %v1988
        %v2189 = vpack.c.b16 %v1993, %v1989
        %v2190 = vpack.c.b16 %v1994, %v1990
        %v2191 = vpack.c.b16 %v1999, %v1995
        %v2192 = vpack.c.b16 %v2000, %v1996
        %v2193 = vpack.c.b16 %v2001, %v1997
        %v2194 = vpack.c.b16 %v2002, %v1998
        %v2195 = vpack.c.b16 %v2007, %v2003
        %v2196 = vpack.c.b16 %v2008, %v2004
        %v2197 = vpack.c.b16 %v2009, %v2005
        %v2198 = vpack.c.b16 %v2010, %v2006
        %v2199 = vpack.c.b16 %v2015, %v2011
        %v2200 = vpack.c.b16 %v2016, %v2012
        %v2201 = vpack.c.b16 %v2017, %v2013
        %v2202 = vpack.c.b16 %v2018, %v2014
        %v2203 = vpack.c.b16 %v2023, %v2019
        %v2204 = vpack.c.b16 %v2024, %v2020
        %v2205 = vpack.c.b16 %v2025, %v2021
        %v2206 = vpack.c.b16 %v2026, %v2022
        %v2207 = vpack.c.b16 %v2031, %v2027
        %v2208 = vpack.c.b16 %v2032, %v2028
        %v2209 = vpack.c.b16 %v2033, %v2029
        %v2210 = vpack.c.b16 %v2034, %v2030
        %v2211 = vpack.c.b16 %v2039, %v2035
        %v2212 = vpack.c.b16 %v2040, %v2036
        %v2213 = vpack.c.b16 %v2041, %v2037
        %v2214 = vpack.c.b16 %v2042, %v2038
        %v2215 = vpack.c.b16 %v2047, %v2043
        %v2216 = vpack.c.b16 %v2048, %v2044
        %v2217 = vpack.c.b16 %v2049, %v2045
        %v2218 = vpack.c.b16 %v2050, %v2046
        %v2219 = vpack.c.b16 %v2055, %v2051
        %v2220 = vpack.c.b16 %v2056, %v2052
        %v2221 = vpack.c.b16 %v2057, %v2053
        %v2222 = vpack.c.b16 %v2058, %v2054
        %v2223 = vpack.c.b16 %v2063, %v2059
        %v2224 = vpack.c.b16 %v2064, %v2060
        %v2225 = vpack.c.b16 %v2065, %v2061
        %v2226 = vpack.c.b16 %v2066, %v2062
        %v2227 = vpack.c.b16 %v2071, %v2067
        %v2228 = vpack.c.b16 %v2072, %v2068
        %v2229 = vpack.c.b16 %v2073, %v2069
        %v2230 = vpack.c.b16 %v2074, %v2070
        %v2231 = vpack.c.b16 %v2079, %v2075
        %v2232 = vpack.c.b16 %v2080, %v2076
        %v2233 = vpack.c.b16 %v2081, %v2077
        %v2234 = vpack.c.b16 %v2082, %v2078
        %v2235 = vpack.c.b16 %v2087, %v2083
        %v2236 = vpack.c.b16 %v2088, %v2084
        %v2237 = vpack.c.b16 %v2089, %v2085
        %v2238 = vpack.c.b16 %v2090, %v2086
        %v2239 = vpack.c.b16 %v2095, %v2091
        %v2240 = vpack.c.b16 %v2096, %v2092
        %v2241 = vpack.c.b16 %v2097, %v2093
        %v2242 = vpack.c.b16 %v2098, %v2094
        %v2243 = vpack.c.b16 %v2103, %v2099
        %v2244 = vpack.c.b16 %v2104, %v2100
        %v2245 = vpack.c.b16 %v2105, %v2101
        %v2246 = vpack.c.b16 %v2106, %v2102
        %v2247 = vpack.c.b16 %v2111, %v2107
        %v2248 = vpack.c.b16 %v2112, %v2108
        %v2249 = vpack.c.b16 %v2113, %v2109
        %v2250 = vpack.c.b16 %v2114, %v2110
        %v2251 = vpack.c.b16 %v2119, %v2115
        %v2252 = vpack.c.b16 %v2120, %v2116
        %v2253 = vpack.c.b16 %v2121, %v2117
        %v2254 = vpack.c.b16 %v2122, %v2118
        %v2255 = vpack.c.b16 %v2127, %v2123
        %v2256 = vpack.c.b16 %v2128, %v2124
        %v2257 = vpack.c.b16 %v2129, %v2125
        %v2258 = vpack.c.b16 %v2130, %v2126
        %2387 = vmatprep.subr.bf16.mxu0 %v2132
        %2388 = vmatpush1.bf16.msra.mxu0 %v2131
        %2389 = vmatprep.subr.bf16.mxu0 %v2136
        %2390 = vmatpush1.bf16.msra.mxu0 %v2135
        %2391 = vmatprep.subr.bf16.mxu0 %v2140
        %2392 = vmatpush1.bf16.msra.mxu0 %v2139
        %2393 = vmatprep.subr.bf16.mxu0 %v2144
        %2394 = vmatpush1.bf16.msra.mxu0 %v2143
        %2395 = vmatprep.subr.bf16.mxu0 %v2148
        %2396 = vmatpush1.bf16.msra.mxu0 %v2147
        %2397 = vmatprep.subr.bf16.mxu0 %v2152
        %2398 = vmatpush1.bf16.msra.mxu0 %v2151
        %2399 = vmatprep.subr.bf16.mxu0 %v2156
        %2400 = vmatpush1.bf16.msra.mxu0 %v2155
        %2401 = vmatprep.subr.bf16.mxu0 %v2160
        %2402 = vmatpush1.bf16.msra.mxu0 %v2159
        %2403 = vmatprep.subr.bf16.mxu0 %v2164
        %2404 = vmatpush1.bf16.msra.mxu0 %v2163
        %2405 = vmatprep.subr.bf16.mxu0 %v2168
        %2406 = vmatpush1.bf16.msra.mxu0 %v2167
        %2407 = vmatprep.subr.bf16.mxu0 %v2172
        %2408 = vmatpush1.bf16.msra.mxu0 %v2171
        %2409 = vmatprep.subr.bf16.mxu0 %v2176
        %2410 = vmatpush1.bf16.msra.mxu0 %v2175
        %2411 = vmatprep.subr.bf16.mxu0 %v2180
        %2412 = vmatpush1.bf16.msra.mxu0 %v2179
        %2413 = vmatprep.subr.bf16.mxu0 %v2184
        %2414 = vmatpush1.bf16.msra.mxu0 %v2183
        %2415 = vmatprep.subr.bf16.mxu0 %v2188
        %2416 = vmatpush1.bf16.msra.mxu0 %v2187
        %2417 = vmatprep.subr.bf16.mxu0 %v2192
        %2418 = vmatpush1.bf16.msra.mxu0 %v2191
        %2419 = vmatprep.mubr.bf16.mxu0 %v1575
        %2420 = vmatmul.mubr.bf16.gmra.mrb[0].mxu0 %v1574
        %v2421 = vpop.f32.mrb[0].mxu0
        %v2422 = vadd.f32 %v1734, %v2421
        %v2423 = vpop.f32.mrb[0].mxu0
        %v2424 = vadd.f32 %v1738, %v2423
        %v2425 = vpop.f32.mrb[0].mxu0
        %v2426 = vpop.f32.mrb[0].mxu0
        %2427 = vdwg.mxu0
        %2428 = vmatprep.subr.bf16.mxu0 %v2196
        %2429 = vmatpush1.bf16.msra.mxu0 %v2195
        %2430 = vmatprep.subr.bf16.mxu0 %v2200
        %2431 = vmatpush1.bf16.msra.mxu0 %v2199
        %2432 = vmatprep.subr.bf16.mxu0 %v2204
        %2433 = vmatpush1.bf16.msra.mxu0 %v2203
        %2434 = vmatprep.subr.bf16.mxu0 %v2208
        %2435 = vmatpush1.bf16.msra.mxu0 %v2207
        %2436 = vmatprep.subr.bf16.mxu0 %v2212
        %2437 = vmatpush1.bf16.msra.mxu0 %v2211
        %2438 = vmatprep.subr.bf16.mxu0 %v2216
        %2439 = vmatpush1.bf16.msra.mxu0 %v2215
        %2440 = vmatprep.subr.bf16.mxu0 %v2220
        %2441 = vmatpush1.bf16.msra.mxu0 %v2219
        %2442 = vmatprep.subr.bf16.mxu0 %v2224
        %2443 = vmatpush1.bf16.msra.mxu0 %v2223
        %2444 = vmatprep.subr.bf16.mxu0 %v2228
        %2445 = vmatpush1.bf16.msra.mxu0 %v2227
        %2446 = vmatprep.subr.bf16.mxu0 %v2232
        %2447 = vmatpush1.bf16.msra.mxu0 %v2231
        %2448 = vmatprep.subr.bf16.mxu0 %v2236
        %2449 = vmatpush1.bf16.msra.mxu0 %v2235
        %2450 = vmatprep.subr.bf16.mxu0 %v2240
        %2451 = vmatpush1.bf16.msra.mxu0 %v2239
        %2452 = vmatprep.subr.bf16.mxu0 %v2244
        %2453 = vmatpush1.bf16.msra.mxu0 %v2243
        %2454 = vmatprep.subr.bf16.mxu0 %v2248
        %2455 = vmatpush1.bf16.msra.mxu0 %v2247
        %2456 = vmatprep.subr.bf16.mxu0 %v2252
        %2457 = vmatpush1.bf16.msra.mxu0 %v2251
        %2458 = vmatprep.subr.bf16.mxu0 %v2256
        %2459 = vmatpush1.bf16.msra.mxu0 %v2255
        %2460 = vmatprep.mubr.bf16.mxu0 %v1577
        %2461 = vmatmul.mubr.bf16.gmra.mrb[0].mxu0 %v1576
        %v2462 = vpop.f32.mrb[0].mxu0
        %v2463 = vadd.f32 %v2422, %v2462
        %v2464 = vpop.f32.mrb[0].mxu0
        %v2465 = vadd.f32 %v2424, %v2464
        %v2466 = vpop.f32.mrb[0].mxu0
        %v2467 = vpop.f32.mrb[0].mxu0
        %2468 = vdwg.mxu0
        %2469 = vmatprep.subr.bf16.mxu0 %v2134
        %2470 = vmatpush1.bf16.msra.mxu0 %v2133
        %2471 = vmatprep.subr.bf16.mxu0 %v2138
        %2472 = vmatpush1.bf16.msra.mxu0 %v2137
        %2473 = vmatprep.subr.bf16.mxu0 %v2142
        %2474 = vmatpush1.bf16.msra.mxu0 %v2141
        %2475 = vmatprep.subr.bf16.mxu0 %v2146
        %2476 = vmatpush1.bf16.msra.mxu0 %v2145
        %2477 = vmatprep.subr.bf16.mxu0 %v2150
        %2478 = vmatpush1.bf16.msra.mxu0 %v2149
        %2479 = vmatprep.subr.bf16.mxu0 %v2154
        %2480 = vmatpush1.bf16.msra.mxu0 %v2153
        %2481 = vmatprep.subr.bf16.mxu0 %v2158
        %2482 = vmatpush1.bf16.msra.mxu0 %v2157
        %2483 = vmatprep.subr.bf16.mxu0 %v2162
        %2484 = vmatpush1.bf16.msra.mxu0 %v2161
        %2485 = vmatprep.subr.bf16.mxu0 %v2166
        %2486 = vmatpush1.bf16.msra.mxu0 %v2165
        %2487 = vmatprep.subr.bf16.mxu0 %v2170
        %2488 = vmatpush1.bf16.msra.mxu0 %v2169
        %2489 = vmatprep.subr.bf16.mxu0 %v2174
        %2490 = vmatpush1.bf16.msra.mxu0 %v2173
        %2491 = vmatprep.subr.bf16.mxu0 %v2178
        %2492 = vmatpush1.bf16.msra.mxu0 %v2177
        %2493 = vmatprep.subr.bf16.mxu0 %v2182
        %2494 = vmatpush1.bf16.msra.mxu0 %v2181
        %2495 = vmatprep.subr.bf16.mxu0 %v2186
        %2496 = vmatpush1.bf16.msra.mxu0 %v2185
        %2497 = vmatprep.subr.bf16.mxu0 %v2190
        %2498 = vmatpush1.bf16.msra.mxu0 %v2189
        %2499 = vmatprep.subr.bf16.mxu0 %v2194
        %2500 = vmatpush1.bf16.msra.mxu0 %v2193
        %2501 = vmatprep.mubr.bf16.mxu0 %v1575
        %2502 = vmatmul.mubr.bf16.gmra.mrb[0].mxu0 %v1574
        %v2503 = vpop.f32.mrb[0].mxu0
        %v2504 = vadd.f32 %v1742, %v2503
        %v2505 = vpop.f32.mrb[0].mxu0
        %v2506 = vadd.f32 %v1746, %v2505
        %v2507 = vpop.f32.mrb[0].mxu0
        %v2508 = vpop.f32.mrb[0].mxu0
        %2509 = vdwg.mxu0
        %2510 = vmatprep.subr.bf16.mxu0 %v2198
        %2511 = vmatpush1.bf16.msra.mxu0 %v2197
        %2512 = vmatprep.subr.bf16.mxu0 %v2202
        %2513 = vmatpush1.bf16.msra.mxu0 %v2201
        %2514 = vmatprep.subr.bf16.mxu0 %v2206
        %2515 = vmatpush1.bf16.msra.mxu0 %v2205
        %2516 = vmatprep.subr.bf16.mxu0 %v2210
        %2517 = vmatpush1.bf16.msra.mxu0 %v2209
        %2518 = vmatprep.subr.bf16.mxu0 %v2214
        %2519 = vmatpush1.bf16.msra.mxu0 %v2213
        %2520 = vmatprep.subr.bf16.mxu0 %v2218
        %2521 = vmatpush1.bf16.msra.mxu0 %v2217
        %2522 = vmatprep.subr.bf16.mxu0 %v2222
        %2523 = vmatpush1.bf16.msra.mxu0 %v2221
        %2524 = vmatprep.subr.bf16.mxu0 %v2226
        %2525 = vmatpush1.bf16.msra.mxu0 %v2225
        %2526 = vmatprep.subr.bf16.mxu0 %v2230
        %2527 = vmatpush1.bf16.msra.mxu0 %v2229
        %2528 = vmatprep.subr.bf16.mxu0 %v2234
        %2529 = vmatpush1.bf16.msra.mxu0 %v2233
        %2530 = vmatprep.subr.bf16.mxu0 %v2238
        %2531 = vmatpush1.bf16.msra.mxu0 %v2237
        %2532 = vmatprep.subr.bf16.mxu0 %v2242
        %2533 = vmatpush1.bf16.msra.mxu0 %v2241
        %2534 = vmatprep.subr.bf16.mxu0 %v2246
        %2535 = vmatpush1.bf16.msra.mxu0 %v2245
        %2536 = vmatprep.subr.bf16.mxu0 %v2250
        %2537 = vmatpush1.bf16.msra.mxu0 %v2249
        %2538 = vmatprep.subr.bf16.mxu0 %v2254
        %2539 = vmatpush1.bf16.msra.mxu0 %v2253
        %2540 = vmatprep.subr.bf16.mxu0 %v2258
        %2541 = vmatpush1.bf16.msra.mxu0 %v2257
        %2542 = vmatprep.mubr.bf16.mxu0 %v1577
        %2543 = vmatmul.mubr.bf16.gmra.mrb[0].mxu0 %v1576
        %v2544 = vpop.f32.mrb[0].mxu0
        %v2545 = vadd.f32 %v2504, %v2544
        %v2546 = vpop.f32.mrb[0].mxu0
        %v2547 = vadd.f32 %v2506, %v2546
        %v2548 = vpop.f32.mrb[0].mxu0
        %v2549 = vpop.f32.mrb[0].mxu0
        %2550 = vdwg.mxu0
        %v2551 = vmax.f32 %v2463, 0.0
        %v2552 = vmax.f32 %v2465, 0.0
        %v2553 = vmax.f32 %v2545, 0.0
        %v2554 = vmax.f32 %v2547, 0.0
        %v2555 = vpack.c.bf16 %v2551, %v2551
        %v2556 = vpack.c.bf16 %v2552, %v2552
        %v2557 = vpack.c.bf16 %v2553, %v2553
        %v2558 = vpack.c.bf16 %v2554, %v2554
        %s2559 = scalar_lea.vmem %s347, 2048 [#allocation7]
        %v2560 = vld [vmem:[%s2559] sm:$0xff]
        %v2561 = vld [vmem:[%s2559 + $0x8] sm:$0xff]
        %v2562 = vld [vmem:[%s2559 + $0x10] sm:$0xff]
        %v2563 = vld [vmem:[%s2559 + $0x18] sm:$0xff]
        %v2564 = vld [vmem:[%s2559 + $0x20] sm:$0xff]
        %v2565 = vld [vmem:[%s2559 + $0x28] sm:$0xff]
        %v2566 = vld [vmem:[%s2559 + $0x30] sm:$0xff]
        %v2567 = vld [vmem:[%s2559 + $0x38] sm:$0xff]
        %v2568 = vld [vmem:[%s2559 + $0x40] sm:$0xff]
        %v2569 = vld [vmem:[%s2559 + $0x48] sm:$0xff]
        %v2570 = vld [vmem:[%s2559 + $0x50] sm:$0xff]
        %v2571 = vld [vmem:[%s2559 + $0x58] sm:$0xff]
        %v2572 = vld [vmem:[%s2559 + $0x60] sm:$0xff]
        %v2573 = vld [vmem:[%s2559 + $0x68] sm:$0xff]
        %v2574 = vld [vmem:[%s2559 + $0x70] sm:$0xff]
        %v2575 = vld [vmem:[%s2559 + $0x78] sm:$0xff]
        %v2576 = vld [vmem:[%s2559 + $0x80] sm:$0xff]
        %v2577 = vld [vmem:[%s2559 + $0x88] sm:$0xff]
        %v2578 = vld [vmem:[%s2559 + $0x90] sm:$0xff]
        %v2579 = vld [vmem:[%s2559 + $0x98] sm:$0xff]
        %v2580 = vld [vmem:[%s2559 + $0xa0] sm:$0xff]
        %v2581 = vld [vmem:[%s2559 + $0xa8] sm:$0xff]
        %v2582 = vld [vmem:[%s2559 + $0xb0] sm:$0xff]
        %v2583 = vld [vmem:[%s2559 + $0xb8] sm:$0xff]
        %v2584 = vld [vmem:[%s2559 + $0xc0] sm:$0xff]
        %v2585 = vld [vmem:[%s2559 + $0xc8] sm:$0xff]
        %v2586 = vld [vmem:[%s2559 + $0xd0] sm:$0xff]
        %v2587 = vld [vmem:[%s2559 + $0xd8] sm:$0xff]
        %v2588 = vld [vmem:[%s2559 + $0xe0] sm:$0xff]
        %v2589 = vld [vmem:[%s2559 + $0xe8] sm:$0xff]
        %v2590 = vld [vmem:[%s2559 + $0xf0] sm:$0xff]
        %v2591 = vld [vmem:[%s2559 + $0xf8] sm:$0xff]
        %v2592 = vld [vmem:[%s2559 + $0x100] sm:$0xff]
        %v2593 = vld [vmem:[%s2559 + $0x108] sm:$0xff]
        %v2594 = vld [vmem:[%s2559 + $0x110] sm:$0xff]
        %v2595 = vld [vmem:[%s2559 + $0x118] sm:$0xff]
        %v2596 = vld [vmem:[%s2559 + $0x120] sm:$0xff]
        %v2597 = vld [vmem:[%s2559 + $0x128] sm:$0xff]
        %v2598 = vld [vmem:[%s2559 + $0x130] sm:$0xff]
        %v2599 = vld [vmem:[%s2559 + $0x138] sm:$0xff]
        %v2600 = vld [vmem:[%s2559 + $0x140] sm:$0xff]
        %v2601 = vld [vmem:[%s2559 + $0x148] sm:$0xff]
        %v2602 = vld [vmem:[%s2559 + $0x150] sm:$0xff]
        %v2603 = vld [vmem:[%s2559 + $0x158] sm:$0xff]
        %v2604 = vld [vmem:[%s2559 + $0x160] sm:$0xff]
        %v2605 = vld [vmem:[%s2559 + $0x168] sm:$0xff]
        %v2606 = vld [vmem:[%s2559 + $0x170] sm:$0xff]
        %v2607 = vld [vmem:[%s2559 + $0x178] sm:$0xff]
        %v2608 = vld [vmem:[%s2559 + $0x180] sm:$0xff]
        %v2609 = vld [vmem:[%s2559 + $0x188] sm:$0xff]
        %v2610 = vld [vmem:[%s2559 + $0x190] sm:$0xff]
        %v2611 = vld [vmem:[%s2559 + $0x198] sm:$0xff]
        %v2612 = vld [vmem:[%s2559 + $0x1a0] sm:$0xff]
        %v2613 = vld [vmem:[%s2559 + $0x1a8] sm:$0xff]
        %v2614 = vld [vmem:[%s2559 + $0x1b0] sm:$0xff]
        %v2615 = vld [vmem:[%s2559 + $0x1b8] sm:$0xff]
        %v2616 = vld [vmem:[%s2559 + $0x1c0] sm:$0xff]
        %v2617 = vld [vmem:[%s2559 + $0x1c8] sm:$0xff]
        %v2618 = vld [vmem:[%s2559 + $0x1d0] sm:$0xff]
        %v2619 = vld [vmem:[%s2559 + $0x1d8] sm:$0xff]
        %v2620 = vld [vmem:[%s2559 + $0x1e0] sm:$0xff]
        %v2621 = vld [vmem:[%s2559 + $0x1e8] sm:$0xff]
        %v2622 = vld [vmem:[%s2559 + $0x1f0] sm:$0xff]
        %v2623 = vld [vmem:[%s2559 + $0x1f8] sm:$0xff]
        %v2624 = vld [vmem:[%s2559 + $0x200] sm:$0xff]
        %v2625 = vld [vmem:[%s2559 + $0x208] sm:$0xff]
        %v2626 = vld [vmem:[%s2559 + $0x210] sm:$0xff]
        %v2627 = vld [vmem:[%s2559 + $0x218] sm:$0xff]
        %v2628 = vld [vmem:[%s2559 + $0x220] sm:$0xff]
        %v2629 = vld [vmem:[%s2559 + $0x228] sm:$0xff]
        %v2630 = vld [vmem:[%s2559 + $0x230] sm:$0xff]
        %v2631 = vld [vmem:[%s2559 + $0x238] sm:$0xff]
        %v2632 = vld [vmem:[%s2559 + $0x240] sm:$0xff]
        %v2633 = vld [vmem:[%s2559 + $0x248] sm:$0xff]
        %v2634 = vld [vmem:[%s2559 + $0x250] sm:$0xff]
        %v2635 = vld [vmem:[%s2559 + $0x258] sm:$0xff]
        %v2636 = vld [vmem:[%s2559 + $0x260] sm:$0xff]
        %v2637 = vld [vmem:[%s2559 + $0x268] sm:$0xff]
        %v2638 = vld [vmem:[%s2559 + $0x270] sm:$0xff]
        %v2639 = vld [vmem:[%s2559 + $0x278] sm:$0xff]
        %v2640 = vld [vmem:[%s2559 + $0x280] sm:$0xff]
        %v2641 = vld [vmem:[%s2559 + $0x288] sm:$0xff]
        %v2642 = vld [vmem:[%s2559 + $0x290] sm:$0xff]
        %v2643 = vld [vmem:[%s2559 + $0x298] sm:$0xff]
        %v2644 = vld [vmem:[%s2559 + $0x2a0] sm:$0xff]
        %v2645 = vld [vmem:[%s2559 + $0x2a8] sm:$0xff]
        %v2646 = vld [vmem:[%s2559 + $0x2b0] sm:$0xff]
        %v2647 = vld [vmem:[%s2559 + $0x2b8] sm:$0xff]
        %v2648 = vld [vmem:[%s2559 + $0x2c0] sm:$0xff]
        %v2649 = vld [vmem:[%s2559 + $0x2c8] sm:$0xff]
        %v2650 = vld [vmem:[%s2559 + $0x2d0] sm:$0xff]
        %v2651 = vld [vmem:[%s2559 + $0x2d8] sm:$0xff]
        %v2652 = vld [vmem:[%s2559 + $0x2e0] sm:$0xff]
        %v2653 = vld [vmem:[%s2559 + $0x2e8] sm:$0xff]
        %v2654 = vld [vmem:[%s2559 + $0x2f0] sm:$0xff]
        %v2655 = vld [vmem:[%s2559 + $0x2f8] sm:$0xff]
        %v2656 = vld [vmem:[%s2559 + $0x300] sm:$0xff]
        %v2657 = vld [vmem:[%s2559 + $0x308] sm:$0xff]
        %v2658 = vld [vmem:[%s2559 + $0x310] sm:$0xff]
        %v2659 = vld [vmem:[%s2559 + $0x318] sm:$0xff]
        %v2660 = vld [vmem:[%s2559 + $0x320] sm:$0xff]
        %v2661 = vld [vmem:[%s2559 + $0x328] sm:$0xff]
        %v2662 = vld [vmem:[%s2559 + $0x330] sm:$0xff]
        %v2663 = vld [vmem:[%s2559 + $0x338] sm:$0xff]
        %v2664 = vld [vmem:[%s2559 + $0x340] sm:$0xff]
        %v2665 = vld [vmem:[%s2559 + $0x348] sm:$0xff]
        %v2666 = vld [vmem:[%s2559 + $0x350] sm:$0xff]
        %v2667 = vld [vmem:[%s2559 + $0x358] sm:$0xff]
        %v2668 = vld [vmem:[%s2559 + $0x360] sm:$0xff]
        %v2669 = vld [vmem:[%s2559 + $0x368] sm:$0xff]
        %v2670 = vld [vmem:[%s2559 + $0x370] sm:$0xff]
        %v2671 = vld [vmem:[%s2559 + $0x378] sm:$0xff]
        %v2672 = vld [vmem:[%s2559 + $0x380] sm:$0xff]
        %v2673 = vld [vmem:[%s2559 + $0x388] sm:$0xff]
        %v2674 = vld [vmem:[%s2559 + $0x390] sm:$0xff]
        %v2675 = vld [vmem:[%s2559 + $0x398] sm:$0xff]
        %v2676 = vld [vmem:[%s2559 + $0x3a0] sm:$0xff]
        %v2677 = vld [vmem:[%s2559 + $0x3a8] sm:$0xff]
        %v2678 = vld [vmem:[%s2559 + $0x3b0] sm:$0xff]
        %v2679 = vld [vmem:[%s2559 + $0x3b8] sm:$0xff]
        %v2680 = vld [vmem:[%s2559 + $0x3c0] sm:$0xff]
        %v2681 = vld [vmem:[%s2559 + $0x3c8] sm:$0xff]
        %v2682 = vld [vmem:[%s2559 + $0x3d0] sm:$0xff]
        %v2683 = vld [vmem:[%s2559 + $0x3d8] sm:$0xff]
        %v2684 = vld [vmem:[%s2559 + $0x3e0] sm:$0xff]
        %v2685 = vld [vmem:[%s2559 + $0x3e8] sm:$0xff]
        %v2686 = vld [vmem:[%s2559 + $0x3f0] sm:$0xff]
        %v2687 = vld [vmem:[%s2559 + $0x3f8] sm:$0xff]
        %s2688 = scalar_lea.vmem %s406, 8
        %v2689 = vld [vmem:[%s2688] sm:$0xf]
        %v2690 = vunpack.c.l.bf16 %v2689
        %v2692 = vlaneseq
        %v2693 = vshrl.u32 %v2692, 7
        %v2694 = vsub.s32 0, %v2693
        %v2695 = vrot.slane %v2690, %v2694
        %v2696 = vlaneseq
        %v2697 = vshrl.u32 %v2696, 7
        %v2698 = vsub.s32 2, %v2697
        %v2699 = vrot.slane %v2690, %v2698
        %v2700 = vlaneseq
        %v2701 = vshrl.u32 %v2700, 7
        %v2702 = vsub.s32 4, %v2701
        %v2703 = vrot.slane %v2690, %v2702
        %v2704 = vlaneseq
        %v2705 = vshrl.u32 %v2704, 7
        %v2706 = vsub.s32 6, %v2705
        %v2707 = vrot.slane %v2690, %v2706
        %v2712 = vlaneseq
        %v2713 = vshrl.u32 %v2712, 7
        %v2714 = vsub.s32 0, %v2713
        %v2715 = vrot.slane %v2695, %v2714
        %v2716 = vlaneseq
        %v2717 = vshrl.u32 %v2716, 7
        %v2718 = vsub.s32 0, %v2717
        %v2719 = vrot.slane %v2699, %v2718
        %v2720 = vlaneseq
        %v2721 = vshrl.u32 %v2720, 7
        %v2722 = vsub.s32 0, %v2721
        %v2723 = vrot.slane %v2703, %v2722
        %v2724 = vlaneseq
        %v2725 = vshrl.u32 %v2724, 7
        %v2726 = vsub.s32 0, %v2725
        %v2727 = vrot.slane %v2707, %v2726
        %v2856 = vunpack.c.l.b16 %v2560
        %v2857 = vunpack.c.h.b16 %v2560
        %v2858 = vunpack.c.l.b16 %v2561
        %v2859 = vunpack.c.h.b16 %v2561
        %v2860 = vunpack.c.l.b16 %v2562
        %v2861 = vunpack.c.h.b16 %v2562
        %v2862 = vunpack.c.l.b16 %v2563
        %v2863 = vunpack.c.h.b16 %v2563
        %v2864 = vunpack.c.l.b16 %v2564
        %v2865 = vunpack.c.h.b16 %v2564
        %v2866 = vunpack.c.l.b16 %v2565
        %v2867 = vunpack.c.h.b16 %v2565
        %v2868 = vunpack.c.l.b16 %v2566
        %v2869 = vunpack.c.h.b16 %v2566
        %v2870 = vunpack.c.l.b16 %v2567
        %v2871 = vunpack.c.h.b16 %v2567
        %v2872 = vunpack.c.l.b16 %v2568
        %v2873 = vunpack.c.h.b16 %v2568
        %v2874 = vunpack.c.l.b16 %v2569
        %v2875 = vunpack.c.h.b16 %v2569
        %v2876 = vunpack.c.l.b16 %v2570
        %v2877 = vunpack.c.h.b16 %v2570
        %v2878 = vunpack.c.l.b16 %v2571
        %v2879 = vunpack.c.h.b16 %v2571
        %v2880 = vunpack.c.l.b16 %v2572
        %v2881 = vunpack.c.h.b16 %v2572
        %v2882 = vunpack.c.l.b16 %v2573
        %v2883 = vunpack.c.h.b16 %v2573
        %v2884 = vunpack.c.l.b16 %v2574
        %v2885 = vunpack.c.h.b16 %v2574
        %v2886 = vunpack.c.l.b16 %v2575
        %v2887 = vunpack.c.h.b16 %v2575
        %v2888 = vunpack.c.l.b16 %v2576
        %v2889 = vunpack.c.h.b16 %v2576
        %v2890 = vunpack.c.l.b16 %v2577
        %v2891 = vunpack.c.h.b16 %v2577
        %v2892 = vunpack.c.l.b16 %v2578
        %v2893 = vunpack.c.h.b16 %v2578
        %v2894 = vunpack.c.l.b16 %v2579
        %v2895 = vunpack.c.h.b16 %v2579
        %v2896 = vunpack.c.l.b16 %v2580
        %v2897 = vunpack.c.h.b16 %v2580
        %v2898 = vunpack.c.l.b16 %v2581
        %v2899 = vunpack.c.h.b16 %v2581
        %v2900 = vunpack.c.l.b16 %v2582
        %v2901 = vunpack.c.h.b16 %v2582
        %v2902 = vunpack.c.l.b16 %v2583
        %v2903 = vunpack.c.h.b16 %v2583
        %v2904 = vunpack.c.l.b16 %v2584
        %v2905 = vunpack.c.h.b16 %v2584
        %v2906 = vunpack.c.l.b16 %v2585
        %v2907 = vunpack.c.h.b16 %v2585
        %v2908 = vunpack.c.l.b16 %v2586
        %v2909 = vunpack.c.h.b16 %v2586
        %v2910 = vunpack.c.l.b16 %v2587
        %v2911 = vunpack.c.h.b16 %v2587
        %v2912 = vunpack.c.l.b16 %v2588
        %v2913 = vunpack.c.h.b16 %v2588
        %v2914 = vunpack.c.l.b16 %v2589
        %v2915 = vunpack.c.h.b16 %v2589
        %v2916 = vunpack.c.l.b16 %v2590
        %v2917 = vunpack.c.h.b16 %v2590
        %v2918 = vunpack.c.l.b16 %v2591
        %v2919 = vunpack.c.h.b16 %v2591
        %v2920 = vunpack.c.l.b16 %v2592
        %v2921 = vunpack.c.h.b16 %v2592
        %v2922 = vunpack.c.l.b16 %v2593
        %v2923 = vunpack.c.h.b16 %v2593
        %v2924 = vunpack.c.l.b16 %v2594
        %v2925 = vunpack.c.h.b16 %v2594
        %v2926 = vunpack.c.l.b16 %v2595
        %v2927 = vunpack.c.h.b16 %v2595
        %v2928 = vunpack.c.l.b16 %v2596
        %v2929 = vunpack.c.h.b16 %v2596
        %v2930 = vunpack.c.l.b16 %v2597
        %v2931 = vunpack.c.h.b16 %v2597
        %v2932 = vunpack.c.l.b16 %v2598
        %v2933 = vunpack.c.h.b16 %v2598
        %v2934 = vunpack.c.l.b16 %v2599
        %v2935 = vunpack.c.h.b16 %v2599
        %v2936 = vunpack.c.l.b16 %v2600
        %v2937 = vunpack.c.h.b16 %v2600
        %v2938 = vunpack.c.l.b16 %v2601
        %v2939 = vunpack.c.h.b16 %v2601
        %v2940 = vunpack.c.l.b16 %v2602
        %v2941 = vunpack.c.h.b16 %v2602
        %v2942 = vunpack.c.l.b16 %v2603
        %v2943 = vunpack.c.h.b16 %v2603
        %v2944 = vunpack.c.l.b16 %v2604
        %v2945 = vunpack.c.h.b16 %v2604
        %v2946 = vunpack.c.l.b16 %v2605
        %v2947 = vunpack.c.h.b16 %v2605
        %v2948 = vunpack.c.l.b16 %v2606
        %v2949 = vunpack.c.h.b16 %v2606
        %v2950 = vunpack.c.l.b16 %v2607
        %v2951 = vunpack.c.h.b16 %v2607
        %v2952 = vunpack.c.l.b16 %v2608
        %v2953 = vunpack.c.h.b16 %v2608
        %v2954 = vunpack.c.l.b16 %v2609
        %v2955 = vunpack.c.h.b16 %v2609
        %v2956 = vunpack.c.l.b16 %v2610
        %v2957 = vunpack.c.h.b16 %v2610
        %v2958 = vunpack.c.l.b16 %v2611
        %v2959 = vunpack.c.h.b16 %v2611
        %v2960 = vunpack.c.l.b16 %v2612
        %v2961 = vunpack.c.h.b16 %v2612
        %v2962 = vunpack.c.l.b16 %v2613
        %v2963 = vunpack.c.h.b16 %v2613
        %v2964 = vunpack.c.l.b16 %v2614
        %v2965 = vunpack.c.h.b16 %v2614
        %v2966 = vunpack.c.l.b16 %v2615
        %v2967 = vunpack.c.h.b16 %v2615
        %v2968 = vunpack.c.l.b16 %v2616
        %v2969 = vunpack.c.h.b16 %v2616
        %v2970 = vunpack.c.l.b16 %v2617
        %v2971 = vunpack.c.h.b16 %v2617
        %v2972 = vunpack.c.l.b16 %v2618
        %v2973 = vunpack.c.h.b16 %v2618
        %v2974 = vunpack.c.l.b16 %v2619
        %v2975 = vunpack.c.h.b16 %v2619
        %v2976 = vunpack.c.l.b16 %v2620
        %v2977 = vunpack.c.h.b16 %v2620
        %v2978 = vunpack.c.l.b16 %v2621
        %v2979 = vunpack.c.h.b16 %v2621
        %v2980 = vunpack.c.l.b16 %v2622
        %v2981 = vunpack.c.h.b16 %v2622
        %v2982 = vunpack.c.l.b16 %v2623
        %v2983 = vunpack.c.h.b16 %v2623
        %v2984 = vunpack.c.l.b16 %v2624
        %v2985 = vunpack.c.h.b16 %v2624
        %v2986 = vunpack.c.l.b16 %v2625
        %v2987 = vunpack.c.h.b16 %v2625
        %v2988 = vunpack.c.l.b16 %v2626
        %v2989 = vunpack.c.h.b16 %v2626
        %v2990 = vunpack.c.l.b16 %v2627
        %v2991 = vunpack.c.h.b16 %v2627
        %v2992 = vunpack.c.l.b16 %v2628
        %v2993 = vunpack.c.h.b16 %v2628
        %v2994 = vunpack.c.l.b16 %v2629
        %v2995 = vunpack.c.h.b16 %v2629
        %v2996 = vunpack.c.l.b16 %v2630
        %v2997 = vunpack.c.h.b16 %v2630
        %v2998 = vunpack.c.l.b16 %v2631
        %v2999 = vunpack.c.h.b16 %v2631
        %v3000 = vunpack.c.l.b16 %v2632
        %v3001 = vunpack.c.h.b16 %v2632
        %v3002 = vunpack.c.l.b16 %v2633
        %v3003 = vunpack.c.h.b16 %v2633
        %v3004 = vunpack.c.l.b16 %v2634
        %v3005 = vunpack.c.h.b16 %v2634
        %v3006 = vunpack.c.l.b16 %v2635
        %v3007 = vunpack.c.h.b16 %v2635
        %v3008 = vunpack.c.l.b16 %v2636
        %v3009 = vunpack.c.h.b16 %v2636
        %v3010 = vunpack.c.l.b16 %v2637
        %v3011 = vunpack.c.h.b16 %v2637
        %v3012 = vunpack.c.l.b16 %v2638
        %v3013 = vunpack.c.h.b16 %v2638
        %v3014 = vunpack.c.l.b16 %v2639
        %v3015 = vunpack.c.h.b16 %v2639
        %v3016 = vunpack.c.l.b16 %v2640
        %v3017 = vunpack.c.h.b16 %v2640
        %v3018 = vunpack.c.l.b16 %v2641
        %v3019 = vunpack.c.h.b16 %v2641
        %v3020 = vunpack.c.l.b16 %v2642
        %v3021 = vunpack.c.h.b16 %v2642
        %v3022 = vunpack.c.l.b16 %v2643
        %v3023 = vunpack.c.h.b16 %v2643
        %v3024 = vunpack.c.l.b16 %v2644
        %v3025 = vunpack.c.h.b16 %v2644
        %v3026 = vunpack.c.l.b16 %v2645
        %v3027 = vunpack.c.h.b16 %v2645
        %v3028 = vunpack.c.l.b16 %v2646
        %v3029 = vunpack.c.h.b16 %v2646
        %v3030 = vunpack.c.l.b16 %v2647
        %v3031 = vunpack.c.h.b16 %v2647
        %v3032 = vunpack.c.l.b16 %v2648
        %v3033 = vunpack.c.h.b16 %v2648
        %v3034 = vunpack.c.l.b16 %v2649
        %v3035 = vunpack.c.h.b16 %v2649
        %v3036 = vunpack.c.l.b16 %v2650
        %v3037 = vunpack.c.h.b16 %v2650
        %v3038 = vunpack.c.l.b16 %v2651
        %v3039 = vunpack.c.h.b16 %v2651
        %v3040 = vunpack.c.l.b16 %v2652
        %v3041 = vunpack.c.h.b16 %v2652
        %v3042 = vunpack.c.l.b16 %v2653
        %v3043 = vunpack.c.h.b16 %v2653
        %v3044 = vunpack.c.l.b16 %v2654
        %v3045 = vunpack.c.h.b16 %v2654
        %v3046 = vunpack.c.l.b16 %v2655
        %v3047 = vunpack.c.h.b16 %v2655
        %v3048 = vunpack.c.l.b16 %v2656
        %v3049 = vunpack.c.h.b16 %v2656
        %v3050 = vunpack.c.l.b16 %v2657
        %v3051 = vunpack.c.h.b16 %v2657
        %v3052 = vunpack.c.l.b16 %v2658
        %v3053 = vunpack.c.h.b16 %v2658
        %v3054 = vunpack.c.l.b16 %v2659
        %v3055 = vunpack.c.h.b16 %v2659
        %v3056 = vunpack.c.l.b16 %v2660
        %v3057 = vunpack.c.h.b16 %v2660
        %v3058 = vunpack.c.l.b16 %v2661
        %v3059 = vunpack.c.h.b16 %v2661
        %v3060 = vunpack.c.l.b16 %v2662
        %v3061 = vunpack.c.h.b16 %v2662
        %v3062 = vunpack.c.l.b16 %v2663
        %v3063 = vunpack.c.h.b16 %v2663
        %v3064 = vunpack.c.l.b16 %v2664
        %v3065 = vunpack.c.h.b16 %v2664
        %v3066 = vunpack.c.l.b16 %v2665
        %v3067 = vunpack.c.h.b16 %v2665
        %v3068 = vunpack.c.l.b16 %v2666
        %v3069 = vunpack.c.h.b16 %v2666
        %v3070 = vunpack.c.l.b16 %v2667
        %v3071 = vunpack.c.h.b16 %v2667
        %v3072 = vunpack.c.l.b16 %v2668
        %v3073 = vunpack.c.h.b16 %v2668
        %v3074 = vunpack.c.l.b16 %v2669
        %v3075 = vunpack.c.h.b16 %v2669
        %v3076 = vunpack.c.l.b16 %v2670
        %v3077 = vunpack.c.h.b16 %v2670
        %v3078 = vunpack.c.l.b16 %v2671
        %v3079 = vunpack.c.h.b16 %v2671
        %v3080 = vunpack.c.l.b16 %v2672
        %v3081 = vunpack.c.h.b16 %v2672
        %v3082 = vunpack.c.l.b16 %v2673
        %v3083 = vunpack.c.h.b16 %v2673
        %v3084 = vunpack.c.l.b16 %v2674
        %v3085 = vunpack.c.h.b16 %v2674
        %v3086 = vunpack.c.l.b16 %v2675
        %v3087 = vunpack.c.h.b16 %v2675
        %v3088 = vunpack.c.l.b16 %v2676
        %v3089 = vunpack.c.h.b16 %v2676
        %v3090 = vunpack.c.l.b16 %v2677
        %v3091 = vunpack.c.h.b16 %v2677
        %v3092 = vunpack.c.l.b16 %v2678
        %v3093 = vunpack.c.h.b16 %v2678
        %v3094 = vunpack.c.l.b16 %v2679
        %v3095 = vunpack.c.h.b16 %v2679
        %v3096 = vunpack.c.l.b16 %v2680
        %v3097 = vunpack.c.h.b16 %v2680
        %v3098 = vunpack.c.l.b16 %v2681
        %v3099 = vunpack.c.h.b16 %v2681
        %v3100 = vunpack.c.l.b16 %v2682
        %v3101 = vunpack.c.h.b16 %v2682
        %v3102 = vunpack.c.l.b16 %v2683
        %v3103 = vunpack.c.h.b16 %v2683
        %v3104 = vunpack.c.l.b16 %v2684
        %v3105 = vunpack.c.h.b16 %v2684
        %v3106 = vunpack.c.l.b16 %v2685
        %v3107 = vunpack.c.h.b16 %v2685
        %v3108 = vunpack.c.l.b16 %v2686
        %v3109 = vunpack.c.h.b16 %v2686
        %v3110 = vunpack.c.l.b16 %v2687
        %v3111 = vunpack.c.h.b16 %v2687
        %v3112 = vpack.c.b16 %v2860, %v2856
        %v3113 = vpack.c.b16 %v2861, %v2857
        %v3114 = vpack.c.b16 %v2862, %v2858
        %v3115 = vpack.c.b16 %v2863, %v2859
        %v3116 = vpack.c.b16 %v2868, %v2864
        %v3117 = vpack.c.b16 %v2869, %v2865
        %v3118 = vpack.c.b16 %v2870, %v2866
        %v3119 = vpack.c.b16 %v2871, %v2867
        %v3120 = vpack.c.b16 %v2876, %v2872
        %v3121 = vpack.c.b16 %v2877, %v2873
        %v3122 = vpack.c.b16 %v2878, %v2874
        %v3123 = vpack.c.b16 %v2879, %v2875
        %v3124 = vpack.c.b16 %v2884, %v2880
        %v3125 = vpack.c.b16 %v2885, %v2881
        %v3126 = vpack.c.b16 %v2886, %v2882
        %v3127 = vpack.c.b16 %v2887, %v2883
        %v3128 = vpack.c.b16 %v2892, %v2888
        %v3129 = vpack.c.b16 %v2893, %v2889
        %v3130 = vpack.c.b16 %v2894, %v2890
        %v3131 = vpack.c.b16 %v2895, %v2891
        %v3132 = vpack.c.b16 %v2900, %v2896
        %v3133 = vpack.c.b16 %v2901, %v2897
        %v3134 = vpack.c.b16 %v2902, %v2898
        %v3135 = vpack.c.b16 %v2903, %v2899
        %v3136 = vpack.c.b16 %v2908, %v2904
        %v3137 = vpack.c.b16 %v2909, %v2905
        %v3138 = vpack.c.b16 %v2910, %v2906
        %v3139 = vpack.c.b16 %v2911, %v2907
        %v3140 = vpack.c.b16 %v2916, %v2912
        %v3141 = vpack.c.b16 %v2917, %v2913
        %v3142 = vpack.c.b16 %v2918, %v2914
        %v3143 = vpack.c.b16 %v2919, %v2915
        %v3144 = vpack.c.b16 %v2924, %v2920
        %v3145 = vpack.c.b16 %v2925, %v2921
        %v3146 = vpack.c.b16 %v2926, %v2922
        %v3147 = vpack.c.b16 %v2927, %v2923
        %v3148 = vpack.c.b16 %v2932, %v2928
        %v3149 = vpack.c.b16 %v2933, %v2929
        %v3150 = vpack.c.b16 %v2934, %v2930
        %v3151 = vpack.c.b16 %v2935, %v2931
        %v3152 = vpack.c.b16 %v2940, %v2936
        %v3153 = vpack.c.b16 %v2941, %v2937
        %v3154 = vpack.c.b16 %v2942, %v2938
        %v3155 = vpack.c.b16 %v2943, %v2939
        %v3156 = vpack.c.b16 %v2948, %v2944
        %v3157 = vpack.c.b16 %v2949, %v2945
        %v3158 = vpack.c.b16 %v2950, %v2946
        %v3159 = vpack.c.b16 %v2951, %v2947
        %v3160 = vpack.c.b16 %v2956, %v2952
        %v3161 = vpack.c.b16 %v2957, %v2953
        %v3162 = vpack.c.b16 %v2958, %v2954
        %v3163 = vpack.c.b16 %v2959, %v2955
        %v3164 = vpack.c.b16 %v2964, %v2960
        %v3165 = vpack.c.b16 %v2965, %v2961
        %v3166 = vpack.c.b16 %v2966, %v2962
        %v3167 = vpack.c.b16 %v2967, %v2963
        %v3168 = vpack.c.b16 %v2972, %v2968
        %v3169 = vpack.c.b16 %v2973, %v2969
        %v3170 = vpack.c.b16 %v2974, %v2970
        %v3171 = vpack.c.b16 %v2975, %v2971
        %v3172 = vpack.c.b16 %v2980, %v2976
        %v3173 = vpack.c.b16 %v2981, %v2977
        %v3174 = vpack.c.b16 %v2982, %v2978
        %v3175 = vpack.c.b16 %v2983, %v2979
        %v3176 = vpack.c.b16 %v2988, %v2984
        %v3177 = vpack.c.b16 %v2989, %v2985
        %v3178 = vpack.c.b16 %v2990, %v2986
        %v3179 = vpack.c.b16 %v2991, %v2987
        %v3180 = vpack.c.b16 %v2996, %v2992
        %v3181 = vpack.c.b16 %v2997, %v2993
        %v3182 = vpack.c.b16 %v2998, %v2994
        %v3183 = vpack.c.b16 %v2999, %v2995
        %v3184 = vpack.c.b16 %v3004, %v3000
        %v3185 = vpack.c.b16 %v3005, %v3001
        %v3186 = vpack.c.b16 %v3006, %v3002
        %v3187 = vpack.c.b16 %v3007, %v3003
        %v3188 = vpack.c.b16 %v3012, %v3008
        %v3189 = vpack.c.b16 %v3013, %v3009
        %v3190 = vpack.c.b16 %v3014, %v3010
        %v3191 = vpack.c.b16 %v3015, %v3011
        %v3192 = vpack.c.b16 %v3020, %v3016
        %v3193 = vpack.c.b16 %v3021, %v3017
        %v3194 = vpack.c.b16 %v3022, %v3018
        %v3195 = vpack.c.b16 %v3023, %v3019
        %v3196 = vpack.c.b16 %v3028, %v3024
        %v3197 = vpack.c.b16 %v3029, %v3025
        %v3198 = vpack.c.b16 %v3030, %v3026
        %v3199 = vpack.c.b16 %v3031, %v3027
        %v3200 = vpack.c.b16 %v3036, %v3032
        %v3201 = vpack.c.b16 %v3037, %v3033
        %v3202 = vpack.c.b16 %v3038, %v3034
        %v3203 = vpack.c.b16 %v3039, %v3035
        %v3204 = vpack.c.b16 %v3044, %v3040
        %v3205 = vpack.c.b16 %v3045, %v3041
        %v3206 = vpack.c.b16 %v3046, %v3042
        %v3207 = vpack.c.b16 %v3047, %v3043
        %v3208 = vpack.c.b16 %v3052, %v3048
        %v3209 = vpack.c.b16 %v3053, %v3049
        %v3210 = vpack.c.b16 %v3054, %v3050
        %v3211 = vpack.c.b16 %v3055, %v3051
        %v3212 = vpack.c.b16 %v3060, %v3056
        %v3213 = vpack.c.b16 %v3061, %v3057
        %v3214 = vpack.c.b16 %v3062, %v3058
        %v3215 = vpack.c.b16 %v3063, %v3059
        %v3216 = vpack.c.b16 %v3068, %v3064
        %v3217 = vpack.c.b16 %v3069, %v3065
        %v3218 = vpack.c.b16 %v3070, %v3066
        %v3219 = vpack.c.b16 %v3071, %v3067
        %v3220 = vpack.c.b16 %v3076, %v3072
        %v3221 = vpack.c.b16 %v3077, %v3073
        %v3222 = vpack.c.b16 %v3078, %v3074
        %v3223 = vpack.c.b16 %v3079, %v3075
        %v3224 = vpack.c.b16 %v3084, %v3080
        %v3225 = vpack.c.b16 %v3085, %v3081
        %v3226 = vpack.c.b16 %v3086, %v3082
        %v3227 = vpack.c.b16 %v3087, %v3083
        %v3228 = vpack.c.b16 %v3092, %v3088
        %v3229 = vpack.c.b16 %v3093, %v3089
        %v3230 = vpack.c.b16 %v3094, %v3090
        %v3231 = vpack.c.b16 %v3095, %v3091
        %v3232 = vpack.c.b16 %v3100, %v3096
        %v3233 = vpack.c.b16 %v3101, %v3097
        %v3234 = vpack.c.b16 %v3102, %v3098
        %v3235 = vpack.c.b16 %v3103, %v3099
        %v3236 = vpack.c.b16 %v3108, %v3104
        %v3237 = vpack.c.b16 %v3109, %v3105
        %v3238 = vpack.c.b16 %v3110, %v3106
        %v3239 = vpack.c.b16 %v3111, %v3107
        %3368 = vmatprep.subr.bf16.mxu0 %v3113
        %3369 = vmatpush1.bf16.msra.mxu0 %v3112
        %3370 = vmatprep.subr.bf16.mxu0 %v3117
        %3371 = vmatpush1.bf16.msra.mxu0 %v3116
        %3372 = vmatprep.subr.bf16.mxu0 %v3121
        %3373 = vmatpush1.bf16.msra.mxu0 %v3120
        %3374 = vmatprep.subr.bf16.mxu0 %v3125
        %3375 = vmatpush1.bf16.msra.mxu0 %v3124
        %3376 = vmatprep.subr.bf16.mxu0 %v3129
        %3377 = vmatpush1.bf16.msra.mxu0 %v3128
        %3378 = vmatprep.subr.bf16.mxu0 %v3133
        %3379 = vmatpush1.bf16.msra.mxu0 %v3132
        %3380 = vmatprep.subr.bf16.mxu0 %v3137
        %3381 = vmatpush1.bf16.msra.mxu0 %v3136
        %3382 = vmatprep.subr.bf16.mxu0 %v3141
        %3383 = vmatpush1.bf16.msra.mxu0 %v3140
        %3384 = vmatprep.subr.bf16.mxu0 %v3145
        %3385 = vmatpush1.bf16.msra.mxu0 %v3144
        %3386 = vmatprep.subr.bf16.mxu0 %v3149
        %3387 = vmatpush1.bf16.msra.mxu0 %v3148
        %3388 = vmatprep.subr.bf16.mxu0 %v3153
        %3389 = vmatpush1.bf16.msra.mxu0 %v3152
        %3390 = vmatprep.subr.bf16.mxu0 %v3157
        %3391 = vmatpush1.bf16.msra.mxu0 %v3156
        %3392 = vmatprep.subr.bf16.mxu0 %v3161
        %3393 = vmatpush1.bf16.msra.mxu0 %v3160
        %3394 = vmatprep.subr.bf16.mxu0 %v3165
        %3395 = vmatpush1.bf16.msra.mxu0 %v3164
        %3396 = vmatprep.subr.bf16.mxu0 %v3169
        %3397 = vmatpush1.bf16.msra.mxu0 %v3168
        %3398 = vmatprep.subr.bf16.mxu0 %v3173
        %3399 = vmatpush1.bf16.msra.mxu0 %v3172
        %3400 = vmatprep.mubr.bf16.mxu0 %v2556
        %3401 = vmatmul.mubr.bf16.gmra.mrb[0].mxu0 %v2555
        %v3402 = vpop.f32.mrb[0].mxu0
        %v3403 = vadd.f32 %v2715, %v3402
        %v3404 = vpop.f32.mrb[0].mxu0
        %v3405 = vadd.f32 %v2719, %v3404
        %v3406 = vpop.f32.mrb[0].mxu0
        %v3407 = vpop.f32.mrb[0].mxu0
        %3408 = vdwg.mxu0
        %3409 = vmatprep.subr.bf16.mxu0 %v3177
        %3410 = vmatpush1.bf16.msra.mxu0 %v3176
        %3411 = vmatprep.subr.bf16.mxu0 %v3181
        %3412 = vmatpush1.bf16.msra.mxu0 %v3180
        %3413 = vmatprep.subr.bf16.mxu0 %v3185
        %3414 = vmatpush1.bf16.msra.mxu0 %v3184
        %3415 = vmatprep.subr.bf16.mxu0 %v3189
        %3416 = vmatpush1.bf16.msra.mxu0 %v3188
        %3417 = vmatprep.subr.bf16.mxu0 %v3193
        %3418 = vmatpush1.bf16.msra.mxu0 %v3192
        %3419 = vmatprep.subr.bf16.mxu0 %v3197
        %3420 = vmatpush1.bf16.msra.mxu0 %v3196
        %3421 = vmatprep.subr.bf16.mxu0 %v3201
        %3422 = vmatpush1.bf16.msra.mxu0 %v3200
        %3423 = vmatprep.subr.bf16.mxu0 %v3205
        %3424 = vmatpush1.bf16.msra.mxu0 %v3204
        %3425 = vmatprep.subr.bf16.mxu0 %v3209
        %3426 = vmatpush1.bf16.msra.mxu0 %v3208
        %3427 = vmatprep.subr.bf16.mxu0 %v3213
        %3428 = vmatpush1.bf16.msra.mxu0 %v3212
        %3429 = vmatprep.subr.bf16.mxu0 %v3217
        %3430 = vmatpush1.bf16.msra.mxu0 %v3216
        %3431 = vmatprep.subr.bf16.mxu0 %v3221
        %3432 = vmatpush1.bf16.msra.mxu0 %v3220
        %3433 = vmatprep.subr.bf16.mxu0 %v3225
        %3434 = vmatpush1.bf16.msra.mxu0 %v3224
        %3435 = vmatprep.subr.bf16.mxu0 %v3229
        %3436 = vmatpush1.bf16.msra.mxu0 %v3228
        %3437 = vmatprep.subr.bf16.mxu0 %v3233
        %3438 = vmatpush1.bf16.msra.mxu0 %v3232
        %3439 = vmatprep.subr.bf16.mxu0 %v3237
        %3440 = vmatpush1.bf16.msra.mxu0 %v3236
        %3441 = vmatprep.mubr.bf16.mxu0 %v2558
        %3442 = vmatmul.mubr.bf16.gmra.mrb[0].mxu0 %v2557
        %v3443 = vpop.f32.mrb[0].mxu0
        %v3444 = vadd.f32 %v3403, %v3443
        %v3445 = vpop.f32.mrb[0].mxu0
        %v3446 = vadd.f32 %v3405, %v3445
        %v3447 = vpop.f32.mrb[0].mxu0
        %v3448 = vpop.f32.mrb[0].mxu0
        %3449 = vdwg.mxu0
        %3450 = vmatprep.subr.bf16.mxu0 %v3115
        %3451 = vmatpush1.bf16.msra.mxu0 %v3114
        %3452 = vmatprep.subr.bf16.mxu0 %v3119
        %3453 = vmatpush1.bf16.msra.mxu0 %v3118
        %3454 = vmatprep.subr.bf16.mxu0 %v3123
        %3455 = vmatpush1.bf16.msra.mxu0 %v3122
        %3456 = vmatprep.subr.bf16.mxu0 %v3127
        %3457 = vmatpush1.bf16.msra.mxu0 %v3126
        %3458 = vmatprep.subr.bf16.mxu0 %v3131
        %3459 = vmatpush1.bf16.msra.mxu0 %v3130
        %3460 = vmatprep.subr.bf16.mxu0 %v3135
        %3461 = vmatpush1.bf16.msra.mxu0 %v3134
        %3462 = vmatprep.subr.bf16.mxu0 %v3139
        %3463 = vmatpush1.bf16.msra.mxu0 %v3138
        %3464 = vmatprep.subr.bf16.mxu0 %v3143
        %3465 = vmatpush1.bf16.msra.mxu0 %v3142
        %3466 = vmatprep.subr.bf16.mxu0 %v3147
        %3467 = vmatpush1.bf16.msra.mxu0 %v3146
        %3468 = vmatprep.subr.bf16.mxu0 %v3151
        %3469 = vmatpush1.bf16.msra.mxu0 %v3150
        %3470 = vmatprep.subr.bf16.mxu0 %v3155
        %3471 = vmatpush1.bf16.msra.mxu0 %v3154
        %3472 = vmatprep.subr.bf16.mxu0 %v3159
        %3473 = vmatpush1.bf16.msra.mxu0 %v3158
        %3474 = vmatprep.subr.bf16.mxu0 %v3163
        %3475 = vmatpush1.bf16.msra.mxu0 %v3162
        %3476 = vmatprep.subr.bf16.mxu0 %v3167
        %3477 = vmatpush1.bf16.msra.mxu0 %v3166
        %3478 = vmatprep.subr.bf16.mxu0 %v3171
        %3479 = vmatpush1.bf16.msra.mxu0 %v3170
        %3480 = vmatprep.subr.bf16.mxu0 %v3175
        %3481 = vmatpush1.bf16.msra.mxu0 %v3174
        %3482 = vmatprep.mubr.bf16.mxu0 %v2556
        %3483 = vmatmul.mubr.bf16.gmra.mrb[0].mxu0 %v2555
        %v3484 = vpop.f32.mrb[0].mxu0
        %v3485 = vadd.f32 %v2723, %v3484
        %v3486 = vpop.f32.mrb[0].mxu0
        %v3487 = vadd.f32 %v2727, %v3486
        %v3488 = vpop.f32.mrb[0].mxu0
        %v3489 = vpop.f32.mrb[0].mxu0
        %3490 = vdwg.mxu0
        %3491 = vmatprep.subr.bf16.mxu0 %v3179
        %3492 = vmatpush1.bf16.msra.mxu0 %v3178
        %3493 = vmatprep.subr.bf16.mxu0 %v3183
        %3494 = vmatpush1.bf16.msra.mxu0 %v3182
        %3495 = vmatprep.subr.bf16.mxu0 %v3187
        %3496 = vmatpush1.bf16.msra.mxu0 %v3186
        %3497 = vmatprep.subr.bf16.mxu0 %v3191
        %3498 = vmatpush1.bf16.msra.mxu0 %v3190
        %3499 = vmatprep.subr.bf16.mxu0 %v3195
        %3500 = vmatpush1.bf16.msra.mxu0 %v3194
        %3501 = vmatprep.subr.bf16.mxu0 %v3199
        %3502 = vmatpush1.bf16.msra.mxu0 %v3198
        %3503 = vmatprep.subr.bf16.mxu0 %v3203
        %3504 = vmatpush1.bf16.msra.mxu0 %v3202
        %3505 = vmatprep.subr.bf16.mxu0 %v3207
        %3506 = vmatpush1.bf16.msra.mxu0 %v3206
        %3507 = vmatprep.subr.bf16.mxu0 %v3211
        %3508 = vmatpush1.bf16.msra.mxu0 %v3210
        %3509 = vmatprep.subr.bf16.mxu0 %v3215
        %3510 = vmatpush1.bf16.msra.mxu0 %v3214
        %3511 = vmatprep.subr.bf16.mxu0 %v3219
        %3512 = vmatpush1.bf16.msra.mxu0 %v3218
        %3513 = vmatprep.subr.bf16.mxu0 %v3223
        %3514 = vmatpush1.bf16.msra.mxu0 %v3222
        %3515 = vmatprep.subr.bf16.mxu0 %v3227
        %3516 = vmatpush1.bf16.msra.mxu0 %v3226
        %3517 = vmatprep.subr.bf16.mxu0 %v3231
        %3518 = vmatpush1.bf16.msra.mxu0 %v3230
        %3519 = vmatprep.subr.bf16.mxu0 %v3235
        %3520 = vmatpush1.bf16.msra.mxu0 %v3234
        %3521 = vmatprep.subr.bf16.mxu0 %v3239
        %3522 = vmatpush1.bf16.msra.mxu0 %v3238
        %3523 = vmatprep.mubr.bf16.mxu0 %v2558
        %3524 = vmatmul.mubr.bf16.gmra.mrb[0].mxu0 %v2557
        %v3525 = vpop.f32.mrb[0].mxu0
        %v3526 = vadd.f32 %v3485, %v3525
        %v3527 = vpop.f32.mrb[0].mxu0
        %v3528 = vadd.f32 %v3487, %v3527
        %v3529 = vpop.f32.mrb[0].mxu0
        %v3530 = vpop.f32.mrb[0].mxu0
        %3531 = vdwg.mxu0
        %v3532 = vmax.f32 %v3444, 0.0
        %v3533 = vmax.f32 %v3446, 0.0
        %v3534 = vmax.f32 %v3526, 0.0
        %v3535 = vmax.f32 %v3528, 0.0
        %v3536 = vpack.c.bf16 %v3532, %v3532
        %v3537 = vpack.c.bf16 %v3533, %v3533
        %v3538 = vpack.c.bf16 %v3534, %v3534
        %v3539 = vpack.c.bf16 %v3535, %v3535
        %v3540 = vld [vmem:[%s411] sm:$0xf]
        %v3541 = vld [vmem:[%s411 + $0x4] sm:$0xf]
        %v3542 = vld [vmem:[%s411 + $0x8] sm:$0xf]
        %v3543 = vld [vmem:[%s411 + $0xc] sm:$0xf]
        %v3544 = vld [vmem:[%s411 + $0x10] sm:$0xf]
        %v3545 = vld [vmem:[%s411 + $0x14] sm:$0xf]
        %v3546 = vld [vmem:[%s411 + $0x18] sm:$0xf]
        %v3547 = vld [vmem:[%s411 + $0x1c] sm:$0xf]
        %v3548 = vld [vmem:[%s411 + $0x20] sm:$0xf]
        %v3549 = vld [vmem:[%s411 + $0x24] sm:$0xf]
        %v3550 = vld [vmem:[%s411 + $0x28] sm:$0xf]
        %v3551 = vld [vmem:[%s411 + $0x2c] sm:$0xf]
        %v3552 = vld [vmem:[%s411 + $0x30] sm:$0xf]
        %v3553 = vld [vmem:[%s411 + $0x34] sm:$0xf]
        %v3554 = vld [vmem:[%s411 + $0x38] sm:$0xf]
        %v3555 = vld [vmem:[%s411 + $0x3c] sm:$0xf]
        %v3556 = vld [vmem:[%s411 + $0x40] sm:$0xf]
        %v3557 = vld [vmem:[%s411 + $0x44] sm:$0xf]
        %v3558 = vld [vmem:[%s411 + $0x48] sm:$0xf]
        %v3559 = vld [vmem:[%s411 + $0x4c] sm:$0xf]
        %v3560 = vld [vmem:[%s411 + $0x50] sm:$0xf]
        %v3561 = vld [vmem:[%s411 + $0x54] sm:$0xf]
        %v3562 = vld [vmem:[%s411 + $0x58] sm:$0xf]
        %v3563 = vld [vmem:[%s411 + $0x5c] sm:$0xf]
        %v3564 = vld [vmem:[%s411 + $0x60] sm:$0xf]
        %v3565 = vld [vmem:[%s411 + $0x64] sm:$0xf]
        %v3566 = vld [vmem:[%s411 + $0x68] sm:$0xf]
        %v3567 = vld [vmem:[%s411 + $0x6c] sm:$0xf]
        %v3568 = vld [vmem:[%s411 + $0x70] sm:$0xf]
        %v3569 = vld [vmem:[%s411 + $0x74] sm:$0xf]
        %v3570 = vld [vmem:[%s411 + $0x78] sm:$0xf]
        %v3571 = vld [vmem:[%s411 + $0x7c] sm:$0xf]
        %v3572 = vld [vmem:[%s411 + $0x80] sm:$0xf]
        %v3573 = vld [vmem:[%s411 + $0x84] sm:$0xf]
        %v3574 = vld [vmem:[%s411 + $0x88] sm:$0xf]
        %v3575 = vld [vmem:[%s411 + $0x8c] sm:$0xf]
        %v3576 = vld [vmem:[%s411 + $0x90] sm:$0xf]
        %v3577 = vld [vmem:[%s411 + $0x94] sm:$0xf]
        %v3578 = vld [vmem:[%s411 + $0x98] sm:$0xf]
        %v3579 = vld [vmem:[%s411 + $0x9c] sm:$0xf]
        %v3580 = vld [vmem:[%s411 + $0xa0] sm:$0xf]
        %v3581 = vld [vmem:[%s411 + $0xa4] sm:$0xf]
        %v3582 = vld [vmem:[%s411 + $0xa8] sm:$0xf]
        %v3583 = vld [vmem:[%s411 + $0xac] sm:$0xf]
        %v3584 = vld [vmem:[%s411 + $0xb0] sm:$0xf]
        %v3585 = vld [vmem:[%s411 + $0xb4] sm:$0xf]
        %v3586 = vld [vmem:[%s411 + $0xb8] sm:$0xf]
        %v3587 = vld [vmem:[%s411 + $0xbc] sm:$0xf]
        %v3588 = vld [vmem:[%s411 + $0xc0] sm:$0xf]
        %v3589 = vld [vmem:[%s411 + $0xc4] sm:$0xf]
        %v3590 = vld [vmem:[%s411 + $0xc8] sm:$0xf]
        %v3591 = vld [vmem:[%s411 + $0xcc] sm:$0xf]
        %v3592 = vld [vmem:[%s411 + $0xd0] sm:$0xf]
        %v3593 = vld [vmem:[%s411 + $0xd4] sm:$0xf]
        %v3594 = vld [vmem:[%s411 + $0xd8] sm:$0xf]
        %v3595 = vld [vmem:[%s411 + $0xdc] sm:$0xf]
        %v3596 = vld [vmem:[%s411 + $0xe0] sm:$0xf]
        %v3597 = vld [vmem:[%s411 + $0xe4] sm:$0xf]
        %v3598 = vld [vmem:[%s411 + $0xe8] sm:$0xf]
        %v3599 = vld [vmem:[%s411 + $0xec] sm:$0xf]
        %v3600 = vld [vmem:[%s411 + $0xf0] sm:$0xf]
        %v3601 = vld [vmem:[%s411 + $0xf4] sm:$0xf]
        %v3602 = vld [vmem:[%s411 + $0xf8] sm:$0xf]
        %v3603 = vld [vmem:[%s411 + $0xfc] sm:$0xf]
        %v3604 = vld [vmem:[%s414] sm:$0x1]
        %v3605 = vunpack.c.l.bf16 %v3604
        %v3606 = vlaneseq
        %v3607 = vshrl.u32 %v3606, 7
        %v3608 = vsub.s32 0, %v3607
        %v3609 = vrot.slane %v3605, %v3608
        %v3674 = vunpack.c.l.b16 %v3540
        %v3675 = vunpack.c.l.b16 %v3541
        %v3676 = vunpack.c.l.b16 %v3542
        %v3677 = vunpack.c.l.b16 %v3543
        %v3678 = vunpack.c.l.b16 %v3544
        %v3679 = vunpack.c.l.b16 %v3545
        %v3680 = vunpack.c.l.b16 %v3546
        %v3681 = vunpack.c.l.b16 %v3547
        %v3682 = vunpack.c.l.b16 %v3548
        %v3683 = vunpack.c.l.b16 %v3549
        %v3684 = vunpack.c.l.b16 %v3550
        %v3685 = vunpack.c.l.b16 %v3551
        %v3686 = vunpack.c.l.b16 %v3552
        %v3687 = vunpack.c.l.b16 %v3553
        %v3688 = vunpack.c.l.b16 %v3554
        %v3689 = vunpack.c.l.b16 %v3555
        %v3690 = vunpack.c.l.b16 %v3556
        %v3691 = vunpack.c.l.b16 %v3557
        %v3692 = vunpack.c.l.b16 %v3558
        %v3693 = vunpack.c.l.b16 %v3559
        %v3694 = vunpack.c.l.b16 %v3560
        %v3695 = vunpack.c.l.b16 %v3561
        %v3696 = vunpack.c.l.b16 %v3562
        %v3697 = vunpack.c.l.b16 %v3563
        %v3698 = vunpack.c.l.b16 %v3564
        %v3699 = vunpack.c.l.b16 %v3565
        %v3700 = vunpack.c.l.b16 %v3566
        %v3701 = vunpack.c.l.b16 %v3567
        %v3702 = vunpack.c.l.b16 %v3568
        %v3703 = vunpack.c.l.b16 %v3569
        %v3704 = vunpack.c.l.b16 %v3570
        %v3705 = vunpack.c.l.b16 %v3571
        %v3706 = vunpack.c.l.b16 %v3572
        %v3707 = vunpack.c.l.b16 %v3573
        %v3708 = vunpack.c.l.b16 %v3574
        %v3709 = vunpack.c.l.b16 %v3575
        %v3710 = vunpack.c.l.b16 %v3576
        %v3711 = vunpack.c.l.b16 %v3577
        %v3712 = vunpack.c.l.b16 %v3578
        %v3713 = vunpack.c.l.b16 %v3579
        %v3714 = vunpack.c.l.b16 %v3580
        %v3715 = vunpack.c.l.b16 %v3581
        %v3716 = vunpack.c.l.b16 %v3582
        %v3717 = vunpack.c.l.b16 %v3583
        %v3718 = vunpack.c.l.b16 %v3584
        %v3719 = vunpack.c.l.b16 %v3585
        %v3720 = vunpack.c.l.b16 %v3586
        %v3721 = vunpack.c.l.b16 %v3587
        %v3722 = vunpack.c.l.b16 %v3588
        %v3723 = vunpack.c.l.b16 %v3589
        %v3724 = vunpack.c.l.b16 %v3590
        %v3725 = vunpack.c.l.b16 %v3591
        %v3726 = vunpack.c.l.b16 %v3592
        %v3727 = vunpack.c.l.b16 %v3593
        %v3728 = vunpack.c.l.b16 %v3594
        %v3729 = vunpack.c.l.b16 %v3595
        %v3730 = vunpack.c.l.b16 %v3596
        %v3731 = vunpack.c.l.b16 %v3597
        %v3732 = vunpack.c.l.b16 %v3598
        %v3733 = vunpack.c.l.b16 %v3599
        %v3734 = vunpack.c.l.b16 %v3600
        %v3735 = vunpack.c.l.b16 %v3601
        %v3736 = vunpack.c.l.b16 %v3602
        %v3737 = vunpack.c.l.b16 %v3603
        %v3738 = vpack.c.b16 %v3675, %v3674
        %v3739 = vpack.c.b16 %v3677, %v3676
        %v3740 = vpack.c.b16 %v3679, %v3678
        %v3741 = vpack.c.b16 %v3681, %v3680
        %v3742 = vpack.c.b16 %v3683, %v3682
        %v3743 = vpack.c.b16 %v3685, %v3684
        %v3744 = vpack.c.b16 %v3687, %v3686
        %v3745 = vpack.c.b16 %v3689, %v3688
        %v3746 = vpack.c.b16 %v3691, %v3690
        %v3747 = vpack.c.b16 %v3693, %v3692
        %v3748 = vpack.c.b16 %v3695, %v3694
        %v3749 = vpack.c.b16 %v3697, %v3696
        %v3750 = vpack.c.b16 %v3699, %v3698
        %v3751 = vpack.c.b16 %v3701, %v3700
        %v3752 = vpack.c.b16 %v3703, %v3702
        %v3753 = vpack.c.b16 %v3705, %v3704
        %v3754 = vpack.c.b16 %v3707, %v3706
        %v3755 = vpack.c.b16 %v3709, %v3708
        %v3756 = vpack.c.b16 %v3711, %v3710
        %v3757 = vpack.c.b16 %v3713, %v3712
        %v3758 = vpack.c.b16 %v3715, %v3714
        %v3759 = vpack.c.b16 %v3717, %v3716
        %v3760 = vpack.c.b16 %v3719, %v3718
        %v3761 = vpack.c.b16 %v3721, %v3720
        %v3762 = vpack.c.b16 %v3723, %v3722
        %v3763 = vpack.c.b16 %v3725, %v3724
        %v3764 = vpack.c.b16 %v3727, %v3726
        %v3765 = vpack.c.b16 %v3729, %v3728
        %v3766 = vpack.c.b16 %v3731, %v3730
        %v3767 = vpack.c.b16 %v3733, %v3732
        %v3768 = vpack.c.b16 %v3735, %v3734
        %v3769 = vpack.c.b16 %v3737, %v3736
        %3802 = vmatprep.subr.bf16.mxu0 0
        %3803 = vmatpush1.bf16.msra.mxu0 %v3738
        %3804 = vmatprep.subr.bf16.mxu0 0
        %3805 = vmatpush1.bf16.msra.mxu0 %v3739
        %3806 = vmatprep.subr.bf16.mxu0 0
        %3807 = vmatpush1.bf16.msra.mxu0 %v3740
        %3808 = vmatprep.subr.bf16.mxu0 0
        %3809 = vmatpush1.bf16.msra.mxu0 %v3741
        %3810 = vmatprep.subr.bf16.mxu0 0
        %3811 = vmatpush1.bf16.msra.mxu0 %v3742
        %3812 = vmatprep.subr.bf16.mxu0 0
        %3813 = vmatpush1.bf16.msra.mxu0 %v3743
        %3814 = vmatprep.subr.bf16.mxu0 0
        %3815 = vmatpush1.bf16.msra.mxu0 %v3744
        %3816 = vmatprep.subr.bf16.mxu0 0
        %3817 = vmatpush1.bf16.msra.mxu0 %v3745
        %3818 = vmatprep.subr.bf16.mxu0 0
        %3819 = vmatpush1.bf16.msra.mxu0 %v3746
        %3820 = vmatprep.subr.bf16.mxu0 0
        %3821 = vmatpush1.bf16.msra.mxu0 %v3747
        %3822 = vmatprep.subr.bf16.mxu0 0
        %3823 = vmatpush1.bf16.msra.mxu0 %v3748
        %3824 = vmatprep.subr.bf16.mxu0 0
        %3825 = vmatpush1.bf16.msra.mxu0 %v3749
        %3826 = vmatprep.subr.bf16.mxu0 0
        %3827 = vmatpush1.bf16.msra.mxu0 %v3750
        %3828 = vmatprep.subr.bf16.mxu0 0
        %3829 = vmatpush1.bf16.msra.mxu0 %v3751
        %3830 = vmatprep.subr.bf16.mxu0 0
        %3831 = vmatpush1.bf16.msra.mxu0 %v3752
        %3832 = vmatprep.subr.bf16.mxu0 0
        %3833 = vmatpush1.bf16.msra.mxu0 %v3753
        %3834 = vmatprep.mubr.bf16.mxu0 %v3537
        %3835 = vmatmul.mubr.bf16.gmra.mrb[0].mxu0 %v3536
        %v3836 = vpop.f32.mrb[0].mxu0
        %v3837 = vadd.f32 %v3609, %v3836
        %v3838 = vpop.f32.mrb[0].mxu0
        %v3839 = vpop.f32.mrb[0].mxu0
        %v3840 = vpop.f32.mrb[0].mxu0
        %3841 = vdwg.mxu0
        %3842 = vmatprep.subr.bf16.mxu0 0
        %3843 = vmatpush1.bf16.msra.mxu0 %v3754
        %3844 = vmatprep.subr.bf16.mxu0 0
        %3845 = vmatpush1.bf16.msra.mxu0 %v3755
        %3846 = vmatprep.subr.bf16.mxu0 0
        %3847 = vmatpush1.bf16.msra.mxu0 %v3756
        %3848 = vmatprep.subr.bf16.mxu0 0
        %3849 = vmatpush1.bf16.msra.mxu0 %v3757
        %3850 = vmatprep.subr.bf16.mxu0 0
        %3851 = vmatpush1.bf16.msra.mxu0 %v3758
        %3852 = vmatprep.subr.bf16.mxu0 0
        %3853 = vmatpush1.bf16.msra.mxu0 %v3759
        %3854 = vmatprep.subr.bf16.mxu0 0
        %3855 = vmatpush1.bf16.msra.mxu0 %v3760
        %3856 = vmatprep.subr.bf16.mxu0 0
        %3857 = vmatpush1.bf16.msra.mxu0 %v3761
        %3858 = vmatprep.subr.bf16.mxu0 0
        %3859 = vmatpush1.bf16.msra.mxu0 %v3762
        %3860 = vmatprep.subr.bf16.mxu0 0
        %3861 = vmatpush1.bf16.msra.mxu0 %v3763
        %3862 = vmatprep.subr.bf16.mxu0 0
        %3863 = vmatpush1.bf16.msra.mxu0 %v3764
        %3864 = vmatprep.subr.bf16.mxu0 0
        %3865 = vmatpush1.bf16.msra.mxu0 %v3765
        %3866 = vmatprep.subr.bf16.mxu0 0
        %3867 = vmatpush1.bf16.msra.mxu0 %v3766
        %3868 = vmatprep.subr.bf16.mxu0 0
        %3869 = vmatpush1.bf16.msra.mxu0 %v3767
        %3870 = vmatprep.subr.bf16.mxu0 0
        %3871 = vmatpush1.bf16.msra.mxu0 %v3768
        %3872 = vmatprep.subr.bf16.mxu0 0
        %3873 = vmatpush1.bf16.msra.mxu0 %v3769
        %3874 = vmatprep.mubr.bf16.mxu0 %v3539
        %3875 = vmatmul.mubr.bf16.gmra.mrb[0].mxu0 %v3538
        %v3876 = vpop.f32.mrb[0].mxu0
        %v3877 = vadd.f32 %v3837, %v3876
        %v3878 = vpop.f32.mrb[0].mxu0
        %v3879 = vpop.f32.mrb[0].mxu0
        %v3880 = vpop.f32.mrb[0].mxu0
        %3881 = vdwg.mxu0
        %p3882 = scmp.eq.s32.totalorder %s25, 1
        %v3883 = vmax.f32 %v3877, -20.0
        %v3884 = vmin.f32 %v3883, 2.0
        %s3885 = scalar_select %p3882, 1, 0
        %v3886 = vstv %s3885
        %vm3887 = vcmp.eq.s32.totalorder %v3886, 1
        %v3888 = vsel %vm3887, %v3884, %v3877
        %vm3889 = vcmask 64512
        %3890 = vst.msk [vmem:[%s398] sm:$0xff] %vm3889, %v3888
        %s3891 = sand.u32 %s210, 1
        %s3892 = scalar_lea.sflag [#allocation4], %s3891
        %s3893 = sand.u32 %s210, 1
        %s3894 = smul.addr %s3893, 8
        %s3895 = scalar_lea.vmem [#allocation8], %s3894
        // Predicated region
        $region61: #{tpu_custom_call.1} parent=47 // pred_check
          %p3896 = pneg %p220
        $region62: #{tpu_custom_call.1} parent=47 // pred_check_branch
          %3898 = sbr.rel (%p3896) target = $region64
        $region63: #{tpu_custom_call.1} parent=47 // pred_region
          %s3900 = ssub.s32 128, 128
          %3901 = vsyncadd %s3892, %s3900
          %s3902 = smul.addr %s25, 128
          %s3903 = scalar_lea.hbm %s7, %s3902
          %s3905 = sshll.u32 %s3895, 4
          %s3906 = int_to_ptr.vmem [resolvable:$true] %s3905
          %3908 = dma.vmem_to_hbm [thread:$0]  %s3906, 128, %s3903, %s3892
        $region64: #{tpu_custom_call.1} parent=47 // pred_fallthru
          _
      $region48: #{tpu_custom_call.1} parent=5 // pred_fallthru
        _
      %p3909 = scmp.le.s32.totalorder 2, %s20
      // Predicated region
      $region65: #{tpu_custom_call.1} parent=5 // pred_check
        %p3910 = pneg %p3909
      $region66: #{tpu_custom_call.1} parent=5 // pred_check_branch
        %3912 = sbr.rel (%p3910) target = $region68
      $region67: #{tpu_custom_call.1} parent=5 // pred_region
        %s3913 = ssub.s32 %s20, 2
        // Predicated region
        $region69: #{tpu_custom_call.1} parent=67 // pred_check
          %p3914 = pneg %p226
        $region70: #{tpu_custom_call.1} parent=67 // pred_check_branch
          %3916 = sbr.rel (%p3914) target = $region72
        $region71: #{tpu_custom_call.1} parent=67 // pred_region
          %s3917 = sand.u32 %s211, 1
          %s3918 = scalar_lea.sflag [#allocation4], %s3917
          %s3919 = sand.u32 %s211, 1
          %s3920 = smul.addr %s3919, 8
          %s3921 = scalar_lea.vmem [#allocation8], %s3920
          %3922 = dma.done %s3918, 128
        $region72: #{tpu_custom_call.1} parent=67 // pred_fallthru
          _
      $region68: #{tpu_custom_call.1} parent=5 // pred_fallthru
        _
    $region6: #{tpu_custom_call.1} parent=1 // loop_footer
      %s24 = sadd.s32 1, %s20
    $region7: #{tpu_custom_call.1} parent=1 // loop_footer_branch
      %19 = sbr.rel target = $region3
    $region8: #{tpu_custom_call.1} parent=1 // loop_exit
      _
    %3923 = vsyncpa [#allocation3], 1
    %s3924 = scalar_lea.sflag [#allocation3], 1
    %3925 = vsyncpa %s3924, 1
    %3926 = vsyncpa [#allocation6], 1
    %s3927 = scalar_lea.sflag [#allocation6], 1
    %3928 = vsyncpa %s3927, 1
    %3929 = vsyncpa [#allocation4], 1
    %s3930 = scalar_lea.sflag [#allocation4], 1
    %3931 = vsyncpa %s3930, 1

</llo_original>
